<compile_context>
chip_gen: v5e
topology: v5e:2x2
jax: 0.10.0
libtpu: 0.0.40
codegen_flags: <defaults>
</compile_context>

<pallas_src>
import jax
import jax.numpy as jnp
from jax.experimental import pallas as pl
from jax.experimental.pallas import tpu as pltpu

RMS_EPS = 1e-6  # TODO(synk): archibox RMSNorm eps not visible in snippet; using 1e-6


def _round_up(a: int, b: int) -> int:
    return (a + b - 1) // b * b


def _vmmlp_kernel(x_ref, c_ref, wk_ref, wc_ref, wv_ref, o_ref):
    # RMSNorm statistics and all accumulation in f32 (mandatory on v5e,
    # which has no bf16 VPU/EUP).
    x = x_ref[...].astype(jnp.float32)
    c = c_ref[...].astype(jnp.float32)

    nx = x * jax.lax.rsqrt(jnp.mean(x * x, axis=-1, keepdims=True) + RMS_EPS)
    nc = c * jax.lax.rsqrt(jnp.mean(c * c, axis=-1, keepdims=True) + RMS_EPS)

    # MXU matmuls: bf16 operands, f32 accumulate.
    k = jnp.dot(nx.astype(jnp.bfloat16), wk_ref[...],
                preferred_element_type=jnp.float32)
    g = jnp.dot(nc.astype(jnp.bfloat16), wc_ref[...],
                preferred_element_type=jnp.float32)

    # Vector modulation + SiLU.  silu(s) = s / (1 + exp(-s)):
    # exp rides the EUP slot, approx reciprocal likewise (keeps VPU free).
    s = k * (1.0 + g)
    s = s * pl.reciprocal(1.0 + jnp.exp(-s), approx=True)

    # wv already has the per-output `scale` folded into its columns.
    out = jnp.dot(s.astype(jnp.bfloat16), wv_ref[...],
                  preferred_element_type=jnp.float32)
    o_ref[...] = out.astype(o_ref.dtype)


def vector_modulated_mlp(x, c, wk, wc, wv, scale, *, block_b=128,
                         weight_dtype=jnp.bfloat16):
    """x, c: (B, dim); wk, wc: (dim, mlp_dim); wv: (mlp_dim, dim); scale: (1, dim).

    Weights are stored pre-transposed as (in_features, out_features) so the
    kernel does plain `act @ W` on the MXU (lane axis = output-feature axis).
    """
    B, dim = x.shape
    mlp_dim = wk.shape[1]
    assert dim % 128 == 0 and mlp_dim % 128 == 0, (
        "keep feature dims lane-dense (multiples of 128)")

    # ---- weight prep (once per call; in a real model do this at init) ----
    wk_w = wk.astype(weight_dtype)
    wc_w = wc.astype(weight_dtype)
    wv_w = (wv * scale).astype(weight_dtype)  # fold per-output scale into wv

    # ---- batch tiling: large tiles, pad ragged batches ----
    if B >= block_b:
        bb = block_b
    else:
        bb = _round_up(B, 8)  # small batch: one tile, sublane-aligned
    Bp = _round_up(B, bb)
    if Bp != B:
        pad = ((0, Bp - B), (0, 0))
        x = jnp.pad(x, pad)   # zero rows are safe: rsqrt(0 + eps) * 0 = 0
        c = jnp.pad(c, pad)
    grid = (Bp // bb,)

    # ---- explicit VMEM budget (weights fully resident, tiles double-buffered)
    act_bytes = jnp.dtype(x.dtype).itemsize
    w_bytes = (2 * dim * mlp_dim + mlp_dim * dim) * jnp.dtype(weight_dtype).itemsize
    tile_bytes = 3 * bb * dim * act_bytes  # x, c, out tiles
    vmem_limit = min(max(2 * (w_bytes + tile_bytes) + (8 << 20), 32 << 20), 64 << 20)
    # TODO(synk): for production mlp_dim on v7x (64 MiB VMEM/TC), add a grid
    # axis over mlp_dim with an f32 scratch accumulator instead of keeping
    # wk/wc/wv fully resident.

    out = pl.pallas_call(
        _vmmlp_kernel,
        out_shape=jax.ShapeDtypeStruct((Bp, dim), x.dtype),
        grid_spec=pltpu.PrefetchScalarGridSpec(
            num_scalar_prefetch=0,
            grid=grid,
            in_specs=[
                pl.BlockSpec((bb, dim), lambda i: (i, 0)),       # x tile
                pl.BlockSpec((bb, dim), lambda i: (i, 0)),       # c tile
                pl.BlockSpec((dim, mlp_dim), lambda i: (0, 0)),  # wk (resident)
                pl.BlockSpec((dim, mlp_dim), lambda i: (0, 0)),  # wc (resident)
                pl.BlockSpec((mlp_dim, dim), lambda i: (0, 0)),  # wv*scale (resident)
            ],
            out_specs=pl.BlockSpec((bb, dim), lambda i: (i, 0)),
        ),
        compiler_params=pltpu.CompilerParams(
            dimension_semantics=("parallel",),
            vmem_limit_bytes=int(vmem_limit),
        ),
    )(x, c, wk_w, wc_w, wv_w)

    return out[:B]


def reference(x, c, wk, wc, wv, scale):
    """f32 math with bf16 matmul operands (matches the kernel's MXU precision)."""
    x = x.astype(jnp.float32)
    c = c.astype(jnp.float32)
    nx = x * jax.lax.rsqrt(jnp.mean(x * x, -1, keepdims=True) + RMS_EPS)
    nc = c * jax.lax.rsqrt(jnp.mean(c * c, -1, keepdims=True) + RMS_EPS)
    wkb = wk.astype(jnp.bfloat16)
    wcb = wc.astype(jnp.bfloat16)
    wvb = (wv * scale).astype(jnp.bfloat16)
    k = jnp.dot(nx.astype(jnp.bfloat16), wkb, preferred_element_type=jnp.float32)
    g = jnp.dot(nc.astype(jnp.bfloat16), wcb, preferred_element_type=jnp.float32)
    s = k * (1.0 + g)
    s = s * jax.nn.sigmoid(s)
    return jnp.dot(s.astype(jnp.bfloat16), wvb, preferred_element_type=jnp.float32)


if __name__ == "__main__":
    # Lane-dense small shapes: dim/mlp_dim multiples of 128, grid length 2.
    B, dim, mlp_dim = 256, 256, 512

    key = jax.random.PRNGKey(0)
    kx, kc, k1, k2, k3, k4 = jax.random.split(key, 6)

    x = jax.random.normal(kx, (B, dim), dtype=jnp.float32)
    c = jax.random.normal(kc, (B, dim), dtype=jnp.float32)

    # Deterministic parameter init (shapes from __init__); stored as (in, out).
    wk = jax.random.normal(k1, (dim, mlp_dim), dtype=jnp.float32) * (dim ** -0.5)
    wc = jax.random.normal(k2, (dim, mlp_dim), dtype=jnp.float32) * (dim ** -0.5)
    wv = jax.random.normal(k3, (mlp_dim, dim), dtype=jnp.float32) * (mlp_dim ** -0.5)
    scale = 1.0 + 0.1 * jax.random.normal(k4, (1, dim), dtype=jnp.float32)

    out = vector_modulated_mlp(x, c, wk, wc, wv, scale, block_b=128)
    out = jax.block_until_ready(out)

    ref = reference(x, c, wk, wc, wv, scale)
    assert out.shape == (B, dim)
    assert jnp.allclose(out, ref, atol=2e-2, rtol=2e-2), "mismatch vs reference"

    print("KERNEL_OK")
</pallas_src>

<mosaic_0001>
module attributes {stable_mosaic.version = 11 : i64} {
  func.func @_vmmlp_kernel(%arg0: i32, %arg1: memref<128x256xf32, #tpu.memory_space<vmem>>, %arg2: memref<128x256xf32, #tpu.memory_space<vmem>>, %arg3: memref<256x512xbf16, #tpu.memory_space<vmem>>, %arg4: memref<256x512xbf16, #tpu.memory_space<vmem>>, %arg5: memref<512x256xbf16, #tpu.memory_space<vmem>>, %arg6: memref<128x256xf32, #tpu.memory_space<vmem>>) attributes {dimension_semantics = [#tpu.dimension_semantics<parallel>], iteration_bounds = array<i64: 2>, scalar_prefetch = 0 : i64, scratch_operands = 0 : i64, tpu.core_type = #tpu.core_type<tc>, window_params = [{transform_indices = @transform_0, window_bounds = array<i64: 128, 256>}, {transform_indices = @transform_1, window_bounds = array<i64: 128, 256>}, {pipeline_mode = #tpu.pipeline_mode<synchronous>, transform_indices = @transform_2, window_bounds = array<i64: 256, 512>}, {pipeline_mode = #tpu.pipeline_mode<synchronous>, transform_indices = @transform_3, window_bounds = array<i64: 256, 512>}, {pipeline_mode = #tpu.pipeline_mode<synchronous>, transform_indices = @transform_4, window_bounds = array<i64: 512, 256>}, {transform_indices = @transform_5, window_bounds = array<i64: 128, 256>}]} {
    %c0 = arith.constant 0 : index
    %c0_0 = arith.constant 0 : index
    %0 = vector.load %arg1[%c0, %c0_0] : memref<128x256xf32, #tpu.memory_space<vmem>>, vector<128x256xf32>
    %c0_1 = arith.constant 0 : index
    %c0_2 = arith.constant 0 : index
    %1 = vector.load %arg2[%c0_1, %c0_2] : memref<128x256xf32, #tpu.memory_space<vmem>>, vector<128x256xf32>
    %2 = arith.mulf %0, %0 : vector<128x256xf32>
    %cst = arith.constant dense<0.000000e+00> : vector<128xf32>
    %3 = vector.multi_reduction <add>, %2, %cst [1] : vector<128x256xf32> to vector<128xf32>
    %4 = vector.shape_cast %3 : vector<128xf32> to vector<128x1xf32>
    %cst_3 = arith.constant 2.560000e+02 : f32
    %5 = vector.broadcast %cst_3 : f32 to vector<128x1xf32>
    %6 = arith.divf %4, %5 : vector<128x1xf32>
    %cst_4 = arith.constant 9.99999997E-7 : f32
    %7 = vector.broadcast %cst_4 : f32 to vector<128x1xf32>
    %8 = arith.addf %6, %7 : vector<128x1xf32>
    %9 = math.rsqrt %8 : vector<128x1xf32>
    %10 = vector.broadcast %9 : vector<128x1xf32> to vector<128x256xf32>
    %11 = arith.mulf %0, %10 : vector<128x256xf32>
    %12 = arith.mulf %1, %1 : vector<128x256xf32>
    %cst_5 = arith.constant dense<0.000000e+00> : vector<128xf32>
    %13 = vector.multi_reduction <add>, %12, %cst_5 [1] : vector<128x256xf32> to vector<128xf32>
    %14 = vector.shape_cast %13 : vector<128xf32> to vector<128x1xf32>
    %cst_6 = arith.constant 2.560000e+02 : f32
    %15 = vector.broadcast %cst_6 : f32 to vector<128x1xf32>
    %16 = arith.divf %14, %15 : vector<128x1xf32>
    %cst_7 = arith.constant 9.99999997E-7 : f32
    %17 = vector.broadcast %cst_7 : f32 to vector<128x1xf32>
    %18 = arith.addf %16, %17 : vector<128x1xf32>
    %19 = math.rsqrt %18 : vector<128x1xf32>
    %20 = vector.broadcast %19 : vector<128x1xf32> to vector<128x256xf32>
    %21 = arith.mulf %1, %20 : vector<128x256xf32>
    %22 = arith.truncf %11 : vector<128x256xf32> to vector<128x256xbf16>
    %c0_8 = arith.constant 0 : index
    %c0_9 = arith.constant 0 : index
    %23 = vector.load %arg3[%c0_8, %c0_9] : memref<256x512xbf16, #tpu.memory_space<vmem>>, vector<256x512xbf16>
    %cst_10 = arith.constant dense<0.000000e+00> : vector<128x512xf32>
    %24 = tpu.matmul %22, %23, %cst_10 {dimension_numbers = #tpu.dot_dimension_numbers<[1], [0], [0], [1], [0, 0, 1, 1], [], []>} : vector<128x256xbf16>, vector<256x512xbf16>, vector<128x512xf32> -> vector<128x512xf32>
    %25 = arith.truncf %21 : vector<128x256xf32> to vector<128x256xbf16>
    %c0_11 = arith.constant 0 : index
    %c0_12 = arith.constant 0 : index
    %26 = vector.load %arg4[%c0_11, %c0_12] : memref<256x512xbf16, #tpu.memory_space<vmem>>, vector<256x512xbf16>
    %cst_13 = arith.constant dense<0.000000e+00> : vector<128x512xf32>
    %27 = tpu.matmul %25, %26, %cst_13 {dimension_numbers = #tpu.dot_dimension_numbers<[1], [0], [0], [1], [0, 0, 1, 1], [], []>} : vector<128x256xbf16>, vector<256x512xbf16>, vector<128x512xf32> -> vector<128x512xf32>
    %cst_14 = arith.constant 1.000000e+00 : f32
    %28 = vector.broadcast %cst_14 : f32 to vector<128x512xf32>
    %29 = arith.addf %28, %27 : vector<128x512xf32>
    %30 = arith.mulf %24, %29 : vector<128x512xf32>
    %cst_15 = arith.constant 0.000000e+00 : f32
    %31 = vector.broadcast %cst_15 : f32 to vector<128x512xf32>
    %32 = arith.subf %31, %30 : vector<128x512xf32>
    %33 = math.exp %32 : vector<128x512xf32>
    %cst_16 = arith.constant 1.000000e+00 : f32
    %34 = vector.broadcast %cst_16 : f32 to vector<128x512xf32>
    %35 = arith.addf %34, %33 : vector<128x512xf32>
    %36 = tpu.reciprocal %35 {approx = true} : vector<128x512xf32> -> vector<128x512xf32>
    %37 = arith.mulf %30, %36 : vector<128x512xf32>
    %38 = arith.truncf %37 : vector<128x512xf32> to vector<128x512xbf16>
    %c0_17 = arith.constant 0 : index
    %c0_18 = arith.constant 0 : index
    %39 = vector.load %arg5[%c0_17, %c0_18] : memref<512x256xbf16, #tpu.memory_space<vmem>>, vector<512x256xbf16>
    %cst_19 = arith.constant dense<0.000000e+00> : vector<128x256xf32>
    %40 = tpu.matmul %38, %39, %cst_19 {dimension_numbers = #tpu.dot_dimension_numbers<[1], [0], [0], [1], [0, 0, 1, 1], [], []>} : vector<128x512xbf16>, vector<512x256xbf16>, vector<128x256xf32> -> vector<128x256xf32>
    %c0_20 = arith.constant 0 : index
    %c0_21 = arith.constant 0 : index
    %41 = vector.load %arg6[%c0_20, %c0_21] : memref<128x256xf32, #tpu.memory_space<vmem>>, vector<128x256xf32>
    tpu.vector_store %arg6[%c0_20, %c0_21], %40 {strides = array<i32>} : memref<128x256xf32, #tpu.memory_space<vmem>>, vector<128x256xf32>,
    return
  }
  func.func @transform_0(%arg0: i32) -> (i32, i32) {
    %c0_i32 = arith.constant 0 : i32
    %c0_i32_0 = arith.constant 0 : i32
    return %arg0, %c0_i32 : i32, i32
  }
  func.func @transform_1(%arg0: i32) -> (i32, i32) {
    %c0_i32 = arith.constant 0 : i32
    %c0_i32_0 = arith.constant 0 : i32
    return %arg0, %c0_i32 : i32, i32
  }
  func.func @transform_2(%arg0: i32) -> (i32, i32) {
    %c0_i32 = arith.constant 0 : i32
    %c0_i32_0 = arith.constant 0 : i32
    %c0_i32_1 = arith.constant 0 : i32
    return %c0_i32, %c0_i32_0 : i32, i32
  }
  func.func @transform_3(%arg0: i32) -> (i32, i32) {
    %c0_i32 = arith.constant 0 : i32
    %c0_i32_0 = arith.constant 0 : i32
    %c0_i32_1 = arith.constant 0 : i32
    return %c0_i32, %c0_i32_0 : i32, i32
  }
  func.func @transform_4(%arg0: i32) -> (i32, i32) {
    %c0_i32 = arith.constant 0 : i32
    %c0_i32_0 = arith.constant 0 : i32
    %c0_i32_1 = arith.constant 0 : i32
    return %c0_i32, %c0_i32_0 : i32, i32
  }
  func.func @transform_5(%arg0: i32) -> (i32, i32) {
    %c0_i32 = arith.constant 0 : i32
    %c0_i32_0 = arith.constant 0 : i32
    return %arg0, %c0_i32 : i32, i32
  }
}

</mosaic_0001>

<llo_original>
// kernel: tpu_custom_call.1
$region0: #{tpu_custom_call.1}
  #allocation0 [shape = 'u32[]', space=smem, size = 0x4, offset = 0x4, fixed_abs, tag = 'smem constant byte address 0x4 - core index']
  #allocation1 [shape = 'u32[72,128]{1,0:T(1,128)}', space=vmem, size = 0x9000, scoped, tag = 'internal scratch']
  %s0 = inlined_call_operand.hbm [shape: f32[256,256], index: 0, kind: input, shape index: {}]
  %s1 = inlined_call_operand.hbm [shape: f32[256,256], index: 1, kind: input, shape index: {}]
  %s2 = inlined_call_operand.hbm [shape: bf16[256,512], index: 2, kind: input, shape index: {}]
  %s3 = inlined_call_operand.hbm [shape: bf16[256,512], index: 3, kind: input, shape index: {}]
  %s4 = inlined_call_operand.hbm [shape: bf16[512,256], index: 4, kind: input, shape index: {}]
  %s5 = inlined_call_operand.hbm [shape: f32[256,256], index: 5, kind: output, shape index: {}]
  %s6 = sld [smem:[#allocation0]]
  $region73: #{tpu_custom_call.1} parent=0
    _
  %s8 = ssub.s32 1, %s6
  %s9 = scalar_select 0, %s8, %s6
  $region1: #{tpu_custom_call.1} parent=0
    #allocation2 [shape = 'u8[262144]{0}', space=vmem, size = 0x40000, scoped, tag = 'input window, operand 0']
    #allocation3 [shape = 's32[2]{0}', space=sflag, size = 0x8, scoped, tag = 'scoped memory for tpu_custom_call.1']
    #allocation4 [shape = 's32[2]{0}', space=sflag, size = 0x8, scoped, tag = 'scoped memory for tpu_custom_call.1']
    #allocation5 [shape = 'u8[262144]{0}', space=vmem, size = 0x40000, scoped, tag = 'input window, operand 1']
    #allocation6 [shape = 's32[2]{0}', space=sflag, size = 0x8, scoped, tag = 'scoped memory for tpu_custom_call.1']
    #allocation7 [shape = 'u8[262144]{0}', space=vmem, size = 0x40000, scoped, tag = 'input window, operand 2, single buffered']
    #allocation8 [shape = 'u8[262144]{0}', space=vmem, size = 0x40000, scoped, tag = 'input window, operand 3, single buffered']
    #allocation9 [shape = 's32[1]{0}', space=sflag, size = 0x4, scoped, tag = 'scoped memory for tpu_custom_call.1']
    #allocation10 [shape = 'u8[262144]{0}', space=vmem, size = 0x40000, scoped, tag = 'input window, operand 4, single buffered']
    #allocation11 [shape = 'u8[262144]{0}', space=vmem, size = 0x40000, scoped, tag = 'output window, operand 0']
    %10 = vsyncpa [#allocation3], 0
    %s11 = scalar_lea.sflag [#allocation3], 1
    %12 = vsyncpa %s11, 0
    %13 = vsyncpa [#allocation6], 0
    %s14 = scalar_lea.sflag [#allocation6], 1
    %15 = vsyncpa %s14, 0
    %16 = vsyncpa [#allocation9], 0
    %17 = vsyncpa [#allocation4], 0
    %s18 = scalar_lea.sflag [#allocation4], 1
    %19 = vsyncpa %s18, 0
    loop: start=0, step=1, limit=4
    $region2: #{tpu_custom_call.1} parent=1 // loop_pre_header
      _
    $region3: #{tpu_custom_call.1} parent=1 // loop_header
      %s21 = sphi 0, %s25
      %p22 = scmp.ge.s32.totalorder %s21, 4
      %s31 = sphi 0, %s33
      %s34 = sphi 0, %s31
      %s35 = sphi 0, %s34
      %s51 = sphi 0, %s35
      %s57 = sphi 0, %s59
      %s60 = sphi 0, %s57
      %s61 = sphi 0, %s60
      %s77 = sphi 0, %s61
      %s81 = sphi 0, %s81
      %s83 = sphi 0, %s81
      %s84 = sphi 0, %s83
      %s98 = sphi 0, %s84
      %s102 = sphi 0, %s102
      %s104 = sphi 0, %s102
      %s105 = sphi 0, %s104
      %s119 = sphi 0, %s105
      %s123 = sphi 0, %s123
      %s125 = sphi 0, %s123
      %s126 = sphi 0, %s125
      %s140 = sphi 0, %s126
      %s146 = sphi 0, %s148
      %s149 = sphi 0, %s146
      %s150 = sphi 0, %s149
      %s166 = sphi 0, %s150
    $region4: #{tpu_custom_call.1} parent=1 // loop_header_branch
      %24 = sbr.rel (%p22) target = $region8
    $region5: #{tpu_custom_call.1} parent=1 // loop_body
      %s26 = ssub.s32 %s21, 1
      %s27 = ssub.s32 %s21, 2
      %s28 = sadd.s32 %s21, 1
      %s29 = ssub.s32 %s21, %s28
      %p30 = scmp.eq.s32.totalorder %s29, 0
      %s32 = sadd.s32 %s31, 1
      %s33 = scalar_select %p30, %s31, %s32
      %p36 = pneg %p30
      %p37 = scmp.eq.s32.totalorder %s21, 1
      %p38 = por %p36, %p37
      %p39 = scmp.ne.s32.totalorder %s31, %s34
      %p40 = scmp.eq.s32.totalorder %s21, 0
      %p41 = por %p39, %p40
      %p42 = scmp.ne.s32.totalorder %s31, %s34
      %p43 = scmp.eq.s32.totalorder %s26, 1
      %p44 = por %p42, %p43
      %p45 = scmp.ne.s32.totalorder %s34, %s35
      %p46 = scmp.eq.s32.totalorder %s26, 0
      %p47 = por %p45, %p46
      %p48 = scmp.ne.s32.totalorder %s34, %s35
      %p49 = scmp.eq.s32.totalorder %s27, 1
      %p50 = por %p48, %p49
      %p52 = scmp.ne.s32.totalorder %s35, %s51
      %p53 = scmp.eq.s32.totalorder %s27, 0
      %p54 = por %p52, %p53
      %s55 = ssub.s32 %s21, %s28
      %p56 = scmp.eq.s32.totalorder %s55, 0
      %s58 = sadd.s32 %s57, 1
      %s59 = scalar_select %p56, %s57, %s58
      %p62 = pneg %p56
      %p63 = scmp.eq.s32.totalorder %s21, 1
      %p64 = por %p62, %p63
      %p65 = scmp.ne.s32.totalorder %s57, %s60
      %p66 = scmp.eq.s32.totalorder %s21, 0
      %p67 = por %p65, %p66
      %p68 = scmp.ne.s32.totalorder %s57, %s60
      %p69 = scmp.eq.s32.totalorder %s26, 1
      %p70 = por %p68, %p69
      %p71 = scmp.ne.s32.totalorder %s60, %s61
      %p72 = scmp.eq.s32.totalorder %s26, 0
      %p73 = por %p71, %p72
      %p74 = scmp.ne.s32.totalorder %s60, %s61
      %p75 = scmp.eq.s32.totalorder %s27, 1
      %p76 = por %p74, %p75
      %p78 = scmp.ne.s32.totalorder %s61, %s77
      %p79 = scmp.eq.s32.totalorder %s27, 0
      %p80 = por %p78, %p79
      %s82 = sadd.s32 %s81, 1
      %p85 = scmp.eq.s32.totalorder %s21, 1
      %p86 = scmp.ne.s32.totalorder %s81, %s83
      %p87 = scmp.eq.s32.totalorder %s21, 0
      %p88 = por %p86, %p87
      %p89 = scmp.ne.s32.totalorder %s81, %s83
      %p90 = scmp.eq.s32.totalorder %s26, 1
      %p91 = por %p89, %p90
      %p92 = scmp.ne.s32.totalorder %s83, %s84
      %p93 = scmp.eq.s32.totalorder %s26, 0
      %p94 = por %p92, %p93
      %p95 = scmp.ne.s32.totalorder %s83, %s84
      %p96 = scmp.eq.s32.totalorder %s27, 1
      %p97 = por %p95, %p96
      %p99 = scmp.ne.s32.totalorder %s84, %s98
      %p100 = scmp.eq.s32.totalorder %s27, 0
      %p101 = por %p99, %p100
      %s103 = sadd.s32 %s102, 1
      %p106 = scmp.eq.s32.totalorder %s21, 1
      %p107 = scmp.ne.s32.totalorder %s102, %s104
      %p108 = scmp.eq.s32.totalorder %s21, 0
      %p109 = por %p107, %p108
      %p110 = scmp.ne.s32.totalorder %s102, %s104
      %p111 = scmp.eq.s32.totalorder %s26, 1
      %p112 = por %p110, %p111
      %p113 = scmp.ne.s32.totalorder %s104, %s105
      %p114 = scmp.eq.s32.totalorder %s26, 0
      %p115 = por %p113, %p114
      %p116 = scmp.ne.s32.totalorder %s104, %s105
      %p117 = scmp.eq.s32.totalorder %s27, 1
      %p118 = por %p116, %p117
      %p120 = scmp.ne.s32.totalorder %s105, %s119
      %p121 = scmp.eq.s32.totalorder %s27, 0
      %p122 = por %p120, %p121
      %s124 = sadd.s32 %s123, 1
      %p127 = scmp.eq.s32.totalorder %s21, 1
      %p128 = scmp.ne.s32.totalorder %s123, %s125
      %p129 = scmp.eq.s32.totalorder %s21, 0
      %p130 = por %p128, %p129
      %p131 = scmp.ne.s32.totalorder %s123, %s125
      %p132 = scmp.eq.s32.totalorder %s26, 1
      %p133 = por %p131, %p132
      %p134 = scmp.ne.s32.totalorder %s125, %s126
      %p135 = scmp.eq.s32.totalorder %s26, 0
      %p136 = por %p134, %p135
      %p137 = scmp.ne.s32.totalorder %s125, %s126
      %p138 = scmp.eq.s32.totalorder %s27, 1
      %p139 = por %p137, %p138
      %p141 = scmp.ne.s32.totalorder %s126, %s140
      %p142 = scmp.eq.s32.totalorder %s27, 0
      %p143 = por %p141, %p142
      %s144 = ssub.s32 %s21, %s28
      %p145 = scmp.eq.s32.totalorder %s144, 0
      %s147 = sadd.s32 %s146, 1
      %s148 = scalar_select %p145, %s146, %s147
      %p151 = pneg %p145
      %p152 = scmp.eq.s32.totalorder %s21, 1
      %p153 = por %p151, %p152
      %p154 = scmp.ne.s32.totalorder %s146, %s149
      %p155 = scmp.eq.s32.totalorder %s21, 0
      %p156 = por %p154, %p155
      %p157 = scmp.ne.s32.totalorder %s146, %s149
      %p158 = scmp.eq.s32.totalorder %s26, 1
      %p159 = por %p157, %p158
      %p160 = scmp.ne.s32.totalorder %s149, %s150
      %p161 = scmp.eq.s32.totalorder %s26, 0
      %p162 = por %p160, %p161
      %p163 = scmp.ne.s32.totalorder %s149, %s150
      %p164 = scmp.eq.s32.totalorder %s27, 1
      %p165 = por %p163, %p164
      %p167 = scmp.ne.s32.totalorder %s150, %s166
      %p168 = scmp.eq.s32.totalorder %s27, 0
      %p169 = por %p167, %p168
      %p170 = scmp.le.s32.totalorder 1, %s21
      %p171 = scmp.lt.s32.totalorder %s21, 3
      %p172 = pnand %p170, %p171
      %p173 = pneg %p172
      // Predicated region
      $region9: #{tpu_custom_call.1} parent=5 // pred_check
        _
      $region10: #{tpu_custom_call.1} parent=5 // pred_check_branch
        %175 = sbr.rel (%p172) target = $region12
      $region11: #{tpu_custom_call.1} parent=5 // pred_region
        %s176 = ssub.s32 %s21, 1
        // Predicated region
        $region13: #{tpu_custom_call.1} parent=11 // pred_check
          %p177 = pneg %p94
        $region14: #{tpu_custom_call.1} parent=11 // pred_check_branch
          %179 = sbr.rel (%p177) target = $region16
        $region15: #{tpu_custom_call.1} parent=11 // pred_region
          %181 = vsyncadd [#allocation6], 0
          %s182 = sshll.u32 %s2, 4
          %s183 = int_to_ptr.hbm [resolvable:$true] %s182
          %s184 = sshll.u32 [#allocation7], 4
          %s185 = int_to_ptr.vmem [resolvable:$true] %s184
          %190 = dma.hbm_to_vmem [thread:$0]  %s183, 8192, %s185, [#allocation6], 256, 256, 16
        $region16: #{tpu_custom_call.1} parent=11 // pred_fallthru
          _
        // Predicated region
        $region17: #{tpu_custom_call.1} parent=11 // pred_check
          %p191 = pneg %p115
        $region18: #{tpu_custom_call.1} parent=11 // pred_check_branch
          %193 = sbr.rel (%p191) target = $region20
        $region19: #{tpu_custom_call.1} parent=11 // pred_region
          %195 = vsyncadd [#allocation9], 0
          %s196 = sshll.u32 %s3, 4
          %s197 = int_to_ptr.hbm [resolvable:$true] %s196
          %s198 = sshll.u32 [#allocation8], 4
          %s199 = int_to_ptr.vmem [resolvable:$true] %s198
          %204 = dma.hbm_to_vmem [thread:$0]  %s197, 8192, %s199, [#allocation9], 256, 256, 16
        $region20: #{tpu_custom_call.1} parent=11 // pred_fallthru
          _
        // Predicated region
        $region21: #{tpu_custom_call.1} parent=11 // pred_check
          %p205 = pneg %p136
        $region22: #{tpu_custom_call.1} parent=11 // pred_check_branch
          %207 = sbr.rel (%p205) target = $region24
        $region23: #{tpu_custom_call.1} parent=11 // pred_region
          %209 = vsyncadd [#allocation9], 0
          %s210 = sshll.u32 %s4, 4
          %s211 = int_to_ptr.hbm [resolvable:$true] %s210
          %s212 = sshll.u32 [#allocation10], 4
          %s213 = int_to_ptr.vmem [resolvable:$true] %s212
          %218 = dma.hbm_to_vmem [thread:$0]  %s211, 8192, %s213, [#allocation9], 128, 128, 8
        $region24: #{tpu_custom_call.1} parent=11 // pred_fallthru
          _
      $region12: #{tpu_custom_call.1} parent=5 // pred_fallthru
        _
      %p219 = scmp.lt.s32.totalorder %s21, 2
      // Predicated region
      $region25: #{tpu_custom_call.1} parent=5 // pred_check
        %p220 = pneg %p219
      $region26: #{tpu_custom_call.1} parent=5 // pred_check_branch
        %222 = sbr.rel (%p220) target = $region28
      $region27: #{tpu_custom_call.1} parent=5 // pred_region
        // Predicated region
        $region29: #{tpu_custom_call.1} parent=27 // pred_check
          %p223 = pneg %p41
        $region30: #{tpu_custom_call.1} parent=27 // pred_check_branch
          %225 = sbr.rel (%p223) target = $region32
        $region31: #{tpu_custom_call.1} parent=27 // pred_region
          %s226 = sand.u32 %s31, 1
          %s227 = scalar_lea.sflag [#allocation3], %s226
          %s228 = sand.u32 %s31, 1
          %s229 = smul.addr %s228, 256
          %s230 = scalar_lea.vmem [#allocation2], %s229
          %s231 = smul.u32 16, %s21
          %233 = vsyncadd %s227, 0
          %s234 = smul.addr %s231, 2
          %s235 = smul.addr %s234, 8
          %s236 = scalar_lea.hbm %s0, %s235
          %s237 = sshll.u32 %s236, 4
          %s238 = int_to_ptr.hbm [resolvable:$true] %s237
          %s239 = sshll.u32 %s230, 4
          %s240 = int_to_ptr.vmem [resolvable:$true] %s239
          %245 = dma.hbm_to_vmem [thread:$0]  %s238, 4096, %s240, %s227, 256, 256, 16
        $region32: #{tpu_custom_call.1} parent=27 // pred_fallthru
          _
        // Predicated region
        $region33: #{tpu_custom_call.1} parent=27 // pred_check
          %p246 = pneg %p67
        $region34: #{tpu_custom_call.1} parent=27 // pred_check_branch
          %248 = sbr.rel (%p246) target = $region36
        $region35: #{tpu_custom_call.1} parent=27 // pred_region
          %s249 = sand.u32 %s21, 1
          %s250 = scalar_lea.sflag [#allocation6], %s249
          %s251 = sand.u32 %s57, 1
          %s252 = smul.addr %s251, 256
          %s253 = scalar_lea.vmem [#allocation5], %s252
          %s254 = smul.u32 16, %s21
          %256 = vsyncadd %s250, 0
          %s257 = smul.addr %s254, 2
          %s258 = smul.addr %s257, 8
          %s259 = scalar_lea.hbm %s1, %s258
          %s260 = sshll.u32 %s259, 4
          %s261 = int_to_ptr.hbm [resolvable:$true] %s260
          %s262 = sshll.u32 %s253, 4
          %s263 = int_to_ptr.vmem [resolvable:$true] %s262
          %268 = dma.hbm_to_vmem [thread:$0]  %s261, 4096, %s263, %s250, 256, 256, 16
        $region36: #{tpu_custom_call.1} parent=27 // pred_fallthru
          _
      $region28: #{tpu_custom_call.1} parent=5 // pred_fallthru
        _
      %p269 = scmp.le.s32.totalorder 1, %s21
      %p270 = scmp.lt.s32.totalorder %s21, 3
      %p271 = pnand %p269, %p270
      %p272 = pneg %p271
      // Predicated region
      $region37: #{tpu_custom_call.1} parent=5 // pred_check
        _
      $region38: #{tpu_custom_call.1} parent=5 // pred_check_branch
        %274 = sbr.rel (%p271) target = $region40
      $region39: #{tpu_custom_call.1} parent=5 // pred_region
        %s275 = ssub.s32 %s21, 1
        %s276 = sand.u32 %s34, 1
        %s277 = scalar_lea.sflag [#allocation3], %s276
        %s278 = sand.u32 %s34, 1
        %s279 = smul.addr %s278, 256
        %s280 = scalar_lea.vmem [#allocation2], %s279
        // Predicated region
        $region41: #{tpu_custom_call.1} parent=39 // pred_check
          %p281 = pneg %p47
        $region42: #{tpu_custom_call.1} parent=39 // pred_check_branch
          %283 = sbr.rel (%p281) target = $region44
        $region43: #{tpu_custom_call.1} parent=39 // pred_region
          %285 = dma.done %s277, 4096
        $region44: #{tpu_custom_call.1} parent=39 // pred_fallthru
          _
        %s286 = sand.u32 %s26, 1
        %s287 = scalar_lea.sflag [#allocation6], %s286
        %s288 = sand.u32 %s60, 1
        %s289 = smul.addr %s288, 256
        %s290 = scalar_lea.vmem [#allocation5], %s289
        // Predicated region
        $region45: #{tpu_custom_call.1} parent=39 // pred_check
          %p291 = pneg %p73
        $region46: #{tpu_custom_call.1} parent=39 // pred_check_branch
          %293 = sbr.rel (%p291) target = $region48
        $region47: #{tpu_custom_call.1} parent=39 // pred_region
          %295 = dma.done %s287, 4096
        $region48: #{tpu_custom_call.1} parent=39 // pred_fallthru
          _
        // Predicated region
        $region49: #{tpu_custom_call.1} parent=39 // pred_check
          %p296 = pneg %p94
        $region50: #{tpu_custom_call.1} parent=39 // pred_check_branch
          %298 = sbr.rel (%p296) target = $region52
        $region51: #{tpu_custom_call.1} parent=39 // pred_region
          %300 = dma.done [#allocation6], 8192
        $region52: #{tpu_custom_call.1} parent=39 // pred_fallthru
          _
        // Predicated region
        $region53: #{tpu_custom_call.1} parent=39 // pred_check
          %p301 = pneg %p115
        $region54: #{tpu_custom_call.1} parent=39 // pred_check_branch
          %303 = sbr.rel (%p301) target = $region56
        $region55: #{tpu_custom_call.1} parent=39 // pred_region
          %305 = dma.done [#allocation9], 8192
        $region56: #{tpu_custom_call.1} parent=39 // pred_fallthru
          _
        // Predicated region
        $region57: #{tpu_custom_call.1} parent=39 // pred_check
          %p306 = pneg %p136
        $region58: #{tpu_custom_call.1} parent=39 // pred_check_branch
          %308 = sbr.rel (%p306) target = $region60
        $region59: #{tpu_custom_call.1} parent=39 // pred_region
          %310 = dma.done [#allocation9], 8192
        $region60: #{tpu_custom_call.1} parent=39 // pred_fallthru
          _
        %s311 = sand.u32 %s34, 1
        %s312 = scalar_lea.sflag [#allocation3], %s311
        %s313 = sand.u32 %s34, 1
        %s314 = smul.addr %s313, 256
        %s315 = scalar_lea.vmem [#allocation2], %s314
        %p316 = pneg %p47
        %p317 = pneg %p44
        %s318 = sand.u32 %s26, 1
        %s319 = scalar_lea.sflag [#allocation6], %s318
        %s320 = sand.u32 %s60, 1
        %s321 = smul.addr %s320, 256
        %s322 = scalar_lea.vmem [#allocation5], %s321
        %p323 = pneg %p73
        %p324 = pneg %p70
        %p325 = pneg %p94
        %p326 = pneg %p91
        %p327 = pneg %p115
        %p328 = pneg %p112
        %p329 = pneg %p136
        %p330 = pneg %p133
        %p331 = pneg %p162
        %p332 = pneg %p159
        %s333 = sand.u32 %s149, 1
        %s334 = scalar_lea.sflag [#allocation4], %s333
        %s335 = sand.u32 %s149, 1
        %s336 = smul.addr %s335, 256
        %s337 = scalar_lea.vmem [#allocation11], %s336
        %s338 = smul.u32 16, %s26
        %s339 = smul.u32 16, %s26
        %s340 = smul.u32 16, %s26
        %v341 = vld [vmem:[%s280] sm:$0xff]
        %v342 = vld [vmem:[%s280 + $0x8] sm:$0xff]
        %v343 = vld [vmem:[%s280 + $0x10] sm:$0xff]
        %v344 = vld [vmem:[%s280 + $0x18] sm:$0xff]
        %v345 = vld [vmem:[%s280 + $0x20] sm:$0xff]
        %v346 = vld [vmem:[%s280 + $0x28] sm:$0xff]
        %v347 = vld [vmem:[%s280 + $0x30] sm:$0xff]
        %v348 = vld [vmem:[%s280 + $0x38] sm:$0xff]
        %v349 = vld [vmem:[%s280 + $0x40] sm:$0xff]
        %v350 = vld [vmem:[%s280 + $0x48] sm:$0xff]
        %v351 = vld [vmem:[%s280 + $0x50] sm:$0xff]
        %v352 = vld [vmem:[%s280 + $0x58] sm:$0xff]
        %v353 = vld [vmem:[%s280 + $0x60] sm:$0xff]
        %v354 = vld [vmem:[%s280 + $0x68] sm:$0xff]
        %v355 = vld [vmem:[%s280 + $0x70] sm:$0xff]
        %v356 = vld [vmem:[%s280 + $0x78] sm:$0xff]
        %v357 = vld [vmem:[%s280 + $0x80] sm:$0xff]
        %v358 = vld [vmem:[%s280 + $0x88] sm:$0xff]
        %v359 = vld [vmem:[%s280 + $0x90] sm:$0xff]
        %v360 = vld [vmem:[%s280 + $0x98] sm:$0xff]
        %v361 = vld [vmem:[%s280 + $0xa0] sm:$0xff]
        %v362 = vld [vmem:[%s280 + $0xa8] sm:$0xff]
        %v363 = vld [vmem:[%s280 + $0xb0] sm:$0xff]
        %v364 = vld [vmem:[%s280 + $0xb8] sm:$0xff]
        %v365 = vld [vmem:[%s280 + $0xc0] sm:$0xff]
        %v366 = vld [vmem:[%s280 + $0xc8] sm:$0xff]
        %v367 = vld [vmem:[%s280 + $0xd0] sm:$0xff]
        %v368 = vld [vmem:[%s280 + $0xd8] sm:$0xff]
        %v369 = vld [vmem:[%s280 + $0xe0] sm:$0xff]
        %v370 = vld [vmem:[%s280 + $0xe8] sm:$0xff]
        %v371 = vld [vmem:[%s280 + $0xf0] sm:$0xff]
        %v372 = vld [vmem:[%s280 + $0xf8] sm:$0xff]
        %v373 = vld [vmem:[%s290] sm:$0xff]
        %v374 = vld [vmem:[%s290 + $0x8] sm:$0xff]
        %v375 = vld [vmem:[%s290 + $0x10] sm:$0xff]
        %v376 = vld [vmem:[%s290 + $0x18] sm:$0xff]
        %v377 = vld [vmem:[%s290 + $0x20] sm:$0xff]
        %v378 = vld [vmem:[%s290 + $0x28] sm:$0xff]
        %v379 = vld [vmem:[%s290 + $0x30] sm:$0xff]
        %v380 = vld [vmem:[%s290 + $0x38] sm:$0xff]
        %v381 = vld [vmem:[%s290 + $0x40] sm:$0xff]
        %v382 = vld [vmem:[%s290 + $0x48] sm:$0xff]
        %v383 = vld [vmem:[%s290 + $0x50] sm:$0xff]
        %v384 = vld [vmem:[%s290 + $0x58] sm:$0xff]
        %v385 = vld [vmem:[%s290 + $0x60] sm:$0xff]
        %v386 = vld [vmem:[%s290 + $0x68] sm:$0xff]
        %v387 = vld [vmem:[%s290 + $0x70] sm:$0xff]
        %v388 = vld [vmem:[%s290 + $0x78] sm:$0xff]
        %v389 = vld [vmem:[%s290 + $0x80] sm:$0xff]
        %v390 = vld [vmem:[%s290 + $0x88] sm:$0xff]
        %v391 = vld [vmem:[%s290 + $0x90] sm:$0xff]
        %v392 = vld [vmem:[%s290 + $0x98] sm:$0xff]
        %v393 = vld [vmem:[%s290 + $0xa0] sm:$0xff]
        %v394 = vld [vmem:[%s290 + $0xa8] sm:$0xff]
        %v395 = vld [vmem:[%s290 + $0xb0] sm:$0xff]
        %v396 = vld [vmem:[%s290 + $0xb8] sm:$0xff]
        %v397 = vld [vmem:[%s290 + $0xc0] sm:$0xff]
        %v398 = vld [vmem:[%s290 + $0xc8] sm:$0xff]
        %v399 = vld [vmem:[%s290 + $0xd0] sm:$0xff]
        %v400 = vld [vmem:[%s290 + $0xd8] sm:$0xff]
        %v401 = vld [vmem:[%s290 + $0xe0] sm:$0xff]
        %v402 = vld [vmem:[%s290 + $0xe8] sm:$0xff]
        %v403 = vld [vmem:[%s290 + $0xf0] sm:$0xff]
        %v404 = vld [vmem:[%s290 + $0xf8] sm:$0xff]
        %v405 = vmul.f32 %v341, %v341
        %v406 = vmul.f32 %v342, %v342
        %v407 = vmul.f32 %v343, %v343
        %v408 = vmul.f32 %v344, %v344
        %v409 = vmul.f32 %v345, %v345
        %v410 = vmul.f32 %v346, %v346
        %v411 = vmul.f32 %v347, %v347
        %v412 = vmul.f32 %v348, %v348
        %v413 = vmul.f32 %v349, %v349
        %v414 = vmul.f32 %v350, %v350
        %v415 = vmul.f32 %v351, %v351
        %v416 = vmul.f32 %v352, %v352
        %v417 = vmul.f32 %v353, %v353
        %v418 = vmul.f32 %v354, %v354
        %v419 = vmul.f32 %v355, %v355
        %v420 = vmul.f32 %v356, %v356
        %v421 = vmul.f32 %v357, %v357
        %v422 = vmul.f32 %v358, %v358
        %v423 = vmul.f32 %v359, %v359
        %v424 = vmul.f32 %v360, %v360
        %v425 = vmul.f32 %v361, %v361
        %v426 = vmul.f32 %v362, %v362
        %v427 = vmul.f32 %v363, %v363
        %v428 = vmul.f32 %v364, %v364
        %v429 = vmul.f32 %v365, %v365
        %v430 = vmul.f32 %v366, %v366
        %v431 = vmul.f32 %v367, %v367
        %v432 = vmul.f32 %v368, %v368
        %v433 = vmul.f32 %v369, %v369
        %v434 = vmul.f32 %v370, %v370
        %v435 = vmul.f32 %v371, %v371
        %v436 = vmul.f32 %v372, %v372
        %v437 = vadd.f32 %v405, %v406
        %438 = vadd.xlane.f32.xlu0 %v437
        %v439 = vpop.xlane.xlu0 %438
        %v440 = vadd.f32 %v407, %v408
        %441 = vadd.xlane.f32.xlu0 %v440
        %v442 = vpop.xlane.xlu0 %441
        %v443 = vadd.f32 %v409, %v410
        %444 = vadd.xlane.f32.xlu0 %v443
        %v445 = vpop.xlane.xlu0 %444
        %v446 = vadd.f32 %v411, %v412
        %447 = vadd.xlane.f32.xlu0 %v446
        %v448 = vpop.xlane.xlu0 %447
        %v449 = vadd.f32 %v413, %v414
        %450 = vadd.xlane.f32.xlu0 %v449
        %v451 = vpop.xlane.xlu0 %450
        %v452 = vadd.f32 %v415, %v416
        %453 = vadd.xlane.f32.xlu0 %v452
        %v454 = vpop.xlane.xlu0 %453
        %v455 = vadd.f32 %v417, %v418
        %456 = vadd.xlane.f32.xlu0 %v455
        %v457 = vpop.xlane.xlu0 %456
        %v458 = vadd.f32 %v419, %v420
        %459 = vadd.xlane.f32.xlu0 %v458
        %v460 = vpop.xlane.xlu0 %459
        %v461 = vadd.f32 %v421, %v422
        %462 = vadd.xlane.f32.xlu0 %v461
        %v463 = vpop.xlane.xlu0 %462
        %v464 = vadd.f32 %v423, %v424
        %465 = vadd.xlane.f32.xlu0 %v464
        %v466 = vpop.xlane.xlu0 %465
        %v467 = vadd.f32 %v425, %v426
        %468 = vadd.xlane.f32.xlu0 %v467
        %v469 = vpop.xlane.xlu0 %468
        %v470 = vadd.f32 %v427, %v428
        %471 = vadd.xlane.f32.xlu0 %v470
        %v472 = vpop.xlane.xlu0 %471
        %v473 = vadd.f32 %v429, %v430
        %474 = vadd.xlane.f32.xlu0 %v473
        %v475 = vpop.xlane.xlu0 %474
        %v476 = vadd.f32 %v431, %v432
        %477 = vadd.xlane.f32.xlu0 %v476
        %v478 = vpop.xlane.xlu0 %477
        %v479 = vadd.f32 %v433, %v434
        %480 = vadd.xlane.f32.xlu0 %v479
        %v481 = vpop.xlane.xlu0 %480
        %v482 = vadd.f32 %v435, %v436
        %483 = vadd.xlane.f32.xlu0 %v482
        %v484 = vpop.xlane.xlu0 %483
        %v485 = vrcp.pop 256.0
        %v486 = vmul.f32 256.0, %v485
        %v487 = vsub.f32 1.0, %v486
        %v488 = vmul.f32 %v485, %v487
        %v489 = vadd.f32 %v485, %v488
        %vm490 = vweird.f32 %v485
        %v491 = vsel %vm490, %v485, %v489
        %v492 = vmul.f32 %v439, %v491
        %v493 = vmul.f32 %v442, %v491
        %v494 = vmul.f32 %v445, %v491
        %v495 = vmul.f32 %v448, %v491
        %v496 = vmul.f32 %v451, %v491
        %v497 = vmul.f32 %v454, %v491
        %v498 = vmul.f32 %v457, %v491
        %v499 = vmul.f32 %v460, %v491
        %v500 = vmul.f32 %v463, %v491
        %v501 = vmul.f32 %v466, %v491
        %v502 = vmul.f32 %v469, %v491
        %v503 = vmul.f32 %v472, %v491
        %v504 = vmul.f32 %v475, %v491
        %v505 = vmul.f32 %v478, %v491
        %v506 = vmul.f32 %v481, %v491
        %v507 = vmul.f32 %v484, %v491
        %v508 = vadd.f32 %v492, 1e-06
        %v509 = vadd.f32 %v493, 1e-06
        %v510 = vadd.f32 %v494, 1e-06
        %v511 = vadd.f32 %v495, 1e-06
        %v512 = vadd.f32 %v496, 1e-06
        %v513 = vadd.f32 %v497, 1e-06
        %v514 = vadd.f32 %v498, 1e-06
        %v515 = vadd.f32 %v499, 1e-06
        %v516 = vadd.f32 %v500, 1e-06
        %v517 = vadd.f32 %v501, 1e-06
        %v518 = vadd.f32 %v502, 1e-06
        %v519 = vadd.f32 %v503, 1e-06
        %v520 = vadd.f32 %v504, 1e-06
        %v521 = vadd.f32 %v505, 1e-06
        %v522 = vadd.f32 %v506, 1e-06
        %v523 = vadd.f32 %v507, 1e-06
        %v524 = vrsqrt.pop %v508
        %v525 = vmul.f32 %v524, %v508
        %v526 = vmul.f32 %v525, %v524
        %v527 = vmul.f32 0.5, %v526
        %v528 = vsub.f32 1.5, %v527
        %v529 = vmul.f32 %v524, %v528
        %vm530 = vweird.f32 %v508
        %vm531 = vweird.f32 %v524
        %vm532 = vmor %vm530, %vm531
        %v533 = vsel %vm532, %v524, %v529
        %v534 = vrsqrt.pop %v509
        %v535 = vmul.f32 %v534, %v509
        %v536 = vmul.f32 %v535, %v534
        %v537 = vmul.f32 0.5, %v536
        %v538 = vsub.f32 1.5, %v537
        %v539 = vmul.f32 %v534, %v538
        %vm540 = vweird.f32 %v509
        %vm541 = vweird.f32 %v534
        %vm542 = vmor %vm540, %vm541
        %v543 = vsel %vm542, %v534, %v539
        %v544 = vrsqrt.pop %v510
        %v545 = vmul.f32 %v544, %v510
        %v546 = vmul.f32 %v545, %v544
        %v547 = vmul.f32 0.5, %v546
        %v548 = vsub.f32 1.5, %v547
        %v549 = vmul.f32 %v544, %v548
        %vm550 = vweird.f32 %v510
        %vm551 = vweird.f32 %v544
        %vm552 = vmor %vm550, %vm551
        %v553 = vsel %vm552, %v544, %v549
        %v554 = vrsqrt.pop %v511
        %v555 = vmul.f32 %v554, %v511
        %v556 = vmul.f32 %v555, %v554
        %v557 = vmul.f32 0.5, %v556
        %v558 = vsub.f32 1.5, %v557
        %v559 = vmul.f32 %v554, %v558
        %vm560 = vweird.f32 %v511
        %vm561 = vweird.f32 %v554
        %vm562 = vmor %vm560, %vm561
        %v563 = vsel %vm562, %v554, %v559
        %v564 = vrsqrt.pop %v512
        %v565 = vmul.f32 %v564, %v512
        %v566 = vmul.f32 %v565, %v564
        %v567 = vmul.f32 0.5, %v566
        %v568 = vsub.f32 1.5, %v567
        %v569 = vmul.f32 %v564, %v568
        %vm570 = vweird.f32 %v512
        %vm571 = vweird.f32 %v564
        %vm572 = vmor %vm570, %vm571
        %v573 = vsel %vm572, %v564, %v569
        %v574 = vrsqrt.pop %v513
        %v575 = vmul.f32 %v574, %v513
        %v576 = vmul.f32 %v575, %v574
        %v577 = vmul.f32 0.5, %v576
        %v578 = vsub.f32 1.5, %v577
        %v579 = vmul.f32 %v574, %v578
        %vm580 = vweird.f32 %v513
        %vm581 = vweird.f32 %v574
        %vm582 = vmor %vm580, %vm581
        %v583 = vsel %vm582, %v574, %v579
        %v584 = vrsqrt.pop %v514
        %v585 = vmul.f32 %v584, %v514
        %v586 = vmul.f32 %v585, %v584
        %v587 = vmul.f32 0.5, %v586
        %v588 = vsub.f32 1.5, %v587
        %v589 = vmul.f32 %v584, %v588
        %vm590 = vweird.f32 %v514
        %vm591 = vweird.f32 %v584
        %vm592 = vmor %vm590, %vm591
        %v593 = vsel %vm592, %v584, %v589
        %v594 = vrsqrt.pop %v515
        %v595 = vmul.f32 %v594, %v515
        %v596 = vmul.f32 %v595, %v594
        %v597 = vmul.f32 0.5, %v596
        %v598 = vsub.f32 1.5, %v597
        %v599 = vmul.f32 %v594, %v598
        %vm600 = vweird.f32 %v515
        %vm601 = vweird.f32 %v594
        %vm602 = vmor %vm600, %vm601
        %v603 = vsel %vm602, %v594, %v599
        %v604 = vrsqrt.pop %v516
        %v605 = vmul.f32 %v604, %v516
        %v606 = vmul.f32 %v605, %v604
        %v607 = vmul.f32 0.5, %v606
        %v608 = vsub.f32 1.5, %v607
        %v609 = vmul.f32 %v604, %v608
        %vm610 = vweird.f32 %v516
        %vm611 = vweird.f32 %v604
        %vm612 = vmor %vm610, %vm611
        %v613 = vsel %vm612, %v604, %v609
        %v614 = vrsqrt.pop %v517
        %v615 = vmul.f32 %v614, %v517
        %v616 = vmul.f32 %v615, %v614
        %v617 = vmul.f32 0.5, %v616
        %v618 = vsub.f32 1.5, %v617
        %v619 = vmul.f32 %v614, %v618
        %vm620 = vweird.f32 %v517
        %vm621 = vweird.f32 %v614
        %vm622 = vmor %vm620, %vm621
        %v623 = vsel %vm622, %v614, %v619
        %v624 = vrsqrt.pop %v518
        %v625 = vmul.f32 %v624, %v518
        %v626 = vmul.f32 %v625, %v624
        %v627 = vmul.f32 0.5, %v626
        %v628 = vsub.f32 1.5, %v627
        %v629 = vmul.f32 %v624, %v628
        %vm630 = vweird.f32 %v518
        %vm631 = vweird.f32 %v624
        %vm632 = vmor %vm630, %vm631
        %v633 = vsel %vm632, %v624, %v629
        %v634 = vrsqrt.pop %v519
        %v635 = vmul.f32 %v634, %v519
        %v636 = vmul.f32 %v635, %v634
        %v637 = vmul.f32 0.5, %v636
        %v638 = vsub.f32 1.5, %v637
        %v639 = vmul.f32 %v634, %v638
        %vm640 = vweird.f32 %v519
        %vm641 = vweird.f32 %v634
        %vm642 = vmor %vm640, %vm641
        %v643 = vsel %vm642, %v634, %v639
        %v644 = vrsqrt.pop %v520
        %v645 = vmul.f32 %v644, %v520
        %v646 = vmul.f32 %v645, %v644
        %v647 = vmul.f32 0.5, %v646
        %v648 = vsub.f32 1.5, %v647
        %v649 = vmul.f32 %v644, %v648
        %vm650 = vweird.f32 %v520
        %vm651 = vweird.f32 %v644
        %vm652 = vmor %vm650, %vm651
        %v653 = vsel %vm652, %v644, %v649
        %v654 = vrsqrt.pop %v521
        %v655 = vmul.f32 %v654, %v521
        %v656 = vmul.f32 %v655, %v654
        %v657 = vmul.f32 0.5, %v656
        %v658 = vsub.f32 1.5, %v657
        %v659 = vmul.f32 %v654, %v658
        %vm660 = vweird.f32 %v521
        %vm661 = vweird.f32 %v654
        %vm662 = vmor %vm660, %vm661
        %v663 = vsel %vm662, %v654, %v659
        %v664 = vrsqrt.pop %v522
        %v665 = vmul.f32 %v664, %v522
        %v666 = vmul.f32 %v665, %v664
        %v667 = vmul.f32 0.5, %v666
        %v668 = vsub.f32 1.5, %v667
        %v669 = vmul.f32 %v664, %v668
        %vm670 = vweird.f32 %v522
        %vm671 = vweird.f32 %v664
        %vm672 = vmor %vm670, %vm671
        %v673 = vsel %vm672, %v664, %v669
        %v674 = vrsqrt.pop %v523
        %v675 = vmul.f32 %v674, %v523
        %v676 = vmul.f32 %v675, %v674
        %v677 = vmul.f32 0.5, %v676
        %v678 = vsub.f32 1.5, %v677
        %v679 = vmul.f32 %v674, %v678
        %vm680 = vweird.f32 %v523
        %vm681 = vweird.f32 %v674
        %vm682 = vmor %vm680, %vm681
        %v683 = vsel %vm682, %v674, %v679
        %v684 = vmul.f32 %v341, %v533
        %v685 = vmul.f32 %v342, %v533
        %v686 = vmul.f32 %v343, %v543
        %v687 = vmul.f32 %v344, %v543
        %v688 = vmul.f32 %v345, %v553
        %v689 = vmul.f32 %v346, %v553
        %v690 = vmul.f32 %v347, %v563
        %v691 = vmul.f32 %v348, %v563
        %v692 = vmul.f32 %v349, %v573
        %v693 = vmul.f32 %v350, %v573
        %v694 = vmul.f32 %v351, %v583
        %v695 = vmul.f32 %v352, %v583
        %v696 = vmul.f32 %v353, %v593
        %v697 = vmul.f32 %v354, %v593
        %v698 = vmul.f32 %v355, %v603
        %v699 = vmul.f32 %v356, %v603
        %v700 = vmul.f32 %v357, %v613
        %v701 = vmul.f32 %v358, %v613
        %v702 = vmul.f32 %v359, %v623
        %v703 = vmul.f32 %v360, %v623
        %v704 = vmul.f32 %v361, %v633
        %v705 = vmul.f32 %v362, %v633
        %v706 = vmul.f32 %v363, %v643
        %v707 = vmul.f32 %v364, %v643
        %v708 = vmul.f32 %v365, %v653
        %v709 = vmul.f32 %v366, %v653
        %v710 = vmul.f32 %v367, %v663
        %v711 = vmul.f32 %v368, %v663
        %v712 = vmul.f32 %v369, %v673
        %v713 = vmul.f32 %v370, %v673
        %v714 = vmul.f32 %v371, %v683
        %v715 = vmul.f32 %v372, %v683
        %v716 = vmul.f32 %v373, %v373
        %v717 = vmul.f32 %v374, %v374
        %v718 = vmul.f32 %v375, %v375
        %v719 = vmul.f32 %v376, %v376
        %v720 = vmul.f32 %v377, %v377
        %v721 = vmul.f32 %v378, %v378
        %v722 = vmul.f32 %v379, %v379
        %v723 = vmul.f32 %v380, %v380
        %v724 = vmul.f32 %v381, %v381
        %v725 = vmul.f32 %v382, %v382
        %v726 = vmul.f32 %v383, %v383
        %v727 = vmul.f32 %v384, %v384
        %v728 = vmul.f32 %v385, %v385
        %v729 = vmul.f32 %v386, %v386
        %v730 = vmul.f32 %v387, %v387
        %v731 = vmul.f32 %v388, %v388
        %v732 = vmul.f32 %v389, %v389
        %v733 = vmul.f32 %v390, %v390
        %v734 = vmul.f32 %v391, %v391
        %v735 = vmul.f32 %v392, %v392
        %v736 = vmul.f32 %v393, %v393
        %v737 = vmul.f32 %v394, %v394
        %v738 = vmul.f32 %v395, %v395
        %v739 = vmul.f32 %v396, %v396
        %v740 = vmul.f32 %v397, %v397
        %v741 = vmul.f32 %v398, %v398
        %v742 = vmul.f32 %v399, %v399
        %v743 = vmul.f32 %v400, %v400
        %v744 = vmul.f32 %v401, %v401
        %v745 = vmul.f32 %v402, %v402
        %v746 = vmul.f32 %v403, %v403
        %v747 = vmul.f32 %v404, %v404
        %v748 = vadd.f32 %v716, %v717
        %749 = vadd.xlane.f32.xlu0 %v748
        %v750 = vpop.xlane.xlu0 %749
        %v751 = vadd.f32 %v718, %v719
        %752 = vadd.xlane.f32.xlu0 %v751
        %v753 = vpop.xlane.xlu0 %752
        %v754 = vadd.f32 %v720, %v721
        %755 = vadd.xlane.f32.xlu0 %v754
        %v756 = vpop.xlane.xlu0 %755
        %v757 = vadd.f32 %v722, %v723
        %758 = vadd.xlane.f32.xlu0 %v757
        %v759 = vpop.xlane.xlu0 %758
        %v760 = vadd.f32 %v724, %v725
        %761 = vadd.xlane.f32.xlu0 %v760
        %v762 = vpop.xlane.xlu0 %761
        %v763 = vadd.f32 %v726, %v727
        %764 = vadd.xlane.f32.xlu0 %v763
        %v765 = vpop.xlane.xlu0 %764
        %v766 = vadd.f32 %v728, %v729
        %767 = vadd.xlane.f32.xlu0 %v766
        %v768 = vpop.xlane.xlu0 %767
        %v769 = vadd.f32 %v730, %v731
        %770 = vadd.xlane.f32.xlu0 %v769
        %v771 = vpop.xlane.xlu0 %770
        %v772 = vadd.f32 %v732, %v733
        %773 = vadd.xlane.f32.xlu0 %v772
        %v774 = vpop.xlane.xlu0 %773
        %v775 = vadd.f32 %v734, %v735
        %776 = vadd.xlane.f32.xlu0 %v775
        %v777 = vpop.xlane.xlu0 %776
        %v778 = vadd.f32 %v736, %v737
        %779 = vadd.xlane.f32.xlu0 %v778
        %v780 = vpop.xlane.xlu0 %779
        %v781 = vadd.f32 %v738, %v739
        %782 = vadd.xlane.f32.xlu0 %v781
        %v783 = vpop.xlane.xlu0 %782
        %v784 = vadd.f32 %v740, %v741
        %785 = vadd.xlane.f32.xlu0 %v784
        %v786 = vpop.xlane.xlu0 %785
        %v787 = vadd.f32 %v742, %v743
        %788 = vadd.xlane.f32.xlu0 %v787
        %v789 = vpop.xlane.xlu0 %788
        %v790 = vadd.f32 %v744, %v745
        %791 = vadd.xlane.f32.xlu0 %v790
        %v792 = vpop.xlane.xlu0 %791
        %v793 = vadd.f32 %v746, %v747
        %794 = vadd.xlane.f32.xlu0 %v793
        %v795 = vpop.xlane.xlu0 %794
        %v796 = vmul.f32 %v750, %v491
        %v797 = vmul.f32 %v753, %v491
        %v798 = vmul.f32 %v756, %v491
        %v799 = vmul.f32 %v759, %v491
        %v800 = vmul.f32 %v762, %v491
        %v801 = vmul.f32 %v765, %v491
        %v802 = vmul.f32 %v768, %v491
        %v803 = vmul.f32 %v771, %v491
        %v804 = vmul.f32 %v774, %v491
        %v805 = vmul.f32 %v777, %v491
        %v806 = vmul.f32 %v780, %v491
        %v807 = vmul.f32 %v783, %v491
        %v808 = vmul.f32 %v786, %v491
        %v809 = vmul.f32 %v789, %v491
        %v810 = vmul.f32 %v792, %v491
        %v811 = vmul.f32 %v795, %v491
        %v812 = vadd.f32 %v796, 1e-06
        %v813 = vadd.f32 %v797, 1e-06
        %v814 = vadd.f32 %v798, 1e-06
        %v815 = vadd.f32 %v799, 1e-06
        %v816 = vadd.f32 %v800, 1e-06
        %v817 = vadd.f32 %v801, 1e-06
        %v818 = vadd.f32 %v802, 1e-06
        %v819 = vadd.f32 %v803, 1e-06
        %v820 = vadd.f32 %v804, 1e-06
        %v821 = vadd.f32 %v805, 1e-06
        %v822 = vadd.f32 %v806, 1e-06
        %v823 = vadd.f32 %v807, 1e-06
        %v824 = vadd.f32 %v808, 1e-06
        %v825 = vadd.f32 %v809, 1e-06
        %v826 = vadd.f32 %v810, 1e-06
        %v827 = vadd.f32 %v811, 1e-06
        %v828 = vrsqrt.pop %v812
        %v829 = vmul.f32 %v828, %v812
        %v830 = vmul.f32 %v829, %v828
        %v831 = vmul.f32 0.5, %v830
        %v832 = vsub.f32 1.5, %v831
        %v833 = vmul.f32 %v828, %v832
        %vm834 = vweird.f32 %v812
        %vm835 = vweird.f32 %v828
        %vm836 = vmor %vm834, %vm835
        %v837 = vsel %vm836, %v828, %v833
        %v838 = vrsqrt.pop %v813
        %v839 = vmul.f32 %v838, %v813
        %v840 = vmul.f32 %v839, %v838
        %v841 = vmul.f32 0.5, %v840
        %v842 = vsub.f32 1.5, %v841
        %v843 = vmul.f32 %v838, %v842
        %vm844 = vweird.f32 %v813
        %vm845 = vweird.f32 %v838
        %vm846 = vmor %vm844, %vm845
        %v847 = vsel %vm846, %v838, %v843
        %v848 = vrsqrt.pop %v814
        %v849 = vmul.f32 %v848, %v814
        %v850 = vmul.f32 %v849, %v848
        %v851 = vmul.f32 0.5, %v850
        %v852 = vsub.f32 1.5, %v851
        %v853 = vmul.f32 %v848, %v852
        %vm854 = vweird.f32 %v814
        %vm855 = vweird.f32 %v848
        %vm856 = vmor %vm854, %vm855
        %v857 = vsel %vm856, %v848, %v853
        %v858 = vrsqrt.pop %v815
        %v859 = vmul.f32 %v858, %v815
        %v860 = vmul.f32 %v859, %v858
        %v861 = vmul.f32 0.5, %v860
        %v862 = vsub.f32 1.5, %v861
        %v863 = vmul.f32 %v858, %v862
        %vm864 = vweird.f32 %v815
        %vm865 = vweird.f32 %v858
        %vm866 = vmor %vm864, %vm865
        %v867 = vsel %vm866, %v858, %v863
        %v868 = vrsqrt.pop %v816
        %v869 = vmul.f32 %v868, %v816
        %v870 = vmul.f32 %v869, %v868
        %v871 = vmul.f32 0.5, %v870
        %v872 = vsub.f32 1.5, %v871
        %v873 = vmul.f32 %v868, %v872
        %vm874 = vweird.f32 %v816
        %vm875 = vweird.f32 %v868
        %vm876 = vmor %vm874, %vm875
        %v877 = vsel %vm876, %v868, %v873
        %v878 = vrsqrt.pop %v817
        %v879 = vmul.f32 %v878, %v817
        %v880 = vmul.f32 %v879, %v878
        %v881 = vmul.f32 0.5, %v880
        %v882 = vsub.f32 1.5, %v881
        %v883 = vmul.f32 %v878, %v882
        %vm884 = vweird.f32 %v817
        %vm885 = vweird.f32 %v878
        %vm886 = vmor %vm884, %vm885
        %v887 = vsel %vm886, %v878, %v883
        %v888 = vrsqrt.pop %v818
        %v889 = vmul.f32 %v888, %v818
        %v890 = vmul.f32 %v889, %v888
        %v891 = vmul.f32 0.5, %v890
        %v892 = vsub.f32 1.5, %v891
        %v893 = vmul.f32 %v888, %v892
        %vm894 = vweird.f32 %v818
        %vm895 = vweird.f32 %v888
        %vm896 = vmor %vm894, %vm895
        %v897 = vsel %vm896, %v888, %v893
        %v898 = vrsqrt.pop %v819
        %v899 = vmul.f32 %v898, %v819
        %v900 = vmul.f32 %v899, %v898
        %v901 = vmul.f32 0.5, %v900
        %v902 = vsub.f32 1.5, %v901
        %v903 = vmul.f32 %v898, %v902
        %vm904 = vweird.f32 %v819
        %vm905 = vweird.f32 %v898
        %vm906 = vmor %vm904, %vm905
        %v907 = vsel %vm906, %v898, %v903
        %v908 = vrsqrt.pop %v820
        %v909 = vmul.f32 %v908, %v820
        %v910 = vmul.f32 %v909, %v908
        %v911 = vmul.f32 0.5, %v910
        %v912 = vsub.f32 1.5, %v911
        %v913 = vmul.f32 %v908, %v912
        %vm914 = vweird.f32 %v820
        %vm915 = vweird.f32 %v908
        %vm916 = vmor %vm914, %vm915
        %v917 = vsel %vm916, %v908, %v913
        %v918 = vrsqrt.pop %v821
        %v919 = vmul.f32 %v918, %v821
        %v920 = vmul.f32 %v919, %v918
        %v921 = vmul.f32 0.5, %v920
        %v922 = vsub.f32 1.5, %v921
        %v923 = vmul.f32 %v918, %v922
        %vm924 = vweird.f32 %v821
        %vm925 = vweird.f32 %v918
        %vm926 = vmor %vm924, %vm925
        %v927 = vsel %vm926, %v918, %v923
        %v928 = vrsqrt.pop %v822
        %v929 = vmul.f32 %v928, %v822
        %v930 = vmul.f32 %v929, %v928
        %v931 = vmul.f32 0.5, %v930
        %v932 = vsub.f32 1.5, %v931
        %v933 = vmul.f32 %v928, %v932
        %vm934 = vweird.f32 %v822
        %vm935 = vweird.f32 %v928
        %vm936 = vmor %vm934, %vm935
        %v937 = vsel %vm936, %v928, %v933
        %v938 = vrsqrt.pop %v823
        %v939 = vmul.f32 %v938, %v823
        %v940 = vmul.f32 %v939, %v938
        %v941 = vmul.f32 0.5, %v940
        %v942 = vsub.f32 1.5, %v941
        %v943 = vmul.f32 %v938, %v942
        %vm944 = vweird.f32 %v823
        %vm945 = vweird.f32 %v938
        %vm946 = vmor %vm944, %vm945
        %v947 = vsel %vm946, %v938, %v943
        %v948 = vrsqrt.pop %v824
        %v949 = vmul.f32 %v948, %v824
        %v950 = vmul.f32 %v949, %v948
        %v951 = vmul.f32 0.5, %v950
        %v952 = vsub.f32 1.5, %v951
        %v953 = vmul.f32 %v948, %v952
        %vm954 = vweird.f32 %v824
        %vm955 = vweird.f32 %v948
        %vm956 = vmor %vm954, %vm955
        %v957 = vsel %vm956, %v948, %v953
        %v958 = vrsqrt.pop %v825
        %v959 = vmul.f32 %v958, %v825
        %v960 = vmul.f32 %v959, %v958
        %v961 = vmul.f32 0.5, %v960
        %v962 = vsub.f32 1.5, %v961
        %v963 = vmul.f32 %v958, %v962
        %vm964 = vweird.f32 %v825
        %vm965 = vweird.f32 %v958
        %vm966 = vmor %vm964, %vm965
        %v967 = vsel %vm966, %v958, %v963
        %v968 = vrsqrt.pop %v826
        %v969 = vmul.f32 %v968, %v826
        %v970 = vmul.f32 %v969, %v968
        %v971 = vmul.f32 0.5, %v970
        %v972 = vsub.f32 1.5, %v971
        %v973 = vmul.f32 %v968, %v972
        %vm974 = vweird.f32 %v826
        %vm975 = vweird.f32 %v968
        %vm976 = vmor %vm974, %vm975
        %v977 = vsel %vm976, %v968, %v973
        %v978 = vrsqrt.pop %v827
        %v979 = vmul.f32 %v978, %v827
        %v980 = vmul.f32 %v979, %v978
        %v981 = vmul.f32 0.5, %v980
        %v982 = vsub.f32 1.5, %v981
        %v983 = vmul.f32 %v978, %v982
        %vm984 = vweird.f32 %v827
        %vm985 = vweird.f32 %v978
        %vm986 = vmor %vm984, %vm985
        %v987 = vsel %vm986, %v978, %v983
        %v988 = vmul.f32 %v373, %v837
        %v989 = vmul.f32 %v374, %v837
        %v990 = vmul.f32 %v375, %v847
        %v991 = vmul.f32 %v376, %v847
        %v992 = vmul.f32 %v377, %v857
        %v993 = vmul.f32 %v378, %v857
        %v994 = vmul.f32 %v379, %v867
        %v995 = vmul.f32 %v380, %v867
        %v996 = vmul.f32 %v381, %v877
        %v997 = vmul.f32 %v382, %v877
        %v998 = vmul.f32 %v383, %v887
        %v999 = vmul.f32 %v384, %v887
        %v1000 = vmul.f32 %v385, %v897
        %v1001 = vmul.f32 %v386, %v897
        %v1002 = vmul.f32 %v387, %v907
        %v1003 = vmul.f32 %v388, %v907
        %v1004 = vmul.f32 %v389, %v917
        %v1005 = vmul.f32 %v390, %v917
        %v1006 = vmul.f32 %v391, %v927
        %v1007 = vmul.f32 %v392, %v927
        %v1008 = vmul.f32 %v393, %v937
        %v1009 = vmul.f32 %v394, %v937
        %v1010 = vmul.f32 %v395, %v947
        %v1011 = vmul.f32 %v396, %v947
        %v1012 = vmul.f32 %v397, %v957
        %v1013 = vmul.f32 %v398, %v957
        %v1014 = vmul.f32 %v399, %v967
        %v1015 = vmul.f32 %v400, %v967
        %v1016 = vmul.f32 %v401, %v977
        %v1017 = vmul.f32 %v402, %v977
        %v1018 = vmul.f32 %v403, %v987
        %v1019 = vmul.f32 %v404, %v987
        %v1020 = vpack.c.bf16 %v686, %v684
        %v1021 = vpack.c.bf16 %v687, %v685
        %v1022 = vpack.c.bf16 %v690, %v688
        %v1023 = vpack.c.bf16 %v691, %v689
        %v1024 = vpack.c.bf16 %v694, %v692
        %v1025 = vpack.c.bf16 %v695, %v693
        %v1026 = vpack.c.bf16 %v698, %v696
        %v1027 = vpack.c.bf16 %v699, %v697
        %v1028 = vpack.c.bf16 %v702, %v700
        %v1029 = vpack.c.bf16 %v703, %v701
        %v1030 = vpack.c.bf16 %v706, %v704
        %v1031 = vpack.c.bf16 %v707, %v705
        %v1032 = vpack.c.bf16 %v710, %v708
        %v1033 = vpack.c.bf16 %v711, %v709
        %v1034 = vpack.c.bf16 %v714, %v712
        %v1035 = vpack.c.bf16 %v715, %v713
        %v1036 = vld [vmem:[#allocation7] sm:$0xff]
        %v1037 = vld [vmem:[#allocation7 + $0x8] sm:$0xff]
        %v1038 = vld [vmem:[#allocation7 + $0x10] sm:$0xff]
        %v1039 = vld [vmem:[#allocation7 + $0x18] sm:$0xff]
        %v1040 = vld [vmem:[#allocation7 + $0x20] sm:$0xff]
        %v1041 = vld [vmem:[#allocation7 + $0x28] sm:$0xff]
        %v1042 = vld [vmem:[#allocation7 + $0x30] sm:$0xff]
        %v1043 = vld [vmem:[#allocation7 + $0x38] sm:$0xff]
        %v1044 = vld [vmem:[#allocation7 + $0x40] sm:$0xff]
        %v1045 = vld [vmem:[#allocation7 + $0x48] sm:$0xff]
        %v1046 = vld [vmem:[#allocation7 + $0x50] sm:$0xff]
        %v1047 = vld [vmem:[#allocation7 + $0x58] sm:$0xff]
        %v1048 = vld [vmem:[#allocation7 + $0x60] sm:$0xff]
        %v1049 = vld [vmem:[#allocation7 + $0x68] sm:$0xff]
        %v1050 = vld [vmem:[#allocation7 + $0x70] sm:$0xff]
        %v1051 = vld [vmem:[#allocation7 + $0x78] sm:$0xff]
        %v1052 = vld [vmem:[#allocation7 + $0x80] sm:$0xff]
        %v1053 = vld [vmem:[#allocation7 + $0x88] sm:$0xff]
        %v1054 = vld [vmem:[#allocation7 + $0x90] sm:$0xff]
        %v1055 = vld [vmem:[#allocation7 + $0x98] sm:$0xff]
        %v1056 = vld [vmem:[#allocation7 + $0xa0] sm:$0xff]
        %v1057 = vld [vmem:[#allocation7 + $0xa8] sm:$0xff]
        %v1058 = vld [vmem:[#allocation7 + $0xb0] sm:$0xff]
        %v1059 = vld [vmem:[#allocation7 + $0xb8] sm:$0xff]
        %v1060 = vld [vmem:[#allocation7 + $0xc0] sm:$0xff]
        %v1061 = vld [vmem:[#allocation7 + $0xc8] sm:$0xff]
        %v1062 = vld [vmem:[#allocation7 + $0xd0] sm:$0xff]
        %v1063 = vld [vmem:[#allocation7 + $0xd8] sm:$0xff]
        %v1064 = vld [vmem:[#allocation7 + $0xe0] sm:$0xff]
        %v1065 = vld [vmem:[#allocation7 + $0xe8] sm:$0xff]
        %v1066 = vld [vmem:[#allocation7 + $0xf0] sm:$0xff]
        %v1067 = vld [vmem:[#allocation7 + $0xf8] sm:$0xff]
        %v1068 = vld [vmem:[#allocation7 + $0x100] sm:$0xff]
        %v1069 = vld [vmem:[#allocation7 + $0x108] sm:$0xff]
        %v1070 = vld [vmem:[#allocation7 + $0x110] sm:$0xff]
        %v1071 = vld [vmem:[#allocation7 + $0x118] sm:$0xff]
        %v1072 = vld [vmem:[#allocation7 + $0x120] sm:$0xff]
        %v1073 = vld [vmem:[#allocation7 + $0x128] sm:$0xff]
        %v1074 = vld [vmem:[#allocation7 + $0x130] sm:$0xff]
        %v1075 = vld [vmem:[#allocation7 + $0x138] sm:$0xff]
        %v1076 = vld [vmem:[#allocation7 + $0x140] sm:$0xff]
        %v1077 = vld [vmem:[#allocation7 + $0x148] sm:$0xff]
        %v1078 = vld [vmem:[#allocation7 + $0x150] sm:$0xff]
        %v1079 = vld [vmem:[#allocation7 + $0x158] sm:$0xff]
        %v1080 = vld [vmem:[#allocation7 + $0x160] sm:$0xff]
        %v1081 = vld [vmem:[#allocation7 + $0x168] sm:$0xff]
        %v1082 = vld [vmem:[#allocation7 + $0x170] sm:$0xff]
        %v1083 = vld [vmem:[#allocation7 + $0x178] sm:$0xff]
        %v1084 = vld [vmem:[#allocation7 + $0x180] sm:$0xff]
        %v1085 = vld [vmem:[#allocation7 + $0x188] sm:$0xff]
        %v1086 = vld [vmem:[#allocation7 + $0x190] sm:$0xff]
        %v1087 = vld [vmem:[#allocation7 + $0x198] sm:$0xff]
        %v1088 = vld [vmem:[#allocation7 + $0x1a0] sm:$0xff]
        %v1089 = vld [vmem:[#allocation7 + $0x1a8] sm:$0xff]
        %v1090 = vld [vmem:[#allocation7 + $0x1b0] sm:$0xff]
        %v1091 = vld [vmem:[#allocation7 + $0x1b8] sm:$0xff]
        %v1092 = vld [vmem:[#allocation7 + $0x1c0] sm:$0xff]
        %v1093 = vld [vmem:[#allocation7 + $0x1c8] sm:$0xff]
        %v1094 = vld [vmem:[#allocation7 + $0x1d0] sm:$0xff]
        %v1095 = vld [vmem:[#allocation7 + $0x1d8] sm:$0xff]
        %v1096 = vld [vmem:[#allocation7 + $0x1e0] sm:$0xff]
        %v1097 = vld [vmem:[#allocation7 + $0x1e8] sm:$0xff]
        %v1098 = vld [vmem:[#allocation7 + $0x1f0] sm:$0xff]
        %v1099 = vld [vmem:[#allocation7 + $0x1f8] sm:$0xff]
        %v1164 = vunpack.c.l.b16 %v1036
        %v1165 = vunpack.c.h.b16 %v1036
        %v1166 = vunpack.c.l.b16 %v1037
        %v1167 = vunpack.c.h.b16 %v1037
        %v1168 = vunpack.c.l.b16 %v1038
        %v1169 = vunpack.c.h.b16 %v1038
        %v1170 = vunpack.c.l.b16 %v1039
        %v1171 = vunpack.c.h.b16 %v1039
        %v1172 = vunpack.c.l.b16 %v1040
        %v1173 = vunpack.c.h.b16 %v1040
        %v1174 = vunpack.c.l.b16 %v1041
        %v1175 = vunpack.c.h.b16 %v1041
        %v1176 = vunpack.c.l.b16 %v1042
        %v1177 = vunpack.c.h.b16 %v1042
        %v1178 = vunpack.c.l.b16 %v1043
        %v1179 = vunpack.c.h.b16 %v1043
        %v1180 = vunpack.c.l.b16 %v1044
        %v1181 = vunpack.c.h.b16 %v1044
        %v1182 = vunpack.c.l.b16 %v1045
        %v1183 = vunpack.c.h.b16 %v1045
        %v1184 = vunpack.c.l.b16 %v1046
        %v1185 = vunpack.c.h.b16 %v1046
        %v1186 = vunpack.c.l.b16 %v1047
        %v1187 = vunpack.c.h.b16 %v1047
        %v1188 = vunpack.c.l.b16 %v1048
        %v1189 = vunpack.c.h.b16 %v1048
        %v1190 = vunpack.c.l.b16 %v1049
        %v1191 = vunpack.c.h.b16 %v1049
        %v1192 = vunpack.c.l.b16 %v1050
        %v1193 = vunpack.c.h.b16 %v1050
        %v1194 = vunpack.c.l.b16 %v1051
        %v1195 = vunpack.c.h.b16 %v1051
        %v1196 = vunpack.c.l.b16 %v1052
        %v1197 = vunpack.c.h.b16 %v1052
        %v1198 = vunpack.c.l.b16 %v1053
        %v1199 = vunpack.c.h.b16 %v1053
        %v1200 = vunpack.c.l.b16 %v1054
        %v1201 = vunpack.c.h.b16 %v1054
        %v1202 = vunpack.c.l.b16 %v1055
        %v1203 = vunpack.c.h.b16 %v1055
        %v1204 = vunpack.c.l.b16 %v1056
        %v1205 = vunpack.c.h.b16 %v1056
        %v1206 = vunpack.c.l.b16 %v1057
        %v1207 = vunpack.c.h.b16 %v1057
        %v1208 = vunpack.c.l.b16 %v1058
        %v1209 = vunpack.c.h.b16 %v1058
        %v1210 = vunpack.c.l.b16 %v1059
        %v1211 = vunpack.c.h.b16 %v1059
        %v1212 = vunpack.c.l.b16 %v1060
        %v1213 = vunpack.c.h.b16 %v1060
        %v1214 = vunpack.c.l.b16 %v1061
        %v1215 = vunpack.c.h.b16 %v1061
        %v1216 = vunpack.c.l.b16 %v1062
        %v1217 = vunpack.c.h.b16 %v1062
        %v1218 = vunpack.c.l.b16 %v1063
        %v1219 = vunpack.c.h.b16 %v1063
        %v1220 = vunpack.c.l.b16 %v1064
        %v1221 = vunpack.c.h.b16 %v1064
        %v1222 = vunpack.c.l.b16 %v1065
        %v1223 = vunpack.c.h.b16 %v1065
        %v1224 = vunpack.c.l.b16 %v1066
        %v1225 = vunpack.c.h.b16 %v1066
        %v1226 = vunpack.c.l.b16 %v1067
        %v1227 = vunpack.c.h.b16 %v1067
        %v1228 = vunpack.c.l.b16 %v1068
        %v1229 = vunpack.c.h.b16 %v1068
        %v1230 = vunpack.c.l.b16 %v1069
        %v1231 = vunpack.c.h.b16 %v1069
        %v1232 = vunpack.c.l.b16 %v1070
        %v1233 = vunpack.c.h.b16 %v1070
        %v1234 = vunpack.c.l.b16 %v1071
        %v1235 = vunpack.c.h.b16 %v1071
        %v1236 = vunpack.c.l.b16 %v1072
        %v1237 = vunpack.c.h.b16 %v1072
        %v1238 = vunpack.c.l.b16 %v1073
        %v1239 = vunpack.c.h.b16 %v1073
        %v1240 = vunpack.c.l.b16 %v1074
        %v1241 = vunpack.c.h.b16 %v1074
        %v1242 = vunpack.c.l.b16 %v1075
        %v1243 = vunpack.c.h.b16 %v1075
        %v1244 = vunpack.c.l.b16 %v1076
        %v1245 = vunpack.c.h.b16 %v1076
        %v1246 = vunpack.c.l.b16 %v1077
        %v1247 = vunpack.c.h.b16 %v1077
        %v1248 = vunpack.c.l.b16 %v1078
        %v1249 = vunpack.c.h.b16 %v1078
        %v1250 = vunpack.c.l.b16 %v1079
        %v1251 = vunpack.c.h.b16 %v1079
        %v1252 = vunpack.c.l.b16 %v1080
        %v1253 = vunpack.c.h.b16 %v1080
        %v1254 = vunpack.c.l.b16 %v1081
        %v1255 = vunpack.c.h.b16 %v1081
        %v1256 = vunpack.c.l.b16 %v1082
        %v1257 = vunpack.c.h.b16 %v1082
        %v1258 = vunpack.c.l.b16 %v1083
        %v1259 = vunpack.c.h.b16 %v1083
        %v1260 = vunpack.c.l.b16 %v1084
        %v1261 = vunpack.c.h.b16 %v1084
        %v1262 = vunpack.c.l.b16 %v1085
        %v1263 = vunpack.c.h.b16 %v1085
        %v1264 = vunpack.c.l.b16 %v1086
        %v1265 = vunpack.c.h.b16 %v1086
        %v1266 = vunpack.c.l.b16 %v1087
        %v1267 = vunpack.c.h.b16 %v1087
        %v1268 = vunpack.c.l.b16 %v1088
        %v1269 = vunpack.c.h.b16 %v1088
        %v1270 = vunpack.c.l.b16 %v1089
        %v1271 = vunpack.c.h.b16 %v1089
        %v1272 = vunpack.c.l.b16 %v1090
        %v1273 = vunpack.c.h.b16 %v1090
        %v1274 = vunpack.c.l.b16 %v1091
        %v1275 = vunpack.c.h.b16 %v1091
        %v1276 = vunpack.c.l.b16 %v1092
        %v1277 = vunpack.c.h.b16 %v1092
        %v1278 = vunpack.c.l.b16 %v1093
        %v1279 = vunpack.c.h.b16 %v1093
        %v1280 = vunpack.c.l.b16 %v1094
        %v1281 = vunpack.c.h.b16 %v1094
        %v1282 = vunpack.c.l.b16 %v1095
        %v1283 = vunpack.c.h.b16 %v1095
        %v1284 = vunpack.c.l.b16 %v1096
        %v1285 = vunpack.c.h.b16 %v1096
        %v1286 = vunpack.c.l.b16 %v1097
        %v1287 = vunpack.c.h.b16 %v1097
        %v1288 = vunpack.c.l.b16 %v1098
        %v1289 = vunpack.c.h.b16 %v1098
        %v1290 = vunpack.c.l.b16 %v1099
        %v1291 = vunpack.c.h.b16 %v1099
        %v1292 = vpack.c.b16 %v1168, %v1164
        %v1293 = vpack.c.b16 %v1169, %v1165
        %v1294 = vpack.c.b16 %v1170, %v1166
        %v1295 = vpack.c.b16 %v1171, %v1167
        %v1296 = vpack.c.b16 %v1176, %v1172
        %v1297 = vpack.c.b16 %v1177, %v1173
        %v1298 = vpack.c.b16 %v1178, %v1174
        %v1299 = vpack.c.b16 %v1179, %v1175
        %v1300 = vpack.c.b16 %v1184, %v1180
        %v1301 = vpack.c.b16 %v1185, %v1181
        %v1302 = vpack.c.b16 %v1186, %v1182
        %v1303 = vpack.c.b16 %v1187, %v1183
        %v1304 = vpack.c.b16 %v1192, %v1188
        %v1305 = vpack.c.b16 %v1193, %v1189
        %v1306 = vpack.c.b16 %v1194, %v1190
        %v1307 = vpack.c.b16 %v1195, %v1191
        %v1308 = vpack.c.b16 %v1200, %v1196
        %v1309 = vpack.c.b16 %v1201, %v1197
        %v1310 = vpack.c.b16 %v1202, %v1198
        %v1311 = vpack.c.b16 %v1203, %v1199
        %v1312 = vpack.c.b16 %v1208, %v1204
        %v1313 = vpack.c.b16 %v1209, %v1205
        %v1314 = vpack.c.b16 %v1210, %v1206
        %v1315 = vpack.c.b16 %v1211, %v1207
        %v1316 = vpack.c.b16 %v1216, %v1212
        %v1317 = vpack.c.b16 %v1217, %v1213
        %v1318 = vpack.c.b16 %v1218, %v1214
        %v1319 = vpack.c.b16 %v1219, %v1215
        %v1320 = vpack.c.b16 %v1224, %v1220
        %v1321 = vpack.c.b16 %v1225, %v1221
        %v1322 = vpack.c.b16 %v1226, %v1222
        %v1323 = vpack.c.b16 %v1227, %v1223
        %v1324 = vpack.c.b16 %v1232, %v1228
        %v1325 = vpack.c.b16 %v1233, %v1229
        %v1326 = vpack.c.b16 %v1234, %v1230
        %v1327 = vpack.c.b16 %v1235, %v1231
        %v1328 = vpack.c.b16 %v1240, %v1236
        %v1329 = vpack.c.b16 %v1241, %v1237
        %v1330 = vpack.c.b16 %v1242, %v1238
        %v1331 = vpack.c.b16 %v1243, %v1239
        %v1332 = vpack.c.b16 %v1248, %v1244
        %v1333 = vpack.c.b16 %v1249, %v1245
        %v1334 = vpack.c.b16 %v1250, %v1246
        %v1335 = vpack.c.b16 %v1251, %v1247
        %v1336 = vpack.c.b16 %v1256, %v1252
        %v1337 = vpack.c.b16 %v1257, %v1253
        %v1338 = vpack.c.b16 %v1258, %v1254
        %v1339 = vpack.c.b16 %v1259, %v1255
        %v1340 = vpack.c.b16 %v1264, %v1260
        %v1341 = vpack.c.b16 %v1265, %v1261
        %v1342 = vpack.c.b16 %v1266, %v1262
        %v1343 = vpack.c.b16 %v1267, %v1263
        %v1344 = vpack.c.b16 %v1272, %v1268
        %v1345 = vpack.c.b16 %v1273, %v1269
        %v1346 = vpack.c.b16 %v1274, %v1270
        %v1347 = vpack.c.b16 %v1275, %v1271
        %v1348 = vpack.c.b16 %v1280, %v1276
        %v1349 = vpack.c.b16 %v1281, %v1277
        %v1350 = vpack.c.b16 %v1282, %v1278
        %v1351 = vpack.c.b16 %v1283, %v1279
        %v1352 = vpack.c.b16 %v1288, %v1284
        %v1353 = vpack.c.b16 %v1289, %v1285
        %v1354 = vpack.c.b16 %v1290, %v1286
        %v1355 = vpack.c.b16 %v1291, %v1287
        %1420 = vmatpush.bf16.msra.mxu0 %v1320
        %1421 = vmatpush.bf16.msra.mxu0 %v1316
        %1422 = vmatpush.bf16.msra.mxu0 %v1312
        %1423 = vmatpush.bf16.msra.mxu0 %v1308
        %1424 = vmatpush.bf16.msra.mxu0 %v1304
        %1425 = vmatpush.bf16.msra.mxu0 %v1300
        %1426 = vmatpush.bf16.msra.mxu0 %v1296
        %1427 = vmatpush.bf16.msra.mxu0 %v1292
        %1428 = vmatmul.bf16.gmra.mxu0 %v1020
        %v1429 = vpop.f32.mrf.mxu0
        %v1430 = vadd.f32 0.0, %v1429
        %v1431 = vpop.f32.mrf.mxu0
        %v1432 = vadd.f32 0.0, %v1431
        %1433 = vmatmul.bf16.gmra.mxu0 %v1022
        %v1434 = vpop.f32.mrf.mxu0
        %v1435 = vadd.f32 0.0, %v1434
        %v1436 = vpop.f32.mrf.mxu0
        %v1437 = vadd.f32 0.0, %v1436
        %1438 = vmatmul.bf16.gmra.mxu0 %v1024
        %v1439 = vpop.f32.mrf.mxu0
        %v1440 = vadd.f32 0.0, %v1439
        %v1441 = vpop.f32.mrf.mxu0
        %v1442 = vadd.f32 0.0, %v1441
        %1443 = vmatmul.bf16.gmra.mxu0 %v1026
        %v1444 = vpop.f32.mrf.mxu0
        %v1445 = vadd.f32 0.0, %v1444
        %v1446 = vpop.f32.mrf.mxu0
        %v1447 = vadd.f32 0.0, %v1446
        %1448 = vmatmul.bf16.gmra.mxu0 %v1028
        %v1449 = vpop.f32.mrf.mxu0
        %v1450 = vadd.f32 0.0, %v1449
        %v1451 = vpop.f32.mrf.mxu0
        %v1452 = vadd.f32 0.0, %v1451
        %1453 = vmatmul.bf16.gmra.mxu0 %v1030
        %v1454 = vpop.f32.mrf.mxu0
        %v1455 = vadd.f32 0.0, %v1454
        %v1456 = vpop.f32.mrf.mxu0
        %v1457 = vadd.f32 0.0, %v1456
        %1458 = vmatmul.bf16.gmra.mxu0 %v1032
        %v1459 = vpop.f32.mrf.mxu0
        %v1460 = vadd.f32 0.0, %v1459
        %v1461 = vpop.f32.mrf.mxu0
        %v1462 = vadd.f32 0.0, %v1461
        %1463 = vmatmul.bf16.gmra.mxu0 %v1034
        %v1464 = vpop.f32.mrf.mxu0
        %v1465 = vadd.f32 0.0, %v1464
        %v1466 = vpop.f32.mrf.mxu0
        %v1467 = vadd.f32 0.0, %v1466
        %1468 = vdwg.mxu0
        %1469 = vmatpush.bf16.msra.mxu0 %v1352
        %1470 = vmatpush.bf16.msra.mxu0 %v1348
        %1471 = vmatpush.bf16.msra.mxu0 %v1344
        %1472 = vmatpush.bf16.msra.mxu0 %v1340
        %1473 = vmatpush.bf16.msra.mxu0 %v1336
        %1474 = vmatpush.bf16.msra.mxu0 %v1332
        %1475 = vmatpush.bf16.msra.mxu0 %v1328
        %1476 = vmatpush.bf16.msra.mxu0 %v1324
        %1477 = vmatmul.bf16.gmra.mxu0 %v1021
        %v1478 = vpop.f32.mrf.mxu0
        %v1479 = vadd.f32 %v1430, %v1478
        %v1480 = vpop.f32.mrf.mxu0
        %v1481 = vadd.f32 %v1432, %v1480
        %1482 = vmatmul.bf16.gmra.mxu0 %v1023
        %v1483 = vpop.f32.mrf.mxu0
        %v1484 = vadd.f32 %v1435, %v1483
        %v1485 = vpop.f32.mrf.mxu0
        %v1486 = vadd.f32 %v1437, %v1485
        %1487 = vmatmul.bf16.gmra.mxu0 %v1025
        %v1488 = vpop.f32.mrf.mxu0
        %v1489 = vadd.f32 %v1440, %v1488
        %v1490 = vpop.f32.mrf.mxu0
        %v1491 = vadd.f32 %v1442, %v1490
        %1492 = vmatmul.bf16.gmra.mxu0 %v1027
        %v1493 = vpop.f32.mrf.mxu0
        %v1494 = vadd.f32 %v1445, %v1493
        %v1495 = vpop.f32.mrf.mxu0
        %v1496 = vadd.f32 %v1447, %v1495
        %1497 = vmatmul.bf16.gmra.mxu0 %v1029
        %v1498 = vpop.f32.mrf.mxu0
        %v1499 = vadd.f32 %v1450, %v1498
        %v1500 = vpop.f32.mrf.mxu0
        %v1501 = vadd.f32 %v1452, %v1500
        %1502 = vmatmul.bf16.gmra.mxu0 %v1031
        %v1503 = vpop.f32.mrf.mxu0
        %v1504 = vadd.f32 %v1455, %v1503
        %v1505 = vpop.f32.mrf.mxu0
        %v1506 = vadd.f32 %v1457, %v1505
        %1507 = vmatmul.bf16.gmra.mxu0 %v1033
        %v1508 = vpop.f32.mrf.mxu0
        %v1509 = vadd.f32 %v1460, %v1508
        %v1510 = vpop.f32.mrf.mxu0
        %v1511 = vadd.f32 %v1462, %v1510
        %1512 = vmatmul.bf16.gmra.mxu0 %v1035
        %v1513 = vpop.f32.mrf.mxu0
        %v1514 = vadd.f32 %v1465, %v1513
        %v1515 = vpop.f32.mrf.mxu0
        %v1516 = vadd.f32 %v1467, %v1515
        %1517 = vdwg.mxu0
        %1518 = vmatpush.bf16.msra.mxu0 %v1321
        %1519 = vmatpush.bf16.msra.mxu0 %v1317
        %1520 = vmatpush.bf16.msra.mxu0 %v1313
        %1521 = vmatpush.bf16.msra.mxu0 %v1309
        %1522 = vmatpush.bf16.msra.mxu0 %v1305
        %1523 = vmatpush.bf16.msra.mxu0 %v1301
        %1524 = vmatpush.bf16.msra.mxu0 %v1297
        %1525 = vmatpush.bf16.msra.mxu0 %v1293
        %1526 = vmatmul.bf16.gmra.mxu0 %v1020
        %v1527 = vpop.f32.mrf.mxu0
        %v1528 = vadd.f32 0.0, %v1527
        %v1529 = vpop.f32.mrf.mxu0
        %v1530 = vadd.f32 0.0, %v1529
        %1531 = vmatmul.bf16.gmra.mxu0 %v1022
        %v1532 = vpop.f32.mrf.mxu0
        %v1533 = vadd.f32 0.0, %v1532
        %v1534 = vpop.f32.mrf.mxu0
        %v1535 = vadd.f32 0.0, %v1534
        %1536 = vmatmul.bf16.gmra.mxu0 %v1024
        %v1537 = vpop.f32.mrf.mxu0
        %v1538 = vadd.f32 0.0, %v1537
        %v1539 = vpop.f32.mrf.mxu0
        %v1540 = vadd.f32 0.0, %v1539
        %1541 = vmatmul.bf16.gmra.mxu0 %v1026
        %v1542 = vpop.f32.mrf.mxu0
        %v1543 = vadd.f32 0.0, %v1542
        %v1544 = vpop.f32.mrf.mxu0
        %v1545 = vadd.f32 0.0, %v1544
        %1546 = vmatmul.bf16.gmra.mxu0 %v1028
        %v1547 = vpop.f32.mrf.mxu0
        %v1548 = vadd.f32 0.0, %v1547
        %v1549 = vpop.f32.mrf.mxu0
        %v1550 = vadd.f32 0.0, %v1549
        %1551 = vmatmul.bf16.gmra.mxu0 %v1030
        %v1552 = vpop.f32.mrf.mxu0
        %v1553 = vadd.f32 0.0, %v1552
        %v1554 = vpop.f32.mrf.mxu0
        %v1555 = vadd.f32 0.0, %v1554
        %1556 = vmatmul.bf16.gmra.mxu0 %v1032
        %v1557 = vpop.f32.mrf.mxu0
        %v1558 = vadd.f32 0.0, %v1557
        %v1559 = vpop.f32.mrf.mxu0
        %v1560 = vadd.f32 0.0, %v1559
        %1561 = vmatmul.bf16.gmra.mxu0 %v1034
        %v1562 = vpop.f32.mrf.mxu0
        %v1563 = vadd.f32 0.0, %v1562
        %v1564 = vpop.f32.mrf.mxu0
        %v1565 = vadd.f32 0.0, %v1564
        %1566 = vdwg.mxu0
        %1567 = vmatpush.bf16.msra.mxu0 %v1353
        %1568 = vmatpush.bf16.msra.mxu0 %v1349
        %1569 = vmatpush.bf16.msra.mxu0 %v1345
        %1570 = vmatpush.bf16.msra.mxu0 %v1341
        %1571 = vmatpush.bf16.msra.mxu0 %v1337
        %1572 = vmatpush.bf16.msra.mxu0 %v1333
        %1573 = vmatpush.bf16.msra.mxu0 %v1329
        %1574 = vmatpush.bf16.msra.mxu0 %v1325
        %1575 = vmatmul.bf16.gmra.mxu0 %v1021
        %v1576 = vpop.f32.mrf.mxu0
        %v1577 = vadd.f32 %v1528, %v1576
        %v1578 = vpop.f32.mrf.mxu0
        %v1579 = vadd.f32 %v1530, %v1578
        %1580 = vmatmul.bf16.gmra.mxu0 %v1023
        %v1581 = vpop.f32.mrf.mxu0
        %v1582 = vadd.f32 %v1533, %v1581
        %v1583 = vpop.f32.mrf.mxu0
        %v1584 = vadd.f32 %v1535, %v1583
        %1585 = vmatmul.bf16.gmra.mxu0 %v1025
        %v1586 = vpop.f32.mrf.mxu0
        %v1587 = vadd.f32 %v1538, %v1586
        %v1588 = vpop.f32.mrf.mxu0
        %v1589 = vadd.f32 %v1540, %v1588
        %1590 = vmatmul.bf16.gmra.mxu0 %v1027
        %v1591 = vpop.f32.mrf.mxu0
        %v1592 = vadd.f32 %v1543, %v1591
        %v1593 = vpop.f32.mrf.mxu0
        %v1594 = vadd.f32 %v1545, %v1593
        %1595 = vmatmul.bf16.gmra.mxu0 %v1029
        %v1596 = vpop.f32.mrf.mxu0
        %v1597 = vadd.f32 %v1548, %v1596
        %v1598 = vpop.f32.mrf.mxu0
        %v1599 = vadd.f32 %v1550, %v1598
        %1600 = vmatmul.bf16.gmra.mxu0 %v1031
        %v1601 = vpop.f32.mrf.mxu0
        %v1602 = vadd.f32 %v1553, %v1601
        %v1603 = vpop.f32.mrf.mxu0
        %v1604 = vadd.f32 %v1555, %v1603
        %1605 = vmatmul.bf16.gmra.mxu0 %v1033
        %v1606 = vpop.f32.mrf.mxu0
        %v1607 = vadd.f32 %v1558, %v1606
        %v1608 = vpop.f32.mrf.mxu0
        %v1609 = vadd.f32 %v1560, %v1608
        %1610 = vmatmul.bf16.gmra.mxu0 %v1035
        %v1611 = vpop.f32.mrf.mxu0
        %v1612 = vadd.f32 %v1563, %v1611
        %v1613 = vpop.f32.mrf.mxu0
        %v1614 = vadd.f32 %v1565, %v1613
        %1615 = vdwg.mxu0
        %1616 = vmatpush.bf16.msra.mxu0 %v1322
        %1617 = vmatpush.bf16.msra.mxu0 %v1318
        %1618 = vmatpush.bf16.msra.mxu0 %v1314
        %1619 = vmatpush.bf16.msra.mxu0 %v1310
        %1620 = vmatpush.bf16.msra.mxu0 %v1306
        %1621 = vmatpush.bf16.msra.mxu0 %v1302
        %1622 = vmatpush.bf16.msra.mxu0 %v1298
        %1623 = vmatpush.bf16.msra.mxu0 %v1294
        %1624 = vmatmul.bf16.gmra.mxu0 %v1020
        %v1625 = vpop.f32.mrf.mxu0
        %v1626 = vadd.f32 0.0, %v1625
        %v1627 = vpop.f32.mrf.mxu0
        %v1628 = vadd.f32 0.0, %v1627
        %1629 = vmatmul.bf16.gmra.mxu0 %v1022
        %v1630 = vpop.f32.mrf.mxu0
        %v1631 = vadd.f32 0.0, %v1630
        %v1632 = vpop.f32.mrf.mxu0
        %v1633 = vadd.f32 0.0, %v1632
        %1634 = vmatmul.bf16.gmra.mxu0 %v1024
        %v1635 = vpop.f32.mrf.mxu0
        %v1636 = vadd.f32 0.0, %v1635
        %v1637 = vpop.f32.mrf.mxu0
        %v1638 = vadd.f32 0.0, %v1637
        %1639 = vmatmul.bf16.gmra.mxu0 %v1026
        %v1640 = vpop.f32.mrf.mxu0
        %v1641 = vadd.f32 0.0, %v1640
        %v1642 = vpop.f32.mrf.mxu0
        %v1643 = vadd.f32 0.0, %v1642
        %1644 = vmatmul.bf16.gmra.mxu0 %v1028
        %v1645 = vpop.f32.mrf.mxu0
        %v1646 = vadd.f32 0.0, %v1645
        %v1647 = vpop.f32.mrf.mxu0
        %v1648 = vadd.f32 0.0, %v1647
        %1649 = vmatmul.bf16.gmra.mxu0 %v1030
        %v1650 = vpop.f32.mrf.mxu0
        %v1651 = vadd.f32 0.0, %v1650
        %v1652 = vpop.f32.mrf.mxu0
        %v1653 = vadd.f32 0.0, %v1652
        %1654 = vmatmul.bf16.gmra.mxu0 %v1032
        %v1655 = vpop.f32.mrf.mxu0
        %v1656 = vadd.f32 0.0, %v1655
        %v1657 = vpop.f32.mrf.mxu0
        %v1658 = vadd.f32 0.0, %v1657
        %1659 = vmatmul.bf16.gmra.mxu0 %v1034
        %v1660 = vpop.f32.mrf.mxu0
        %v1661 = vadd.f32 0.0, %v1660
        %v1662 = vpop.f32.mrf.mxu0
        %v1663 = vadd.f32 0.0, %v1662
        %1664 = vdwg.mxu0
        %1665 = vmatpush.bf16.msra.mxu0 %v1354
        %1666 = vmatpush.bf16.msra.mxu0 %v1350
        %1667 = vmatpush.bf16.msra.mxu0 %v1346
        %1668 = vmatpush.bf16.msra.mxu0 %v1342
        %1669 = vmatpush.bf16.msra.mxu0 %v1338
        %1670 = vmatpush.bf16.msra.mxu0 %v1334
        %1671 = vmatpush.bf16.msra.mxu0 %v1330
        %1672 = vmatpush.bf16.msra.mxu0 %v1326
        %1673 = vmatmul.bf16.gmra.mxu0 %v1021
        %v1674 = vpop.f32.mrf.mxu0
        %v1675 = vadd.f32 %v1626, %v1674
        %v1676 = vpop.f32.mrf.mxu0
        %v1677 = vadd.f32 %v1628, %v1676
        %1678 = vmatmul.bf16.gmra.mxu0 %v1023
        %v1679 = vpop.f32.mrf.mxu0
        %v1680 = vadd.f32 %v1631, %v1679
        %v1681 = vpop.f32.mrf.mxu0
        %v1682 = vadd.f32 %v1633, %v1681
        %1683 = vmatmul.bf16.gmra.mxu0 %v1025
        %v1684 = vpop.f32.mrf.mxu0
        %v1685 = vadd.f32 %v1636, %v1684
        %v1686 = vpop.f32.mrf.mxu0
        %v1687 = vadd.f32 %v1638, %v1686
        %1688 = vmatmul.bf16.gmra.mxu0 %v1027
        %v1689 = vpop.f32.mrf.mxu0
        %v1690 = vadd.f32 %v1641, %v1689
        %v1691 = vpop.f32.mrf.mxu0
        %v1692 = vadd.f32 %v1643, %v1691
        %1693 = vmatmul.bf16.gmra.mxu0 %v1029
        %v1694 = vpop.f32.mrf.mxu0
        %v1695 = vadd.f32 %v1646, %v1694
        %v1696 = vpop.f32.mrf.mxu0
        %v1697 = vadd.f32 %v1648, %v1696
        %1698 = vmatmul.bf16.gmra.mxu0 %v1031
        %v1699 = vpop.f32.mrf.mxu0
        %v1700 = vadd.f32 %v1651, %v1699
        %v1701 = vpop.f32.mrf.mxu0
        %v1702 = vadd.f32 %v1653, %v1701
        %1703 = vmatmul.bf16.gmra.mxu0 %v1033
        %v1704 = vpop.f32.mrf.mxu0
        %v1705 = vadd.f32 %v1656, %v1704
        %v1706 = vpop.f32.mrf.mxu0
        %v1707 = vadd.f32 %v1658, %v1706
        %1708 = vmatmul.bf16.gmra.mxu0 %v1035
        %v1709 = vpop.f32.mrf.mxu0
        %v1710 = vadd.f32 %v1661, %v1709
        %v1711 = vpop.f32.mrf.mxu0
        %v1712 = vadd.f32 %v1663, %v1711
        %1713 = vdwg.mxu0
        %1714 = vmatpush.bf16.msra.mxu0 %v1323
        %1715 = vmatpush.bf16.msra.mxu0 %v1319
        %1716 = vmatpush.bf16.msra.mxu0 %v1315
        %1717 = vmatpush.bf16.msra.mxu0 %v1311
        %1718 = vmatpush.bf16.msra.mxu0 %v1307
        %1719 = vmatpush.bf16.msra.mxu0 %v1303
        %1720 = vmatpush.bf16.msra.mxu0 %v1299
        %1721 = vmatpush.bf16.msra.mxu0 %v1295
        %1722 = vmatmul.bf16.gmra.mxu0 %v1020
        %v1723 = vpop.f32.mrf.mxu0
        %v1724 = vadd.f32 0.0, %v1723
        %v1725 = vpop.f32.mrf.mxu0
        %v1726 = vadd.f32 0.0, %v1725
        %1727 = vmatmul.bf16.gmra.mxu0 %v1022
        %v1728 = vpop.f32.mrf.mxu0
        %v1729 = vadd.f32 0.0, %v1728
        %v1730 = vpop.f32.mrf.mxu0
        %v1731 = vadd.f32 0.0, %v1730
        %1732 = vmatmul.bf16.gmra.mxu0 %v1024
        %v1733 = vpop.f32.mrf.mxu0
        %v1734 = vadd.f32 0.0, %v1733
        %v1735 = vpop.f32.mrf.mxu0
        %v1736 = vadd.f32 0.0, %v1735
        %1737 = vmatmul.bf16.gmra.mxu0 %v1026
        %v1738 = vpop.f32.mrf.mxu0
        %v1739 = vadd.f32 0.0, %v1738
        %v1740 = vpop.f32.mrf.mxu0
        %v1741 = vadd.f32 0.0, %v1740
        %1742 = vmatmul.bf16.gmra.mxu0 %v1028
        %v1743 = vpop.f32.mrf.mxu0
        %v1744 = vadd.f32 0.0, %v1743
        %v1745 = vpop.f32.mrf.mxu0
        %v1746 = vadd.f32 0.0, %v1745
        %1747 = vmatmul.bf16.gmra.mxu0 %v1030
        %v1748 = vpop.f32.mrf.mxu0
        %v1749 = vadd.f32 0.0, %v1748
        %v1750 = vpop.f32.mrf.mxu0
        %v1751 = vadd.f32 0.0, %v1750
        %1752 = vmatmul.bf16.gmra.mxu0 %v1032
        %v1753 = vpop.f32.mrf.mxu0
        %v1754 = vadd.f32 0.0, %v1753
        %v1755 = vpop.f32.mrf.mxu0
        %v1756 = vadd.f32 0.0, %v1755
        %1757 = vmatmul.bf16.gmra.mxu0 %v1034
        %v1758 = vpop.f32.mrf.mxu0
        %v1759 = vadd.f32 0.0, %v1758
        %v1760 = vpop.f32.mrf.mxu0
        %v1761 = vadd.f32 0.0, %v1760
        %1762 = vdwg.mxu0
        %1763 = vmatpush.bf16.msra.mxu0 %v1355
        %1764 = vmatpush.bf16.msra.mxu0 %v1351
        %1765 = vmatpush.bf16.msra.mxu0 %v1347
        %1766 = vmatpush.bf16.msra.mxu0 %v1343
        %1767 = vmatpush.bf16.msra.mxu0 %v1339
        %1768 = vmatpush.bf16.msra.mxu0 %v1335
        %1769 = vmatpush.bf16.msra.mxu0 %v1331
        %1770 = vmatpush.bf16.msra.mxu0 %v1327
        %1771 = vmatmul.bf16.gmra.mxu0 %v1021
        %v1772 = vpop.f32.mrf.mxu0
        %v1773 = vadd.f32 %v1724, %v1772
        %v1774 = vpop.f32.mrf.mxu0
        %v1775 = vadd.f32 %v1726, %v1774
        %1776 = vmatmul.bf16.gmra.mxu0 %v1023
        %v1777 = vpop.f32.mrf.mxu0
        %v1778 = vadd.f32 %v1729, %v1777
        %v1779 = vpop.f32.mrf.mxu0
        %v1780 = vadd.f32 %v1731, %v1779
        %1781 = vmatmul.bf16.gmra.mxu0 %v1025
        %v1782 = vpop.f32.mrf.mxu0
        %v1783 = vadd.f32 %v1734, %v1782
        %v1784 = vpop.f32.mrf.mxu0
        %v1785 = vadd.f32 %v1736, %v1784
        %1786 = vmatmul.bf16.gmra.mxu0 %v1027
        %v1787 = vpop.f32.mrf.mxu0
        %v1788 = vadd.f32 %v1739, %v1787
        %v1789 = vpop.f32.mrf.mxu0
        %v1790 = vadd.f32 %v1741, %v1789
        %1791 = vmatmul.bf16.gmra.mxu0 %v1029
        %v1792 = vpop.f32.mrf.mxu0
        %v1793 = vadd.f32 %v1744, %v1792
        %v1794 = vpop.f32.mrf.mxu0
        %v1795 = vadd.f32 %v1746, %v1794
        %1796 = vmatmul.bf16.gmra.mxu0 %v1031
        %v1797 = vpop.f32.mrf.mxu0
        %v1798 = vadd.f32 %v1749, %v1797
        %v1799 = vpop.f32.mrf.mxu0
        %v1800 = vadd.f32 %v1751, %v1799
        %1801 = vmatmul.bf16.gmra.mxu0 %v1033
        %v1802 = vpop.f32.mrf.mxu0
        %v1803 = vadd.f32 %v1754, %v1802
        %v1804 = vpop.f32.mrf.mxu0
        %v1805 = vadd.f32 %v1756, %v1804
        %1806 = vmatmul.bf16.gmra.mxu0 %v1035
        %v1807 = vpop.f32.mrf.mxu0
        %v1808 = vadd.f32 %v1759, %v1807
        %v1809 = vpop.f32.mrf.mxu0
        %v1810 = vadd.f32 %v1761, %v1809
        %1811 = vdwg.mxu0
        %v1812 = vpack.c.bf16 %v990, %v988
        %v1813 = vpack.c.bf16 %v991, %v989
        %v1814 = vpack.c.bf16 %v994, %v992
        %v1815 = vpack.c.bf16 %v995, %v993
        %v1816 = vpack.c.bf16 %v998, %v996
        %v1817 = vpack.c.bf16 %v999, %v997
        %v1818 = vpack.c.bf16 %v1002, %v1000
        %v1819 = vpack.c.bf16 %v1003, %v1001
        %v1820 = vpack.c.bf16 %v1006, %v1004
        %v1821 = vpack.c.bf16 %v1007, %v1005
        %v1822 = vpack.c.bf16 %v1010, %v1008
        %v1823 = vpack.c.bf16 %v1011, %v1009
        %v1824 = vpack.c.bf16 %v1014, %v1012
        %v1825 = vpack.c.bf16 %v1015, %v1013
        %v1826 = vpack.c.bf16 %v1018, %v1016
        %v1827 = vpack.c.bf16 %v1019, %v1017
        %v1828 = vld [vmem:[#allocation8] sm:$0xff]
        %v1829 = vld [vmem:[#allocation8 + $0x8] sm:$0xff]
        %v1830 = vld [vmem:[#allocation8 + $0x10] sm:$0xff]
        %v1831 = vld [vmem:[#allocation8 + $0x18] sm:$0xff]
        %v1832 = vld [vmem:[#allocation8 + $0x20] sm:$0xff]
        %v1833 = vld [vmem:[#allocation8 + $0x28] sm:$0xff]
        %v1834 = vld [vmem:[#allocation8 + $0x30] sm:$0xff]
        %v1835 = vld [vmem:[#allocation8 + $0x38] sm:$0xff]
        %v1836 = vld [vmem:[#allocation8 + $0x40] sm:$0xff]
        %v1837 = vld [vmem:[#allocation8 + $0x48] sm:$0xff]
        %v1838 = vld [vmem:[#allocation8 + $0x50] sm:$0xff]
        %v1839 = vld [vmem:[#allocation8 + $0x58] sm:$0xff]
        %v1840 = vld [vmem:[#allocation8 + $0x60] sm:$0xff]
        %v1841 = vld [vmem:[#allocation8 + $0x68] sm:$0xff]
        %v1842 = vld [vmem:[#allocation8 + $0x70] sm:$0xff]
        %v1843 = vld [vmem:[#allocation8 + $0x78] sm:$0xff]
        %v1844 = vld [vmem:[#allocation8 + $0x80] sm:$0xff]
        %v1845 = vld [vmem:[#allocation8 + $0x88] sm:$0xff]
        %v1846 = vld [vmem:[#allocation8 + $0x90] sm:$0xff]
        %v1847 = vld [vmem:[#allocation8 + $0x98] sm:$0xff]
        %v1848 = vld [vmem:[#allocation8 + $0xa0] sm:$0xff]
        %v1849 = vld [vmem:[#allocation8 + $0xa8] sm:$0xff]
        %v1850 = vld [vmem:[#allocation8 + $0xb0] sm:$0xff]
        %v1851 = vld [vmem:[#allocation8 + $0xb8] sm:$0xff]
        %v1852 = vld [vmem:[#allocation8 + $0xc0] sm:$0xff]
        %v1853 = vld [vmem:[#allocation8 + $0xc8] sm:$0xff]
        %v1854 = vld [vmem:[#allocation8 + $0xd0] sm:$0xff]
        %v1855 = vld [vmem:[#allocation8 + $0xd8] sm:$0xff]
        %v1856 = vld [vmem:[#allocation8 + $0xe0] sm:$0xff]
        %v1857 = vld [vmem:[#allocation8 + $0xe8] sm:$0xff]
        %v1858 = vld [vmem:[#allocation8 + $0xf0] sm:$0xff]
        %v1859 = vld [vmem:[#allocation8 + $0xf8] sm:$0xff]
        %v1860 = vld [vmem:[#allocation8 + $0x100] sm:$0xff]
        %v1861 = vld [vmem:[#allocation8 + $0x108] sm:$0xff]
        %v1862 = vld [vmem:[#allocation8 + $0x110] sm:$0xff]
        %v1863 = vld [vmem:[#allocation8 + $0x118] sm:$0xff]
        %v1864 = vld [vmem:[#allocation8 + $0x120] sm:$0xff]
        %v1865 = vld [vmem:[#allocation8 + $0x128] sm:$0xff]
        %v1866 = vld [vmem:[#allocation8 + $0x130] sm:$0xff]
        %v1867 = vld [vmem:[#allocation8 + $0x138] sm:$0xff]
        %v1868 = vld [vmem:[#allocation8 + $0x140] sm:$0xff]
        %v1869 = vld [vmem:[#allocation8 + $0x148] sm:$0xff]
        %v1870 = vld [vmem:[#allocation8 + $0x150] sm:$0xff]
        %v1871 = vld [vmem:[#allocation8 + $0x158] sm:$0xff]
        %v1872 = vld [vmem:[#allocation8 + $0x160] sm:$0xff]
        %v1873 = vld [vmem:[#allocation8 + $0x168] sm:$0xff]
        %v1874 = vld [vmem:[#allocation8 + $0x170] sm:$0xff]
        %v1875 = vld [vmem:[#allocation8 + $0x178] sm:$0xff]
        %v1876 = vld [vmem:[#allocation8 + $0x180] sm:$0xff]
        %v1877 = vld [vmem:[#allocation8 + $0x188] sm:$0xff]
        %v1878 = vld [vmem:[#allocation8 + $0x190] sm:$0xff]
        %v1879 = vld [vmem:[#allocation8 + $0x198] sm:$0xff]
        %v1880 = vld [vmem:[#allocation8 + $0x1a0] sm:$0xff]
        %v1881 = vld [vmem:[#allocation8 + $0x1a8] sm:$0xff]
        %v1882 = vld [vmem:[#allocation8 + $0x1b0] sm:$0xff]
        %v1883 = vld [vmem:[#allocation8 + $0x1b8] sm:$0xff]
        %v1884 = vld [vmem:[#allocation8 + $0x1c0] sm:$0xff]
        %v1885 = vld [vmem:[#allocation8 + $0x1c8] sm:$0xff]
        %v1886 = vld [vmem:[#allocation8 + $0x1d0] sm:$0xff]
        %v1887 = vld [vmem:[#allocation8 + $0x1d8] sm:$0xff]
        %v1888 = vld [vmem:[#allocation8 + $0x1e0] sm:$0xff]
        %v1889 = vld [vmem:[#allocation8 + $0x1e8] sm:$0xff]
        %v1890 = vld [vmem:[#allocation8 + $0x1f0] sm:$0xff]
        %v1891 = vld [vmem:[#allocation8 + $0x1f8] sm:$0xff]
        %v1956 = vunpack.c.l.b16 %v1828
        %v1957 = vunpack.c.h.b16 %v1828
        %v1958 = vunpack.c.l.b16 %v1829
        %v1959 = vunpack.c.h.b16 %v1829
        %v1960 = vunpack.c.l.b16 %v1830
        %v1961 = vunpack.c.h.b16 %v1830
        %v1962 = vunpack.c.l.b16 %v1831
        %v1963 = vunpack.c.h.b16 %v1831
        %v1964 = vunpack.c.l.b16 %v1832
        %v1965 = vunpack.c.h.b16 %v1832
        %v1966 = vunpack.c.l.b16 %v1833
        %v1967 = vunpack.c.h.b16 %v1833
        %v1968 = vunpack.c.l.b16 %v1834
        %v1969 = vunpack.c.h.b16 %v1834
        %v1970 = vunpack.c.l.b16 %v1835
        %v1971 = vunpack.c.h.b16 %v1835
        %v1972 = vunpack.c.l.b16 %v1836
        %v1973 = vunpack.c.h.b16 %v1836
        %v1974 = vunpack.c.l.b16 %v1837
        %v1975 = vunpack.c.h.b16 %v1837
        %v1976 = vunpack.c.l.b16 %v1838
        %v1977 = vunpack.c.h.b16 %v1838
        %v1978 = vunpack.c.l.b16 %v1839
        %v1979 = vunpack.c.h.b16 %v1839
        %v1980 = vunpack.c.l.b16 %v1840
        %v1981 = vunpack.c.h.b16 %v1840
        %v1982 = vunpack.c.l.b16 %v1841
        %v1983 = vunpack.c.h.b16 %v1841
        %v1984 = vunpack.c.l.b16 %v1842
        %v1985 = vunpack.c.h.b16 %v1842
        %v1986 = vunpack.c.l.b16 %v1843
        %v1987 = vunpack.c.h.b16 %v1843
        %v1988 = vunpack.c.l.b16 %v1844
        %v1989 = vunpack.c.h.b16 %v1844
        %v1990 = vunpack.c.l.b16 %v1845
        %v1991 = vunpack.c.h.b16 %v1845
        %v1992 = vunpack.c.l.b16 %v1846
        %v1993 = vunpack.c.h.b16 %v1846
        %v1994 = vunpack.c.l.b16 %v1847
        %v1995 = vunpack.c.h.b16 %v1847
        %v1996 = vunpack.c.l.b16 %v1848
        %v1997 = vunpack.c.h.b16 %v1848
        %v1998 = vunpack.c.l.b16 %v1849
        %v1999 = vunpack.c.h.b16 %v1849
        %v2000 = vunpack.c.l.b16 %v1850
        %v2001 = vunpack.c.h.b16 %v1850
        %v2002 = vunpack.c.l.b16 %v1851
        %v2003 = vunpack.c.h.b16 %v1851
        %v2004 = vunpack.c.l.b16 %v1852
        %v2005 = vunpack.c.h.b16 %v1852
        %v2006 = vunpack.c.l.b16 %v1853
        %v2007 = vunpack.c.h.b16 %v1853
        %v2008 = vunpack.c.l.b16 %v1854
        %v2009 = vunpack.c.h.b16 %v1854
        %v2010 = vunpack.c.l.b16 %v1855
        %v2011 = vunpack.c.h.b16 %v1855
        %v2012 = vunpack.c.l.b16 %v1856
        %v2013 = vunpack.c.h.b16 %v1856
        %v2014 = vunpack.c.l.b16 %v1857
        %v2015 = vunpack.c.h.b16 %v1857
        %v2016 = vunpack.c.l.b16 %v1858
        %v2017 = vunpack.c.h.b16 %v1858
        %v2018 = vunpack.c.l.b16 %v1859
        %v2019 = vunpack.c.h.b16 %v1859
        %v2020 = vunpack.c.l.b16 %v1860
        %v2021 = vunpack.c.h.b16 %v1860
        %v2022 = vunpack.c.l.b16 %v1861
        %v2023 = vunpack.c.h.b16 %v1861
        %v2024 = vunpack.c.l.b16 %v1862
        %v2025 = vunpack.c.h.b16 %v1862
        %v2026 = vunpack.c.l.b16 %v1863
        %v2027 = vunpack.c.h.b16 %v1863
        %v2028 = vunpack.c.l.b16 %v1864
        %v2029 = vunpack.c.h.b16 %v1864
        %v2030 = vunpack.c.l.b16 %v1865
        %v2031 = vunpack.c.h.b16 %v1865
        %v2032 = vunpack.c.l.b16 %v1866
        %v2033 = vunpack.c.h.b16 %v1866
        %v2034 = vunpack.c.l.b16 %v1867
        %v2035 = vunpack.c.h.b16 %v1867
        %v2036 = vunpack.c.l.b16 %v1868
        %v2037 = vunpack.c.h.b16 %v1868
        %v2038 = vunpack.c.l.b16 %v1869
        %v2039 = vunpack.c.h.b16 %v1869
        %v2040 = vunpack.c.l.b16 %v1870
        %v2041 = vunpack.c.h.b16 %v1870
        %v2042 = vunpack.c.l.b16 %v1871
        %v2043 = vunpack.c.h.b16 %v1871
        %v2044 = vunpack.c.l.b16 %v1872
        %v2045 = vunpack.c.h.b16 %v1872
        %v2046 = vunpack.c.l.b16 %v1873
        %v2047 = vunpack.c.h.b16 %v1873
        %v2048 = vunpack.c.l.b16 %v1874
        %v2049 = vunpack.c.h.b16 %v1874
        %v2050 = vunpack.c.l.b16 %v1875
        %v2051 = vunpack.c.h.b16 %v1875
        %v2052 = vunpack.c.l.b16 %v1876
        %v2053 = vunpack.c.h.b16 %v1876
        %v2054 = vunpack.c.l.b16 %v1877
        %v2055 = vunpack.c.h.b16 %v1877
        %v2056 = vunpack.c.l.b16 %v1878
        %v2057 = vunpack.c.h.b16 %v1878
        %v2058 = vunpack.c.l.b16 %v1879
        %v2059 = vunpack.c.h.b16 %v1879
        %v2060 = vunpack.c.l.b16 %v1880
        %v2061 = vunpack.c.h.b16 %v1880
        %v2062 = vunpack.c.l.b16 %v1881
        %v2063 = vunpack.c.h.b16 %v1881
        %v2064 = vunpack.c.l.b16 %v1882
        %v2065 = vunpack.c.h.b16 %v1882
        %v2066 = vunpack.c.l.b16 %v1883
        %v2067 = vunpack.c.h.b16 %v1883
        %v2068 = vunpack.c.l.b16 %v1884
        %v2069 = vunpack.c.h.b16 %v1884
        %v2070 = vunpack.c.l.b16 %v1885
        %v2071 = vunpack.c.h.b16 %v1885
        %v2072 = vunpack.c.l.b16 %v1886
        %v2073 = vunpack.c.h.b16 %v1886
        %v2074 = vunpack.c.l.b16 %v1887
        %v2075 = vunpack.c.h.b16 %v1887
        %v2076 = vunpack.c.l.b16 %v1888
        %v2077 = vunpack.c.h.b16 %v1888
        %v2078 = vunpack.c.l.b16 %v1889
        %v2079 = vunpack.c.h.b16 %v1889
        %v2080 = vunpack.c.l.b16 %v1890
        %v2081 = vunpack.c.h.b16 %v1890
        %v2082 = vunpack.c.l.b16 %v1891
        %v2083 = vunpack.c.h.b16 %v1891
        %v2084 = vpack.c.b16 %v1960, %v1956
        %v2085 = vpack.c.b16 %v1961, %v1957
        %v2086 = vpack.c.b16 %v1962, %v1958
        %v2087 = vpack.c.b16 %v1963, %v1959
        %v2088 = vpack.c.b16 %v1968, %v1964
        %v2089 = vpack.c.b16 %v1969, %v1965
        %v2090 = vpack.c.b16 %v1970, %v1966
        %v2091 = vpack.c.b16 %v1971, %v1967
        %v2092 = vpack.c.b16 %v1976, %v1972
        %v2093 = vpack.c.b16 %v1977, %v1973
        %v2094 = vpack.c.b16 %v1978, %v1974
        %v2095 = vpack.c.b16 %v1979, %v1975
        %v2096 = vpack.c.b16 %v1984, %v1980
        %v2097 = vpack.c.b16 %v1985, %v1981
        %v2098 = vpack.c.b16 %v1986, %v1982
        %v2099 = vpack.c.b16 %v1987, %v1983
        %v2100 = vpack.c.b16 %v1992, %v1988
        %v2101 = vpack.c.b16 %v1993, %v1989
        %v2102 = vpack.c.b16 %v1994, %v1990
        %v2103 = vpack.c.b16 %v1995, %v1991
        %v2104 = vpack.c.b16 %v2000, %v1996
        %v2105 = vpack.c.b16 %v2001, %v1997
        %v2106 = vpack.c.b16 %v2002, %v1998
        %v2107 = vpack.c.b16 %v2003, %v1999
        %v2108 = vpack.c.b16 %v2008, %v2004
        %v2109 = vpack.c.b16 %v2009, %v2005
        %v2110 = vpack.c.b16 %v2010, %v2006
        %v2111 = vpack.c.b16 %v2011, %v2007
        %v2112 = vpack.c.b16 %v2016, %v2012
        %v2113 = vpack.c.b16 %v2017, %v2013
        %v2114 = vpack.c.b16 %v2018, %v2014
        %v2115 = vpack.c.b16 %v2019, %v2015
        %v2116 = vpack.c.b16 %v2024, %v2020
        %v2117 = vpack.c.b16 %v2025, %v2021
        %v2118 = vpack.c.b16 %v2026, %v2022
        %v2119 = vpack.c.b16 %v2027, %v2023
        %v2120 = vpack.c.b16 %v2032, %v2028
        %v2121 = vpack.c.b16 %v2033, %v2029
        %v2122 = vpack.c.b16 %v2034, %v2030
        %v2123 = vpack.c.b16 %v2035, %v2031
        %v2124 = vpack.c.b16 %v2040, %v2036
        %v2125 = vpack.c.b16 %v2041, %v2037
        %v2126 = vpack.c.b16 %v2042, %v2038
        %v2127 = vpack.c.b16 %v2043, %v2039
        %v2128 = vpack.c.b16 %v2048, %v2044
        %v2129 = vpack.c.b16 %v2049, %v2045
        %v2130 = vpack.c.b16 %v2050, %v2046
        %v2131 = vpack.c.b16 %v2051, %v2047
        %v2132 = vpack.c.b16 %v2056, %v2052
        %v2133 = vpack.c.b16 %v2057, %v2053
        %v2134 = vpack.c.b16 %v2058, %v2054
        %v2135 = vpack.c.b16 %v2059, %v2055
        %v2136 = vpack.c.b16 %v2064, %v2060
        %v2137 = vpack.c.b16 %v2065, %v2061
        %v2138 = vpack.c.b16 %v2066, %v2062
        %v2139 = vpack.c.b16 %v2067, %v2063
        %v2140 = vpack.c.b16 %v2072, %v2068
        %v2141 = vpack.c.b16 %v2073, %v2069
        %v2142 = vpack.c.b16 %v2074, %v2070
        %v2143 = vpack.c.b16 %v2075, %v2071
        %v2144 = vpack.c.b16 %v2080, %v2076
        %v2145 = vpack.c.b16 %v2081, %v2077
        %v2146 = vpack.c.b16 %v2082, %v2078
        %v2147 = vpack.c.b16 %v2083, %v2079
        %2212 = vmatpush.bf16.msra.mxu0 %v2112
        %2213 = vmatpush.bf16.msra.mxu0 %v2108
        %2214 = vmatpush.bf16.msra.mxu0 %v2104
        %2215 = vmatpush.bf16.msra.mxu0 %v2100
        %2216 = vmatpush.bf16.msra.mxu0 %v2096
        %2217 = vmatpush.bf16.msra.mxu0 %v2092
        %2218 = vmatpush.bf16.msra.mxu0 %v2088
        %2219 = vmatpush.bf16.msra.mxu0 %v2084
        %2220 = vmatmul.bf16.gmra.mxu0 %v1812
        %v2221 = vpop.f32.mrf.mxu0
        %v2222 = vadd.f32 1.0, %v2221
        %v2223 = vpop.f32.mrf.mxu0
        %v2224 = vadd.f32 1.0, %v2223
        %2225 = vmatmul.bf16.gmra.mxu0 %v1814
        %v2226 = vpop.f32.mrf.mxu0
        %v2227 = vadd.f32 1.0, %v2226
        %v2228 = vpop.f32.mrf.mxu0
        %v2229 = vadd.f32 1.0, %v2228
        %2230 = vmatmul.bf16.gmra.mxu0 %v1816
        %v2231 = vpop.f32.mrf.mxu0
        %v2232 = vadd.f32 1.0, %v2231
        %v2233 = vpop.f32.mrf.mxu0
        %v2234 = vadd.f32 1.0, %v2233
        %2235 = vmatmul.bf16.gmra.mxu0 %v1818
        %v2236 = vpop.f32.mrf.mxu0
        %v2237 = vadd.f32 1.0, %v2236
        %v2238 = vpop.f32.mrf.mxu0
        %v2239 = vadd.f32 1.0, %v2238
        %2240 = vmatmul.bf16.gmra.mxu0 %v1820
        %v2241 = vpop.f32.mrf.mxu0
        %v2242 = vadd.f32 1.0, %v2241
        %v2243 = vpop.f32.mrf.mxu0
        %v2244 = vadd.f32 1.0, %v2243
        %2245 = vmatmul.bf16.gmra.mxu0 %v1822
        %v2246 = vpop.f32.mrf.mxu0
        %v2247 = vadd.f32 1.0, %v2246
        %v2248 = vpop.f32.mrf.mxu0
        %v2249 = vadd.f32 1.0, %v2248
        %2250 = vmatmul.bf16.gmra.mxu0 %v1824
        %v2251 = vpop.f32.mrf.mxu0
        %v2252 = vadd.f32 1.0, %v2251
        %v2253 = vpop.f32.mrf.mxu0
        %v2254 = vadd.f32 1.0, %v2253
        %2255 = vmatmul.bf16.gmra.mxu0 %v1826
        %v2256 = vpop.f32.mrf.mxu0
        %v2257 = vadd.f32 1.0, %v2256
        %v2258 = vpop.f32.mrf.mxu0
        %v2259 = vadd.f32 1.0, %v2258
        %2260 = vdwg.mxu0
        %2261 = vmatpush.bf16.msra.mxu0 %v2144
        %2262 = vmatpush.bf16.msra.mxu0 %v2140
        %2263 = vmatpush.bf16.msra.mxu0 %v2136
        %2264 = vmatpush.bf16.msra.mxu0 %v2132
        %2265 = vmatpush.bf16.msra.mxu0 %v2128
        %2266 = vmatpush.bf16.msra.mxu0 %v2124
        %2267 = vmatpush.bf16.msra.mxu0 %v2120
        %2268 = vmatpush.bf16.msra.mxu0 %v2116
        %2269 = vmatmul.bf16.gmra.mxu0 %v1813
        %v2270 = vpop.f32.mrf.mxu0
        %v2271 = vadd.f32 %v2222, %v2270
        %v2272 = vpop.f32.mrf.mxu0
        %v2273 = vadd.f32 %v2224, %v2272
        %2274 = vmatmul.bf16.gmra.mxu0 %v1815
        %v2275 = vpop.f32.mrf.mxu0
        %v2276 = vadd.f32 %v2227, %v2275
        %v2277 = vpop.f32.mrf.mxu0
        %v2278 = vadd.f32 %v2229, %v2277
        %2279 = vmatmul.bf16.gmra.mxu0 %v1817
        %v2280 = vpop.f32.mrf.mxu0
        %v2281 = vadd.f32 %v2232, %v2280
        %v2282 = vpop.f32.mrf.mxu0
        %v2283 = vadd.f32 %v2234, %v2282
        %2284 = vmatmul.bf16.gmra.mxu0 %v1819
        %v2285 = vpop.f32.mrf.mxu0
        %v2286 = vadd.f32 %v2237, %v2285
        %v2287 = vpop.f32.mrf.mxu0
        %v2288 = vadd.f32 %v2239, %v2287
        %2289 = vmatmul.bf16.gmra.mxu0 %v1821
        %v2290 = vpop.f32.mrf.mxu0
        %v2291 = vadd.f32 %v2242, %v2290
        %v2292 = vpop.f32.mrf.mxu0
        %v2293 = vadd.f32 %v2244, %v2292
        %2294 = vmatmul.bf16.gmra.mxu0 %v1823
        %v2295 = vpop.f32.mrf.mxu0
        %v2296 = vadd.f32 %v2247, %v2295
        %v2297 = vpop.f32.mrf.mxu0
        %v2298 = vadd.f32 %v2249, %v2297
        %2299 = vmatmul.bf16.gmra.mxu0 %v1825
        %v2300 = vpop.f32.mrf.mxu0
        %v2301 = vadd.f32 %v2252, %v2300
        %v2302 = vpop.f32.mrf.mxu0
        %v2303 = vadd.f32 %v2254, %v2302
        %2304 = vmatmul.bf16.gmra.mxu0 %v1827
        %v2305 = vpop.f32.mrf.mxu0
        %v2306 = vadd.f32 %v2257, %v2305
        %v2307 = vpop.f32.mrf.mxu0
        %v2308 = vadd.f32 %v2259, %v2307
        %2309 = vdwg.mxu0
        %2310 = vmatpush.bf16.msra.mxu0 %v2113
        %2311 = vmatpush.bf16.msra.mxu0 %v2109
        %2312 = vmatpush.bf16.msra.mxu0 %v2105
        %2313 = vmatpush.bf16.msra.mxu0 %v2101
        %2314 = vmatpush.bf16.msra.mxu0 %v2097
        %2315 = vmatpush.bf16.msra.mxu0 %v2093
        %2316 = vmatpush.bf16.msra.mxu0 %v2089
        %2317 = vmatpush.bf16.msra.mxu0 %v2085
        %2318 = vmatmul.bf16.gmra.mxu0 %v1812
        %v2319 = vpop.f32.mrf.mxu0
        %v2320 = vadd.f32 1.0, %v2319
        %v2321 = vpop.f32.mrf.mxu0
        %v2322 = vadd.f32 1.0, %v2321
        %2323 = vmatmul.bf16.gmra.mxu0 %v1814
        %v2324 = vpop.f32.mrf.mxu0
        %v2325 = vadd.f32 1.0, %v2324
        %v2326 = vpop.f32.mrf.mxu0
        %v2327 = vadd.f32 1.0, %v2326
        %2328 = vmatmul.bf16.gmra.mxu0 %v1816
        %v2329 = vpop.f32.mrf.mxu0
        %v2330 = vadd.f32 1.0, %v2329
        %v2331 = vpop.f32.mrf.mxu0
        %v2332 = vadd.f32 1.0, %v2331
        %2333 = vmatmul.bf16.gmra.mxu0 %v1818
        %v2334 = vpop.f32.mrf.mxu0
        %v2335 = vadd.f32 1.0, %v2334
        %v2336 = vpop.f32.mrf.mxu0
        %v2337 = vadd.f32 1.0, %v2336
        %2338 = vmatmul.bf16.gmra.mxu0 %v1820
        %v2339 = vpop.f32.mrf.mxu0
        %v2340 = vadd.f32 1.0, %v2339
        %v2341 = vpop.f32.mrf.mxu0
        %v2342 = vadd.f32 1.0, %v2341
        %2343 = vmatmul.bf16.gmra.mxu0 %v1822
        %v2344 = vpop.f32.mrf.mxu0
        %v2345 = vadd.f32 1.0, %v2344
        %v2346 = vpop.f32.mrf.mxu0
        %v2347 = vadd.f32 1.0, %v2346
        %2348 = vmatmul.bf16.gmra.mxu0 %v1824
        %v2349 = vpop.f32.mrf.mxu0
        %v2350 = vadd.f32 1.0, %v2349
        %v2351 = vpop.f32.mrf.mxu0
        %v2352 = vadd.f32 1.0, %v2351
        %2353 = vmatmul.bf16.gmra.mxu0 %v1826
        %v2354 = vpop.f32.mrf.mxu0
        %v2355 = vadd.f32 1.0, %v2354
        %v2356 = vpop.f32.mrf.mxu0
        %v2357 = vadd.f32 1.0, %v2356
        %2358 = vdwg.mxu0
        %2359 = vmatpush.bf16.msra.mxu0 %v2145
        %2360 = vmatpush.bf16.msra.mxu0 %v2141
        %2361 = vmatpush.bf16.msra.mxu0 %v2137
        %2362 = vmatpush.bf16.msra.mxu0 %v2133
        %2363 = vmatpush.bf16.msra.mxu0 %v2129
        %2364 = vmatpush.bf16.msra.mxu0 %v2125
        %2365 = vmatpush.bf16.msra.mxu0 %v2121
        %2366 = vmatpush.bf16.msra.mxu0 %v2117
        %2367 = vmatmul.bf16.gmra.mxu0 %v1813
        %v2368 = vpop.f32.mrf.mxu0
        %v2369 = vadd.f32 %v2320, %v2368
        %v2370 = vpop.f32.mrf.mxu0
        %v2371 = vadd.f32 %v2322, %v2370
        %2372 = vmatmul.bf16.gmra.mxu0 %v1815
        %v2373 = vpop.f32.mrf.mxu0
        %v2374 = vadd.f32 %v2325, %v2373
        %v2375 = vpop.f32.mrf.mxu0
        %v2376 = vadd.f32 %v2327, %v2375
        %2377 = vmatmul.bf16.gmra.mxu0 %v1817
        %v2378 = vpop.f32.mrf.mxu0
        %v2379 = vadd.f32 %v2330, %v2378
        %v2380 = vpop.f32.mrf.mxu0
        %v2381 = vadd.f32 %v2332, %v2380
        %2382 = vmatmul.bf16.gmra.mxu0 %v1819
        %v2383 = vpop.f32.mrf.mxu0
        %v2384 = vadd.f32 %v2335, %v2383
        %v2385 = vpop.f32.mrf.mxu0
        %v2386 = vadd.f32 %v2337, %v2385
        %2387 = vmatmul.bf16.gmra.mxu0 %v1821
        %v2388 = vpop.f32.mrf.mxu0
        %v2389 = vadd.f32 %v2340, %v2388
        %v2390 = vpop.f32.mrf.mxu0
        %v2391 = vadd.f32 %v2342, %v2390
        %2392 = vmatmul.bf16.gmra.mxu0 %v1823
        %v2393 = vpop.f32.mrf.mxu0
        %v2394 = vadd.f32 %v2345, %v2393
        %v2395 = vpop.f32.mrf.mxu0
        %v2396 = vadd.f32 %v2347, %v2395
        %2397 = vmatmul.bf16.gmra.mxu0 %v1825
        %v2398 = vpop.f32.mrf.mxu0
        %v2399 = vadd.f32 %v2350, %v2398
        %v2400 = vpop.f32.mrf.mxu0
        %v2401 = vadd.f32 %v2352, %v2400
        %2402 = vmatmul.bf16.gmra.mxu0 %v1827
        %v2403 = vpop.f32.mrf.mxu0
        %v2404 = vadd.f32 %v2355, %v2403
        %v2405 = vpop.f32.mrf.mxu0
        %v2406 = vadd.f32 %v2357, %v2405
        %2407 = vdwg.mxu0
        %2408 = vmatpush.bf16.msra.mxu0 %v2114
        %2409 = vmatpush.bf16.msra.mxu0 %v2110
        %2410 = vmatpush.bf16.msra.mxu0 %v2106
        %2411 = vmatpush.bf16.msra.mxu0 %v2102
        %2412 = vmatpush.bf16.msra.mxu0 %v2098
        %2413 = vmatpush.bf16.msra.mxu0 %v2094
        %2414 = vmatpush.bf16.msra.mxu0 %v2090
        %2415 = vmatpush.bf16.msra.mxu0 %v2086
        %2416 = vmatmul.bf16.gmra.mxu0 %v1812
        %v2417 = vpop.f32.mrf.mxu0
        %v2418 = vadd.f32 1.0, %v2417
        %v2419 = vpop.f32.mrf.mxu0
        %v2420 = vadd.f32 1.0, %v2419
        %2421 = vmatmul.bf16.gmra.mxu0 %v1814
        %v2422 = vpop.f32.mrf.mxu0
        %v2423 = vadd.f32 1.0, %v2422
        %v2424 = vpop.f32.mrf.mxu0
        %v2425 = vadd.f32 1.0, %v2424
        %2426 = vmatmul.bf16.gmra.mxu0 %v1816
        %v2427 = vpop.f32.mrf.mxu0
        %v2428 = vadd.f32 1.0, %v2427
        %v2429 = vpop.f32.mrf.mxu0
        %v2430 = vadd.f32 1.0, %v2429
        %2431 = vmatmul.bf16.gmra.mxu0 %v1818
        %v2432 = vpop.f32.mrf.mxu0
        %v2433 = vadd.f32 1.0, %v2432
        %v2434 = vpop.f32.mrf.mxu0
        %v2435 = vadd.f32 1.0, %v2434
        %2436 = vmatmul.bf16.gmra.mxu0 %v1820
        %v2437 = vpop.f32.mrf.mxu0
        %v2438 = vadd.f32 1.0, %v2437
        %v2439 = vpop.f32.mrf.mxu0
        %v2440 = vadd.f32 1.0, %v2439
        %2441 = vmatmul.bf16.gmra.mxu0 %v1822
        %v2442 = vpop.f32.mrf.mxu0
        %v2443 = vadd.f32 1.0, %v2442
        %v2444 = vpop.f32.mrf.mxu0
        %v2445 = vadd.f32 1.0, %v2444
        %2446 = vmatmul.bf16.gmra.mxu0 %v1824
        %v2447 = vpop.f32.mrf.mxu0
        %v2448 = vadd.f32 1.0, %v2447
        %v2449 = vpop.f32.mrf.mxu0
        %v2450 = vadd.f32 1.0, %v2449
        %2451 = vmatmul.bf16.gmra.mxu0 %v1826
        %v2452 = vpop.f32.mrf.mxu0
        %v2453 = vadd.f32 1.0, %v2452
        %v2454 = vpop.f32.mrf.mxu0
        %v2455 = vadd.f32 1.0, %v2454
        %2456 = vdwg.mxu0
        %2457 = vmatpush.bf16.msra.mxu0 %v2146
        %2458 = vmatpush.bf16.msra.mxu0 %v2142
        %2459 = vmatpush.bf16.msra.mxu0 %v2138
        %2460 = vmatpush.bf16.msra.mxu0 %v2134
        %2461 = vmatpush.bf16.msra.mxu0 %v2130
        %2462 = vmatpush.bf16.msra.mxu0 %v2126
        %2463 = vmatpush.bf16.msra.mxu0 %v2122
        %2464 = vmatpush.bf16.msra.mxu0 %v2118
        %2465 = vmatmul.bf16.gmra.mxu0 %v1813
        %v2466 = vpop.f32.mrf.mxu0
        %v2467 = vadd.f32 %v2418, %v2466
        %v2468 = vpop.f32.mrf.mxu0
        %v2469 = vadd.f32 %v2420, %v2468
        %2470 = vmatmul.bf16.gmra.mxu0 %v1815
        %v2471 = vpop.f32.mrf.mxu0
        %v2472 = vadd.f32 %v2423, %v2471
        %v2473 = vpop.f32.mrf.mxu0
        %v2474 = vadd.f32 %v2425, %v2473
        %2475 = vmatmul.bf16.gmra.mxu0 %v1817
        %v2476 = vpop.f32.mrf.mxu0
        %v2477 = vadd.f32 %v2428, %v2476
        %v2478 = vpop.f32.mrf.mxu0
        %v2479 = vadd.f32 %v2430, %v2478
        %2480 = vmatmul.bf16.gmra.mxu0 %v1819
        %v2481 = vpop.f32.mrf.mxu0
        %v2482 = vadd.f32 %v2433, %v2481
        %v2483 = vpop.f32.mrf.mxu0
        %v2484 = vadd.f32 %v2435, %v2483
        %2485 = vmatmul.bf16.gmra.mxu0 %v1821
        %v2486 = vpop.f32.mrf.mxu0
        %v2487 = vadd.f32 %v2438, %v2486
        %v2488 = vpop.f32.mrf.mxu0
        %v2489 = vadd.f32 %v2440, %v2488
        %2490 = vmatmul.bf16.gmra.mxu0 %v1823
        %v2491 = vpop.f32.mrf.mxu0
        %v2492 = vadd.f32 %v2443, %v2491
        %v2493 = vpop.f32.mrf.mxu0
        %v2494 = vadd.f32 %v2445, %v2493
        %2495 = vmatmul.bf16.gmra.mxu0 %v1825
        %v2496 = vpop.f32.mrf.mxu0
        %v2497 = vadd.f32 %v2448, %v2496
        %v2498 = vpop.f32.mrf.mxu0
        %v2499 = vadd.f32 %v2450, %v2498
        %2500 = vmatmul.bf16.gmra.mxu0 %v1827
        %v2501 = vpop.f32.mrf.mxu0
        %v2502 = vadd.f32 %v2453, %v2501
        %v2503 = vpop.f32.mrf.mxu0
        %v2504 = vadd.f32 %v2455, %v2503
        %2505 = vdwg.mxu0
        %2506 = vmatpush.bf16.msra.mxu0 %v2115
        %2507 = vmatpush.bf16.msra.mxu0 %v2111
        %2508 = vmatpush.bf16.msra.mxu0 %v2107
        %2509 = vmatpush.bf16.msra.mxu0 %v2103
        %2510 = vmatpush.bf16.msra.mxu0 %v2099
        %2511 = vmatpush.bf16.msra.mxu0 %v2095
        %2512 = vmatpush.bf16.msra.mxu0 %v2091
        %2513 = vmatpush.bf16.msra.mxu0 %v2087
        %2514 = vmatmul.bf16.gmra.mxu0 %v1812
        %v2515 = vpop.f32.mrf.mxu0
        %v2516 = vadd.f32 1.0, %v2515
        %v2517 = vpop.f32.mrf.mxu0
        %v2518 = vadd.f32 1.0, %v2517
        %2519 = vmatmul.bf16.gmra.mxu0 %v1814
        %v2520 = vpop.f32.mrf.mxu0
        %v2521 = vadd.f32 1.0, %v2520
        %v2522 = vpop.f32.mrf.mxu0
        %v2523 = vadd.f32 1.0, %v2522
        %2524 = vmatmul.bf16.gmra.mxu0 %v1816
        %v2525 = vpop.f32.mrf.mxu0
        %v2526 = vadd.f32 1.0, %v2525
        %v2527 = vpop.f32.mrf.mxu0
        %v2528 = vadd.f32 1.0, %v2527
        %2529 = vmatmul.bf16.gmra.mxu0 %v1818
        %v2530 = vpop.f32.mrf.mxu0
        %v2531 = vadd.f32 1.0, %v2530
        %v2532 = vpop.f32.mrf.mxu0
        %v2533 = vadd.f32 1.0, %v2532
        %2534 = vmatmul.bf16.gmra.mxu0 %v1820
        %v2535 = vpop.f32.mrf.mxu0
        %v2536 = vadd.f32 1.0, %v2535
        %v2537 = vpop.f32.mrf.mxu0
        %v2538 = vadd.f32 1.0, %v2537
        %2539 = vmatmul.bf16.gmra.mxu0 %v1822
        %v2540 = vpop.f32.mrf.mxu0
        %v2541 = vadd.f32 1.0, %v2540
        %v2542 = vpop.f32.mrf.mxu0
        %v2543 = vadd.f32 1.0, %v2542
        %2544 = vmatmul.bf16.gmra.mxu0 %v1824
        %v2545 = vpop.f32.mrf.mxu0
        %v2546 = vadd.f32 1.0, %v2545
        %v2547 = vpop.f32.mrf.mxu0
        %v2548 = vadd.f32 1.0, %v2547
        %2549 = vmatmul.bf16.gmra.mxu0 %v1826
        %v2550 = vpop.f32.mrf.mxu0
        %v2551 = vadd.f32 1.0, %v2550
        %v2552 = vpop.f32.mrf.mxu0
        %v2553 = vadd.f32 1.0, %v2552
        %2554 = vdwg.mxu0
        %2555 = vmatpush.bf16.msra.mxu0 %v2147
        %2556 = vmatpush.bf16.msra.mxu0 %v2143
        %2557 = vmatpush.bf16.msra.mxu0 %v2139
        %2558 = vmatpush.bf16.msra.mxu0 %v2135
        %2559 = vmatpush.bf16.msra.mxu0 %v2131
        %2560 = vmatpush.bf16.msra.mxu0 %v2127
        %2561 = vmatpush.bf16.msra.mxu0 %v2123
        %2562 = vmatpush.bf16.msra.mxu0 %v2119
        %2563 = vmatmul.bf16.gmra.mxu0 %v1813
        %v2564 = vpop.f32.mrf.mxu0
        %v2565 = vadd.f32 %v2516, %v2564
        %v2566 = vpop.f32.mrf.mxu0
        %v2567 = vadd.f32 %v2518, %v2566
        %2568 = vmatmul.bf16.gmra.mxu0 %v1815
        %v2569 = vpop.f32.mrf.mxu0
        %v2570 = vadd.f32 %v2521, %v2569
        %v2571 = vpop.f32.mrf.mxu0
        %v2572 = vadd.f32 %v2523, %v2571
        %2573 = vmatmul.bf16.gmra.mxu0 %v1817
        %v2574 = vpop.f32.mrf.mxu0
        %v2575 = vadd.f32 %v2526, %v2574
        %v2576 = vpop.f32.mrf.mxu0
        %v2577 = vadd.f32 %v2528, %v2576
        %2578 = vmatmul.bf16.gmra.mxu0 %v1819
        %v2579 = vpop.f32.mrf.mxu0
        %v2580 = vadd.f32 %v2531, %v2579
        %v2581 = vpop.f32.mrf.mxu0
        %v2582 = vadd.f32 %v2533, %v2581
        %2583 = vmatmul.bf16.gmra.mxu0 %v1821
        %v2584 = vpop.f32.mrf.mxu0
        %v2585 = vadd.f32 %v2536, %v2584
        %v2586 = vpop.f32.mrf.mxu0
        %v2587 = vadd.f32 %v2538, %v2586
        %2588 = vmatmul.bf16.gmra.mxu0 %v1823
        %v2589 = vpop.f32.mrf.mxu0
        %v2590 = vadd.f32 %v2541, %v2589
        %v2591 = vpop.f32.mrf.mxu0
        %v2592 = vadd.f32 %v2543, %v2591
        %2593 = vmatmul.bf16.gmra.mxu0 %v1825
        %v2594 = vpop.f32.mrf.mxu0
        %v2595 = vadd.f32 %v2546, %v2594
        %v2596 = vpop.f32.mrf.mxu0
        %v2597 = vadd.f32 %v2548, %v2596
        %2598 = vmatmul.bf16.gmra.mxu0 %v1827
        %v2599 = vpop.f32.mrf.mxu0
        %v2600 = vadd.f32 %v2551, %v2599
        %v2601 = vpop.f32.mrf.mxu0
        %v2602 = vadd.f32 %v2553, %v2601
        %2603 = vdwg.mxu0
        %v2604 = vmul.f32 %v1479, %v2271
        %v2605 = vmul.f32 %v1577, %v2369
        %v2606 = vmul.f32 %v1675, %v2467
        %v2607 = vmul.f32 %v1773, %v2565
        %v2608 = vmul.f32 %v1481, %v2273
        %v2609 = vmul.f32 %v1579, %v2371
        %v2610 = vmul.f32 %v1677, %v2469
        %v2611 = vmul.f32 %v1775, %v2567
        %v2612 = vmul.f32 %v1484, %v2276
        %v2613 = vmul.f32 %v1582, %v2374
        %v2614 = vmul.f32 %v1680, %v2472
        %v2615 = vmul.f32 %v1778, %v2570
        %v2616 = vmul.f32 %v1486, %v2278
        %v2617 = vmul.f32 %v1584, %v2376
        %v2618 = vmul.f32 %v1682, %v2474
        %v2619 = vmul.f32 %v1780, %v2572
        %v2620 = vmul.f32 %v1489, %v2281
        %v2621 = vmul.f32 %v1587, %v2379
        %v2622 = vmul.f32 %v1685, %v2477
        %v2623 = vmul.f32 %v1783, %v2575
        %v2624 = vmul.f32 %v1491, %v2283
        %v2625 = vmul.f32 %v1589, %v2381
        %v2626 = vmul.f32 %v1687, %v2479
        %v2627 = vmul.f32 %v1785, %v2577
        %v2628 = vmul.f32 %v1494, %v2286
        %v2629 = vmul.f32 %v1592, %v2384
        %v2630 = vmul.f32 %v1690, %v2482
        %v2631 = vmul.f32 %v1788, %v2580
        %v2632 = vmul.f32 %v1496, %v2288
        %v2633 = vmul.f32 %v1594, %v2386
        %v2634 = vmul.f32 %v1692, %v2484
        %v2635 = vmul.f32 %v1790, %v2582
        %v2636 = vmul.f32 %v1499, %v2291
        %v2637 = vmul.f32 %v1597, %v2389
        %v2638 = vmul.f32 %v1695, %v2487
        %v2639 = vmul.f32 %v1793, %v2585
        %v2640 = vmul.f32 %v1501, %v2293
        %v2641 = vmul.f32 %v1599, %v2391
        %v2642 = vmul.f32 %v1697, %v2489
        %v2643 = vmul.f32 %v1795, %v2587
        %v2644 = vmul.f32 %v1504, %v2296
        %v2645 = vmul.f32 %v1602, %v2394
        %v2646 = vmul.f32 %v1700, %v2492
        %v2647 = vmul.f32 %v1798, %v2590
        %v2648 = vmul.f32 %v1506, %v2298
        %v2649 = vmul.f32 %v1604, %v2396
        %v2650 = vmul.f32 %v1702, %v2494
        %v2651 = vmul.f32 %v1800, %v2592
        %v2652 = vmul.f32 %v1509, %v2301
        %v2653 = vmul.f32 %v1607, %v2399
        %v2654 = vmul.f32 %v1705, %v2497
        %v2655 = vmul.f32 %v1803, %v2595
        %v2656 = vmul.f32 %v1511, %v2303
        %v2657 = vmul.f32 %v1609, %v2401
        %v2658 = vmul.f32 %v1707, %v2499
        %v2659 = vmul.f32 %v1805, %v2597
        %v2660 = vmul.f32 %v1514, %v2306
        %v2661 = vmul.f32 %v1612, %v2404
        %v2662 = vmul.f32 %v1710, %v2502
        %v2663 = vmul.f32 %v1808, %v2600
        %v2664 = vmul.f32 %v1516, %v2308
        %v2665 = vmul.f32 %v1614, %v2406
        %v2666 = vmul.f32 %v1712, %v2504
        %v2667 = vmul.f32 %v1810, %v2602
        %v2668 = vsub.f32 0.0, %v2604
        %v2669 = vsub.f32 0.0, %v2605
        %v2670 = vsub.f32 0.0, %v2606
        %v2671 = vsub.f32 0.0, %v2607
        %v2672 = vsub.f32 0.0, %v2608
        %v2673 = vsub.f32 0.0, %v2609
        %v2674 = vsub.f32 0.0, %v2610
        %v2675 = vsub.f32 0.0, %v2611
        %v2676 = vsub.f32 0.0, %v2612
        %v2677 = vsub.f32 0.0, %v2613
        %v2678 = vsub.f32 0.0, %v2614
        %v2679 = vsub.f32 0.0, %v2615
        %v2680 = vsub.f32 0.0, %v2616
        %v2681 = vsub.f32 0.0, %v2617
        %v2682 = vsub.f32 0.0, %v2618
        %v2683 = vsub.f32 0.0, %v2619
        %v2684 = vsub.f32 0.0, %v2620
        %v2685 = vsub.f32 0.0, %v2621
        %v2686 = vsub.f32 0.0, %v2622
        %v2687 = vsub.f32 0.0, %v2623
        %v2688 = vsub.f32 0.0, %v2624
        %v2689 = vsub.f32 0.0, %v2625
        %v2690 = vsub.f32 0.0, %v2626
        %v2691 = vsub.f32 0.0, %v2627
        %v2692 = vsub.f32 0.0, %v2628
        %v2693 = vsub.f32 0.0, %v2629
        %v2694 = vsub.f32 0.0, %v2630
        %v2695 = vsub.f32 0.0, %v2631
        %v2696 = vsub.f32 0.0, %v2632
        %v2697 = vsub.f32 0.0, %v2633
        %v2698 = vsub.f32 0.0, %v2634
        %v2699 = vsub.f32 0.0, %v2635
        %v2700 = vsub.f32 0.0, %v2636
        %v2701 = vsub.f32 0.0, %v2637
        %v2702 = vsub.f32 0.0, %v2638
        %v2703 = vsub.f32 0.0, %v2639
        %v2704 = vsub.f32 0.0, %v2640
        %v2705 = vsub.f32 0.0, %v2641
        %v2706 = vsub.f32 0.0, %v2642
        %v2707 = vsub.f32 0.0, %v2643
        %v2708 = vsub.f32 0.0, %v2644
        %v2709 = vsub.f32 0.0, %v2645
        %v2710 = vsub.f32 0.0, %v2646
        %v2711 = vsub.f32 0.0, %v2647
        %v2712 = vsub.f32 0.0, %v2648
        %v2713 = vsub.f32 0.0, %v2649
        %v2714 = vsub.f32 0.0, %v2650
        %v2715 = vsub.f32 0.0, %v2651
        %v2716 = vsub.f32 0.0, %v2652
        %v2717 = vsub.f32 0.0, %v2653
        %v2718 = vsub.f32 0.0, %v2654
        %v2719 = vsub.f32 0.0, %v2655
        %v2720 = vsub.f32 0.0, %v2656
        %v2721 = vsub.f32 0.0, %v2657
        %v2722 = vsub.f32 0.0, %v2658
        %v2723 = vsub.f32 0.0, %v2659
        %v2724 = vsub.f32 0.0, %v2660
        %v2725 = vsub.f32 0.0, %v2661
        %v2726 = vsub.f32 0.0, %v2662
        %v2727 = vsub.f32 0.0, %v2663
        %v2728 = vsub.f32 0.0, %v2664
        %v2729 = vsub.f32 0.0, %v2665
        %v2730 = vsub.f32 0.0, %v2666
        %v2731 = vsub.f32 0.0, %v2667
        %v2732 = vmul.f32 %v2668, 1.442695
        %v2733 = vpow.pop %v2732
        %v2734 = vmul.f32 %v2669, 1.442695
        %v2735 = vpow.pop %v2734
        %v2736 = vmul.f32 %v2670, 1.442695
        %v2737 = vpow.pop %v2736
        %v2738 = vmul.f32 %v2671, 1.442695
        %v2739 = vpow.pop %v2738
        %v2740 = vmul.f32 %v2672, 1.442695
        %v2741 = vpow.pop %v2740
        %v2742 = vmul.f32 %v2673, 1.442695
        %v2743 = vpow.pop %v2742
        %v2744 = vmul.f32 %v2674, 1.442695
        %v2745 = vpow.pop %v2744
        %v2746 = vmul.f32 %v2675, 1.442695
        %v2747 = vpow.pop %v2746
        %v2748 = vmul.f32 %v2676, 1.442695
        %v2749 = vpow.pop %v2748
        %v2750 = vmul.f32 %v2677, 1.442695
        %v2751 = vpow.pop %v2750
        %v2752 = vmul.f32 %v2678, 1.442695
        %v2753 = vpow.pop %v2752
        %v2754 = vmul.f32 %v2679, 1.442695
        %v2755 = vpow.pop %v2754
        %v2756 = vmul.f32 %v2680, 1.442695
        %v2757 = vpow.pop %v2756
        %v2758 = vmul.f32 %v2681, 1.442695
        %v2759 = vpow.pop %v2758
        %v2760 = vmul.f32 %v2682, 1.442695
        %v2761 = vpow.pop %v2760
        %v2762 = vmul.f32 %v2683, 1.442695
        %v2763 = vpow.pop %v2762
        %v2764 = vmul.f32 %v2684, 1.442695
        %v2765 = vpow.pop %v2764
        %v2766 = vmul.f32 %v2685, 1.442695
        %v2767 = vpow.pop %v2766
        %v2768 = vmul.f32 %v2686, 1.442695
        %v2769 = vpow.pop %v2768
        %v2770 = vmul.f32 %v2687, 1.442695
        %v2771 = vpow.pop %v2770
        %v2772 = vmul.f32 %v2688, 1.442695
        %v2773 = vpow.pop %v2772
        %v2774 = vmul.f32 %v2689, 1.442695
        %v2775 = vpow.pop %v2774
        %v2776 = vmul.f32 %v2690, 1.442695
        %v2777 = vpow.pop %v2776
        %v2778 = vmul.f32 %v2691, 1.442695
        %v2779 = vpow.pop %v2778
        %v2780 = vmul.f32 %v2692, 1.442695
        %v2781 = vpow.pop %v2780
        %v2782 = vmul.f32 %v2693, 1.442695
        %v2783 = vpow.pop %v2782
        %v2784 = vmul.f32 %v2694, 1.442695
        %v2785 = vpow.pop %v2784
        %v2786 = vmul.f32 %v2695, 1.442695
        %v2787 = vpow.pop %v2786
        %v2788 = vmul.f32 %v2696, 1.442695
        %v2789 = vpow.pop %v2788
        %v2790 = vmul.f32 %v2697, 1.442695
        %v2791 = vpow.pop %v2790
        %v2792 = vmul.f32 %v2698, 1.442695
        %v2793 = vpow.pop %v2792
        %v2794 = vmul.f32 %v2699, 1.442695
        %v2795 = vpow.pop %v2794
        %v2796 = vmul.f32 %v2700, 1.442695
        %v2797 = vpow.pop %v2796
        %v2798 = vmul.f32 %v2701, 1.442695
        %v2799 = vpow.pop %v2798
        %v2800 = vmul.f32 %v2702, 1.442695
        %v2801 = vpow.pop %v2800
        %v2802 = vmul.f32 %v2703, 1.442695
        %v2803 = vpow.pop %v2802
        %v2804 = vmul.f32 %v2704, 1.442695
        %v2805 = vpow.pop %v2804
        %v2806 = vmul.f32 %v2705, 1.442695
        %v2807 = vpow.pop %v2806
        %v2808 = vmul.f32 %v2706, 1.442695
        %v2809 = vpow.pop %v2808
        %v2810 = vmul.f32 %v2707, 1.442695
        %v2811 = vpow.pop %v2810
        %v2812 = vmul.f32 %v2708, 1.442695
        %v2813 = vpow.pop %v2812
        %v2814 = vmul.f32 %v2709, 1.442695
        %v2815 = vpow.pop %v2814
        %v2816 = vmul.f32 %v2710, 1.442695
        %v2817 = vpow.pop %v2816
        %v2818 = vmul.f32 %v2711, 1.442695
        %v2819 = vpow.pop %v2818
        %v2820 = vmul.f32 %v2712, 1.442695
        %v2821 = vpow.pop %v2820
        %v2822 = vmul.f32 %v2713, 1.442695
        %v2823 = vpow.pop %v2822
        %v2824 = vmul.f32 %v2714, 1.442695
        %v2825 = vpow.pop %v2824
        %v2826 = vmul.f32 %v2715, 1.442695
        %v2827 = vpow.pop %v2826
        %v2828 = vmul.f32 %v2716, 1.442695
        %v2829 = vpow.pop %v2828
        %v2830 = vmul.f32 %v2717, 1.442695
        %v2831 = vpow.pop %v2830
        %v2832 = vmul.f32 %v2718, 1.442695
        %v2833 = vpow.pop %v2832
        %v2834 = vmul.f32 %v2719, 1.442695
        %v2835 = vpow.pop %v2834
        %v2836 = vmul.f32 %v2720, 1.442695
        %v2837 = vpow.pop %v2836
        %v2838 = vmul.f32 %v2721, 1.442695
        %v2839 = vpow.pop %v2838
        %v2840 = vmul.f32 %v2722, 1.442695
        %v2841 = vpow.pop %v2840
        %v2842 = vmul.f32 %v2723, 1.442695
        %v2843 = vpow.pop %v2842
        %v2844 = vmul.f32 %v2724, 1.442695
        %v2845 = vpow.pop %v2844
        %v2846 = vmul.f32 %v2725, 1.442695
        %v2847 = vpow.pop %v2846
        %v2848 = vmul.f32 %v2726, 1.442695
        %v2849 = vpow.pop %v2848
        %v2850 = vmul.f32 %v2727, 1.442695
        %v2851 = vpow.pop %v2850
        %v2852 = vmul.f32 %v2728, 1.442695
        %v2853 = vpow.pop %v2852
        %v2854 = vmul.f32 %v2729, 1.442695
        %v2855 = vpow.pop %v2854
        %v2856 = vmul.f32 %v2730, 1.442695
        %v2857 = vpow.pop %v2856
        %v2858 = vmul.f32 %v2731, 1.442695
        %v2859 = vpow.pop %v2858
        %v2860 = vadd.f32 %v2733, 1.0
        %v2861 = vadd.f32 %v2735, 1.0
        %v2862 = vadd.f32 %v2737, 1.0
        %v2863 = vadd.f32 %v2739, 1.0
        %v2864 = vadd.f32 %v2741, 1.0
        %v2865 = vadd.f32 %v2743, 1.0
        %v2866 = vadd.f32 %v2745, 1.0
        %v2867 = vadd.f32 %v2747, 1.0
        %v2868 = vadd.f32 %v2749, 1.0
        %v2869 = vadd.f32 %v2751, 1.0
        %v2870 = vadd.f32 %v2753, 1.0
        %v2871 = vadd.f32 %v2755, 1.0
        %v2872 = vadd.f32 %v2757, 1.0
        %v2873 = vadd.f32 %v2759, 1.0
        %v2874 = vadd.f32 %v2761, 1.0
        %v2875 = vadd.f32 %v2763, 1.0
        %v2876 = vadd.f32 %v2765, 1.0
        %v2877 = vadd.f32 %v2767, 1.0
        %v2878 = vadd.f32 %v2769, 1.0
        %v2879 = vadd.f32 %v2771, 1.0
        %v2880 = vadd.f32 %v2773, 1.0
        %v2881 = vadd.f32 %v2775, 1.0
        %v2882 = vadd.f32 %v2777, 1.0
        %v2883 = vadd.f32 %v2779, 1.0
        %v2884 = vadd.f32 %v2781, 1.0
        %v2885 = vadd.f32 %v2783, 1.0
        %v2886 = vadd.f32 %v2785, 1.0
        %v2887 = vadd.f32 %v2787, 1.0
        %v2888 = vadd.f32 %v2789, 1.0
        %v2889 = vadd.f32 %v2791, 1.0
        %v2890 = vadd.f32 %v2793, 1.0
        %v2891 = vadd.f32 %v2795, 1.0
        %v2892 = vadd.f32 %v2797, 1.0
        %v2893 = vadd.f32 %v2799, 1.0
        %v2894 = vadd.f32 %v2801, 1.0
        %v2895 = vadd.f32 %v2803, 1.0
        %v2896 = vadd.f32 %v2805, 1.0
        %v2897 = vadd.f32 %v2807, 1.0
        %v2898 = vadd.f32 %v2809, 1.0
        %v2899 = vadd.f32 %v2811, 1.0
        %v2900 = vadd.f32 %v2813, 1.0
        %v2901 = vadd.f32 %v2815, 1.0
        %v2902 = vadd.f32 %v2817, 1.0
        %v2903 = vadd.f32 %v2819, 1.0
        %v2904 = vadd.f32 %v2821, 1.0
        %v2905 = vadd.f32 %v2823, 1.0
        %v2906 = vadd.f32 %v2825, 1.0
        %v2907 = vadd.f32 %v2827, 1.0
        %v2908 = vadd.f32 %v2829, 1.0
        %v2909 = vadd.f32 %v2831, 1.0
        %v2910 = vadd.f32 %v2833, 1.0
        %v2911 = vadd.f32 %v2835, 1.0
        %v2912 = vadd.f32 %v2837, 1.0
        %v2913 = vadd.f32 %v2839, 1.0
        %v2914 = vadd.f32 %v2841, 1.0
        %v2915 = vadd.f32 %v2843, 1.0
        %v2916 = vadd.f32 %v2845, 1.0
        %v2917 = vadd.f32 %v2847, 1.0
        %v2918 = vadd.f32 %v2849, 1.0
        %v2919 = vadd.f32 %v2851, 1.0
        %v2920 = vadd.f32 %v2853, 1.0
        %v2921 = vadd.f32 %v2855, 1.0
        %v2922 = vadd.f32 %v2857, 1.0
        %v2923 = vadd.f32 %v2859, 1.0
        %v2924 = vrcp.pop %v2860
        %v2925 = vrcp.pop %v2861
        %v2926 = vrcp.pop %v2862
        %v2927 = vrcp.pop %v2863
        %v2928 = vrcp.pop %v2864
        %v2929 = vrcp.pop %v2865
        %v2930 = vrcp.pop %v2866
        %v2931 = vrcp.pop %v2867
        %v2932 = vrcp.pop %v2868
        %v2933 = vrcp.pop %v2869
        %v2934 = vrcp.pop %v2870
        %v2935 = vrcp.pop %v2871
        %v2936 = vrcp.pop %v2872
        %v2937 = vrcp.pop %v2873
        %v2938 = vrcp.pop %v2874
        %v2939 = vrcp.pop %v2875
        %v2940 = vrcp.pop %v2876
        %v2941 = vrcp.pop %v2877
        %v2942 = vrcp.pop %v2878
        %v2943 = vrcp.pop %v2879
        %v2944 = vrcp.pop %v2880
        %v2945 = vrcp.pop %v2881
        %v2946 = vrcp.pop %v2882
        %v2947 = vrcp.pop %v2883
        %v2948 = vrcp.pop %v2884
        %v2949 = vrcp.pop %v2885
        %v2950 = vrcp.pop %v2886
        %v2951 = vrcp.pop %v2887
        %v2952 = vrcp.pop %v2888
        %v2953 = vrcp.pop %v2889
        %v2954 = vrcp.pop %v2890
        %v2955 = vrcp.pop %v2891
        %v2956 = vrcp.pop %v2892
        %v2957 = vrcp.pop %v2893
        %v2958 = vrcp.pop %v2894
        %v2959 = vrcp.pop %v2895
        %v2960 = vrcp.pop %v2896
        %v2961 = vrcp.pop %v2897
        %v2962 = vrcp.pop %v2898
        %v2963 = vrcp.pop %v2899
        %v2964 = vrcp.pop %v2900
        %v2965 = vrcp.pop %v2901
        %v2966 = vrcp.pop %v2902
        %v2967 = vrcp.pop %v2903
        %v2968 = vrcp.pop %v2904
        %v2969 = vrcp.pop %v2905
        %v2970 = vrcp.pop %v2906
        %v2971 = vrcp.pop %v2907
        %v2972 = vrcp.pop %v2908
        %v2973 = vrcp.pop %v2909
        %v2974 = vrcp.pop %v2910
        %v2975 = vrcp.pop %v2911
        %v2976 = vrcp.pop %v2912
        %v2977 = vrcp.pop %v2913
        %v2978 = vrcp.pop %v2914
        %v2979 = vrcp.pop %v2915
        %v2980 = vrcp.pop %v2916
        %v2981 = vrcp.pop %v2917
        %v2982 = vrcp.pop %v2918
        %v2983 = vrcp.pop %v2919
        %v2984 = vrcp.pop %v2920
        %v2985 = vrcp.pop %v2921
        %v2986 = vrcp.pop %v2922
        %v2987 = vrcp.pop %v2923
        %v2988 = vmul.f32 %v2604, %v2924
        %v2989 = vmul.f32 %v2605, %v2925
        %v2990 = vmul.f32 %v2606, %v2926
        %v2991 = vmul.f32 %v2607, %v2927
        %v2992 = vmul.f32 %v2608, %v2928
        %v2993 = vmul.f32 %v2609, %v2929
        %v2994 = vmul.f32 %v2610, %v2930
        %v2995 = vmul.f32 %v2611, %v2931
        %v2996 = vmul.f32 %v2612, %v2932
        %v2997 = vmul.f32 %v2613, %v2933
        %v2998 = vmul.f32 %v2614, %v2934
        %v2999 = vmul.f32 %v2615, %v2935
        %v3000 = vmul.f32 %v2616, %v2936
        %v3001 = vmul.f32 %v2617, %v2937
        %v3002 = vmul.f32 %v2618, %v2938
        %v3003 = vmul.f32 %v2619, %v2939
        %v3004 = vmul.f32 %v2620, %v2940
        %v3005 = vmul.f32 %v2621, %v2941
        %v3006 = vmul.f32 %v2622, %v2942
        %v3007 = vmul.f32 %v2623, %v2943
        %v3008 = vmul.f32 %v2624, %v2944
        %v3009 = vmul.f32 %v2625, %v2945
        %v3010 = vmul.f32 %v2626, %v2946
        %v3011 = vmul.f32 %v2627, %v2947
        %v3012 = vmul.f32 %v2628, %v2948
        %v3013 = vmul.f32 %v2629, %v2949
        %v3014 = vmul.f32 %v2630, %v2950
        %v3015 = vmul.f32 %v2631, %v2951
        %v3016 = vmul.f32 %v2632, %v2952
        %v3017 = vmul.f32 %v2633, %v2953
        %v3018 = vmul.f32 %v2634, %v2954
        %v3019 = vmul.f32 %v2635, %v2955
        %v3020 = vmul.f32 %v2636, %v2956
        %v3021 = vmul.f32 %v2637, %v2957
        %v3022 = vmul.f32 %v2638, %v2958
        %v3023 = vmul.f32 %v2639, %v2959
        %v3024 = vmul.f32 %v2640, %v2960
        %v3025 = vmul.f32 %v2641, %v2961
        %v3026 = vmul.f32 %v2642, %v2962
        %v3027 = vmul.f32 %v2643, %v2963
        %v3028 = vmul.f32 %v2644, %v2964
        %v3029 = vmul.f32 %v2645, %v2965
        %v3030 = vmul.f32 %v2646, %v2966
        %v3031 = vmul.f32 %v2647, %v2967
        %v3032 = vmul.f32 %v2648, %v2968
        %v3033 = vmul.f32 %v2649, %v2969
        %v3034 = vmul.f32 %v2650, %v2970
        %v3035 = vmul.f32 %v2651, %v2971
        %v3036 = vmul.f32 %v2652, %v2972
        %v3037 = vmul.f32 %v2653, %v2973
        %v3038 = vmul.f32 %v2654, %v2974
        %v3039 = vmul.f32 %v2655, %v2975
        %v3040 = vmul.f32 %v2656, %v2976
        %v3041 = vmul.f32 %v2657, %v2977
        %v3042 = vmul.f32 %v2658, %v2978
        %v3043 = vmul.f32 %v2659, %v2979
        %v3044 = vmul.f32 %v2660, %v2980
        %v3045 = vmul.f32 %v2661, %v2981
        %v3046 = vmul.f32 %v2662, %v2982
        %v3047 = vmul.f32 %v2663, %v2983
        %v3048 = vmul.f32 %v2664, %v2984
        %v3049 = vmul.f32 %v2665, %v2985
        %v3050 = vmul.f32 %v2666, %v2986
        %v3051 = vmul.f32 %v2667, %v2987
        %v3052 = vpack.c.bf16 %v2992, %v2988
        %v3053 = vpack.c.bf16 %v2993, %v2989
        %v3054 = vpack.c.bf16 %v2994, %v2990
        %v3055 = vpack.c.bf16 %v2995, %v2991
        %v3056 = vpack.c.bf16 %v3000, %v2996
        %v3057 = vpack.c.bf16 %v3001, %v2997
        %v3058 = vpack.c.bf16 %v3002, %v2998
        %v3059 = vpack.c.bf16 %v3003, %v2999
        %v3060 = vpack.c.bf16 %v3008, %v3004
        %v3061 = vpack.c.bf16 %v3009, %v3005
        %v3062 = vpack.c.bf16 %v3010, %v3006
        %v3063 = vpack.c.bf16 %v3011, %v3007
        %v3064 = vpack.c.bf16 %v3016, %v3012
        %v3065 = vpack.c.bf16 %v3017, %v3013
        %v3066 = vpack.c.bf16 %v3018, %v3014
        %v3067 = vpack.c.bf16 %v3019, %v3015
        %v3068 = vpack.c.bf16 %v3024, %v3020
        %v3069 = vpack.c.bf16 %v3025, %v3021
        %v3070 = vpack.c.bf16 %v3026, %v3022
        %v3071 = vpack.c.bf16 %v3027, %v3023
        %v3072 = vpack.c.bf16 %v3032, %v3028
        %v3073 = vpack.c.bf16 %v3033, %v3029
        %v3074 = vpack.c.bf16 %v3034, %v3030
        %v3075 = vpack.c.bf16 %v3035, %v3031
        %v3076 = vpack.c.bf16 %v3040, %v3036
        %v3077 = vpack.c.bf16 %v3041, %v3037
        %v3078 = vpack.c.bf16 %v3042, %v3038
        %v3079 = vpack.c.bf16 %v3043, %v3039
        %v3080 = vpack.c.bf16 %v3048, %v3044
        %v3081 = vpack.c.bf16 %v3049, %v3045
        %v3082 = vpack.c.bf16 %v3050, %v3046
        %v3083 = vpack.c.bf16 %v3051, %v3047
        %v3084 = vld [vmem:[#allocation10] sm:$0xff]
        %v3085 = vld [vmem:[#allocation10 + $0x8] sm:$0xff]
        %v3086 = vld [vmem:[#allocation10 + $0x10] sm:$0xff]
        %v3087 = vld [vmem:[#allocation10 + $0x18] sm:$0xff]
        %v3088 = vld [vmem:[#allocation10 + $0x20] sm:$0xff]
        %v3089 = vld [vmem:[#allocation10 + $0x28] sm:$0xff]
        %v3090 = vld [vmem:[#allocation10 + $0x30] sm:$0xff]
        %v3091 = vld [vmem:[#allocation10 + $0x38] sm:$0xff]
        %v3092 = vld [vmem:[#allocation10 + $0x40] sm:$0xff]
        %v3093 = vld [vmem:[#allocation10 + $0x48] sm:$0xff]
        %v3094 = vld [vmem:[#allocation10 + $0x50] sm:$0xff]
        %v3095 = vld [vmem:[#allocation10 + $0x58] sm:$0xff]
        %v3096 = vld [vmem:[#allocation10 + $0x60] sm:$0xff]
        %v3097 = vld [vmem:[#allocation10 + $0x68] sm:$0xff]
        %v3098 = vld [vmem:[#allocation10 + $0x70] sm:$0xff]
        %v3099 = vld [vmem:[#allocation10 + $0x78] sm:$0xff]
        %v3100 = vld [vmem:[#allocation10 + $0x80] sm:$0xff]
        %v3101 = vld [vmem:[#allocation10 + $0x88] sm:$0xff]
        %v3102 = vld [vmem:[#allocation10 + $0x90] sm:$0xff]
        %v3103 = vld [vmem:[#allocation10 + $0x98] sm:$0xff]
        %v3104 = vld [vmem:[#allocation10 + $0xa0] sm:$0xff]
        %v3105 = vld [vmem:[#allocation10 + $0xa8] sm:$0xff]
        %v3106 = vld [vmem:[#allocation10 + $0xb0] sm:$0xff]
        %v3107 = vld [vmem:[#allocation10 + $0xb8] sm:$0xff]
        %v3108 = vld [vmem:[#allocation10 + $0xc0] sm:$0xff]
        %v3109 = vld [vmem:[#allocation10 + $0xc8] sm:$0xff]
        %v3110 = vld [vmem:[#allocation10 + $0xd0] sm:$0xff]
        %v3111 = vld [vmem:[#allocation10 + $0xd8] sm:$0xff]
        %v3112 = vld [vmem:[#allocation10 + $0xe0] sm:$0xff]
        %v3113 = vld [vmem:[#allocation10 + $0xe8] sm:$0xff]
        %v3114 = vld [vmem:[#allocation10 + $0xf0] sm:$0xff]
        %v3115 = vld [vmem:[#allocation10 + $0xf8] sm:$0xff]
        %v3116 = vld [vmem:[#allocation10 + $0x100] sm:$0xff]
        %v3117 = vld [vmem:[#allocation10 + $0x108] sm:$0xff]
        %v3118 = vld [vmem:[#allocation10 + $0x110] sm:$0xff]
        %v3119 = vld [vmem:[#allocation10 + $0x118] sm:$0xff]
        %v3120 = vld [vmem:[#allocation10 + $0x120] sm:$0xff]
        %v3121 = vld [vmem:[#allocation10 + $0x128] sm:$0xff]
        %v3122 = vld [vmem:[#allocation10 + $0x130] sm:$0xff]
        %v3123 = vld [vmem:[#allocation10 + $0x138] sm:$0xff]
        %v3124 = vld [vmem:[#allocation10 + $0x140] sm:$0xff]
        %v3125 = vld [vmem:[#allocation10 + $0x148] sm:$0xff]
        %v3126 = vld [vmem:[#allocation10 + $0x150] sm:$0xff]
        %v3127 = vld [vmem:[#allocation10 + $0x158] sm:$0xff]
        %v3128 = vld [vmem:[#allocation10 + $0x160] sm:$0xff]
        %v3129 = vld [vmem:[#allocation10 + $0x168] sm:$0xff]
        %v3130 = vld [vmem:[#allocation10 + $0x170] sm:$0xff]
        %v3131 = vld [vmem:[#allocation10 + $0x178] sm:$0xff]
        %v3132 = vld [vmem:[#allocation10 + $0x180] sm:$0xff]
        %v3133 = vld [vmem:[#allocation10 + $0x188] sm:$0xff]
        %v3134 = vld [vmem:[#allocation10 + $0x190] sm:$0xff]
        %v3135 = vld [vmem:[#allocation10 + $0x198] sm:$0xff]
        %v3136 = vld [vmem:[#allocation10 + $0x1a0] sm:$0xff]
        %v3137 = vld [vmem:[#allocation10 + $0x1a8] sm:$0xff]
        %v3138 = vld [vmem:[#allocation10 + $0x1b0] sm:$0xff]
        %v3139 = vld [vmem:[#allocation10 + $0x1b8] sm:$0xff]
        %v3140 = vld [vmem:[#allocation10 + $0x1c0] sm:$0xff]
        %v3141 = vld [vmem:[#allocation10 + $0x1c8] sm:$0xff]
        %v3142 = vld [vmem:[#allocation10 + $0x1d0] sm:$0xff]
        %v3143 = vld [vmem:[#allocation10 + $0x1d8] sm:$0xff]
        %v3144 = vld [vmem:[#allocation10 + $0x1e0] sm:$0xff]
        %v3145 = vld [vmem:[#allocation10 + $0x1e8] sm:$0xff]
        %v3146 = vld [vmem:[#allocation10 + $0x1f0] sm:$0xff]
        %v3147 = vld [vmem:[#allocation10 + $0x1f8] sm:$0xff]
        %v3212 = vunpack.c.l.b16 %v3084
        %v3213 = vunpack.c.h.b16 %v3084
        %v3214 = vunpack.c.l.b16 %v3085
        %v3215 = vunpack.c.h.b16 %v3085
        %v3216 = vunpack.c.l.b16 %v3086
        %v3217 = vunpack.c.h.b16 %v3086
        %v3218 = vunpack.c.l.b16 %v3087
        %v3219 = vunpack.c.h.b16 %v3087
        %v3220 = vunpack.c.l.b16 %v3088
        %v3221 = vunpack.c.h.b16 %v3088
        %v3222 = vunpack.c.l.b16 %v3089
        %v3223 = vunpack.c.h.b16 %v3089
        %v3224 = vunpack.c.l.b16 %v3090
        %v3225 = vunpack.c.h.b16 %v3090
        %v3226 = vunpack.c.l.b16 %v3091
        %v3227 = vunpack.c.h.b16 %v3091
        %v3228 = vunpack.c.l.b16 %v3092
        %v3229 = vunpack.c.h.b16 %v3092
        %v3230 = vunpack.c.l.b16 %v3093
        %v3231 = vunpack.c.h.b16 %v3093
        %v3232 = vunpack.c.l.b16 %v3094
        %v3233 = vunpack.c.h.b16 %v3094
        %v3234 = vunpack.c.l.b16 %v3095
        %v3235 = vunpack.c.h.b16 %v3095
        %v3236 = vunpack.c.l.b16 %v3096
        %v3237 = vunpack.c.h.b16 %v3096
        %v3238 = vunpack.c.l.b16 %v3097
        %v3239 = vunpack.c.h.b16 %v3097
        %v3240 = vunpack.c.l.b16 %v3098
        %v3241 = vunpack.c.h.b16 %v3098
        %v3242 = vunpack.c.l.b16 %v3099
        %v3243 = vunpack.c.h.b16 %v3099
        %v3244 = vunpack.c.l.b16 %v3100
        %v3245 = vunpack.c.h.b16 %v3100
        %v3246 = vunpack.c.l.b16 %v3101
        %v3247 = vunpack.c.h.b16 %v3101
        %v3248 = vunpack.c.l.b16 %v3102
        %v3249 = vunpack.c.h.b16 %v3102
        %v3250 = vunpack.c.l.b16 %v3103
        %v3251 = vunpack.c.h.b16 %v3103
        %v3252 = vunpack.c.l.b16 %v3104
        %v3253 = vunpack.c.h.b16 %v3104
        %v3254 = vunpack.c.l.b16 %v3105
        %v3255 = vunpack.c.h.b16 %v3105
        %v3256 = vunpack.c.l.b16 %v3106
        %v3257 = vunpack.c.h.b16 %v3106
        %v3258 = vunpack.c.l.b16 %v3107
        %v3259 = vunpack.c.h.b16 %v3107
        %v3260 = vunpack.c.l.b16 %v3108
        %v3261 = vunpack.c.h.b16 %v3108
        %v3262 = vunpack.c.l.b16 %v3109
        %v3263 = vunpack.c.h.b16 %v3109
        %v3264 = vunpack.c.l.b16 %v3110
        %v3265 = vunpack.c.h.b16 %v3110
        %v3266 = vunpack.c.l.b16 %v3111
        %v3267 = vunpack.c.h.b16 %v3111
        %v3268 = vunpack.c.l.b16 %v3112
        %v3269 = vunpack.c.h.b16 %v3112
        %v3270 = vunpack.c.l.b16 %v3113
        %v3271 = vunpack.c.h.b16 %v3113
        %v3272 = vunpack.c.l.b16 %v3114
        %v3273 = vunpack.c.h.b16 %v3114
        %v3274 = vunpack.c.l.b16 %v3115
        %v3275 = vunpack.c.h.b16 %v3115
        %v3276 = vunpack.c.l.b16 %v3116
        %v3277 = vunpack.c.h.b16 %v3116
        %v3278 = vunpack.c.l.b16 %v3117
        %v3279 = vunpack.c.h.b16 %v3117
        %v3280 = vunpack.c.l.b16 %v3118
        %v3281 = vunpack.c.h.b16 %v3118
        %v3282 = vunpack.c.l.b16 %v3119
        %v3283 = vunpack.c.h.b16 %v3119
        %v3284 = vunpack.c.l.b16 %v3120
        %v3285 = vunpack.c.h.b16 %v3120
        %v3286 = vunpack.c.l.b16 %v3121
        %v3287 = vunpack.c.h.b16 %v3121
        %v3288 = vunpack.c.l.b16 %v3122
        %v3289 = vunpack.c.h.b16 %v3122
        %v3290 = vunpack.c.l.b16 %v3123
        %v3291 = vunpack.c.h.b16 %v3123
        %v3292 = vunpack.c.l.b16 %v3124
        %v3293 = vunpack.c.h.b16 %v3124
        %v3294 = vunpack.c.l.b16 %v3125
        %v3295 = vunpack.c.h.b16 %v3125
        %v3296 = vunpack.c.l.b16 %v3126
        %v3297 = vunpack.c.h.b16 %v3126
        %v3298 = vunpack.c.l.b16 %v3127
        %v3299 = vunpack.c.h.b16 %v3127
        %v3300 = vunpack.c.l.b16 %v3128
        %v3301 = vunpack.c.h.b16 %v3128
        %v3302 = vunpack.c.l.b16 %v3129
        %v3303 = vunpack.c.h.b16 %v3129
        %v3304 = vunpack.c.l.b16 %v3130
        %v3305 = vunpack.c.h.b16 %v3130
        %v3306 = vunpack.c.l.b16 %v3131
        %v3307 = vunpack.c.h.b16 %v3131
        %v3308 = vunpack.c.l.b16 %v3132
        %v3309 = vunpack.c.h.b16 %v3132
        %v3310 = vunpack.c.l.b16 %v3133
        %v3311 = vunpack.c.h.b16 %v3133
        %v3312 = vunpack.c.l.b16 %v3134
        %v3313 = vunpack.c.h.b16 %v3134
        %v3314 = vunpack.c.l.b16 %v3135
        %v3315 = vunpack.c.h.b16 %v3135
        %v3316 = vunpack.c.l.b16 %v3136
        %v3317 = vunpack.c.h.b16 %v3136
        %v3318 = vunpack.c.l.b16 %v3137
        %v3319 = vunpack.c.h.b16 %v3137
        %v3320 = vunpack.c.l.b16 %v3138
        %v3321 = vunpack.c.h.b16 %v3138
        %v3322 = vunpack.c.l.b16 %v3139
        %v3323 = vunpack.c.h.b16 %v3139
        %v3324 = vunpack.c.l.b16 %v3140
        %v3325 = vunpack.c.h.b16 %v3140
        %v3326 = vunpack.c.l.b16 %v3141
        %v3327 = vunpack.c.h.b16 %v3141
        %v3328 = vunpack.c.l.b16 %v3142
        %v3329 = vunpack.c.h.b16 %v3142
        %v3330 = vunpack.c.l.b16 %v3143
        %v3331 = vunpack.c.h.b16 %v3143
        %v3332 = vunpack.c.l.b16 %v3144
        %v3333 = vunpack.c.h.b16 %v3144
        %v3334 = vunpack.c.l.b16 %v3145
        %v3335 = vunpack.c.h.b16 %v3145
        %v3336 = vunpack.c.l.b16 %v3146
        %v3337 = vunpack.c.h.b16 %v3146
        %v3338 = vunpack.c.l.b16 %v3147
        %v3339 = vunpack.c.h.b16 %v3147
        %v3340 = vpack.c.b16 %v3214, %v3212
        %v3341 = vpack.c.b16 %v3215, %v3213
        %v3342 = vpack.c.b16 %v3218, %v3216
        %v3343 = vpack.c.b16 %v3219, %v3217
        %v3344 = vpack.c.b16 %v3222, %v3220
        %v3345 = vpack.c.b16 %v3223, %v3221
        %v3346 = vpack.c.b16 %v3226, %v3224
        %v3347 = vpack.c.b16 %v3227, %v3225
        %v3348 = vpack.c.b16 %v3230, %v3228
        %v3349 = vpack.c.b16 %v3231, %v3229
        %v3350 = vpack.c.b16 %v3234, %v3232
        %v3351 = vpack.c.b16 %v3235, %v3233
        %v3352 = vpack.c.b16 %v3238, %v3236
        %v3353 = vpack.c.b16 %v3239, %v3237
        %v3354 = vpack.c.b16 %v3242, %v3240
        %v3355 = vpack.c.b16 %v3243, %v3241
        %v3356 = vpack.c.b16 %v3246, %v3244
        %v3357 = vpack.c.b16 %v3247, %v3245
        %v3358 = vpack.c.b16 %v3250, %v3248
        %v3359 = vpack.c.b16 %v3251, %v3249
        %v3360 = vpack.c.b16 %v3254, %v3252
        %v3361 = vpack.c.b16 %v3255, %v3253
        %v3362 = vpack.c.b16 %v3258, %v3256
        %v3363 = vpack.c.b16 %v3259, %v3257
        %v3364 = vpack.c.b16 %v3262, %v3260
        %v3365 = vpack.c.b16 %v3263, %v3261
        %v3366 = vpack.c.b16 %v3266, %v3264
        %v3367 = vpack.c.b16 %v3267, %v3265
        %v3368 = vpack.c.b16 %v3270, %v3268
        %v3369 = vpack.c.b16 %v3271, %v3269
        %v3370 = vpack.c.b16 %v3274, %v3272
        %v3371 = vpack.c.b16 %v3275, %v3273
        %v3372 = vpack.c.b16 %v3278, %v3276
        %v3373 = vpack.c.b16 %v3279, %v3277
        %v3374 = vpack.c.b16 %v3282, %v3280
        %v3375 = vpack.c.b16 %v3283, %v3281
        %v3376 = vpack.c.b16 %v3286, %v3284
        %v3377 = vpack.c.b16 %v3287, %v3285
        %v3378 = vpack.c.b16 %v3290, %v3288
        %v3379 = vpack.c.b16 %v3291, %v3289
        %v3380 = vpack.c.b16 %v3294, %v3292
        %v3381 = vpack.c.b16 %v3295, %v3293
        %v3382 = vpack.c.b16 %v3298, %v3296
        %v3383 = vpack.c.b16 %v3299, %v3297
        %v3384 = vpack.c.b16 %v3302, %v3300
        %v3385 = vpack.c.b16 %v3303, %v3301
        %v3386 = vpack.c.b16 %v3306, %v3304
        %v3387 = vpack.c.b16 %v3307, %v3305
        %v3388 = vpack.c.b16 %v3310, %v3308
        %v3389 = vpack.c.b16 %v3311, %v3309
        %v3390 = vpack.c.b16 %v3314, %v3312
        %v3391 = vpack.c.b16 %v3315, %v3313
        %v3392 = vpack.c.b16 %v3318, %v3316
        %v3393 = vpack.c.b16 %v3319, %v3317
        %v3394 = vpack.c.b16 %v3322, %v3320
        %v3395 = vpack.c.b16 %v3323, %v3321
        %v3396 = vpack.c.b16 %v3326, %v3324
        %v3397 = vpack.c.b16 %v3327, %v3325
        %v3398 = vpack.c.b16 %v3330, %v3328
        %v3399 = vpack.c.b16 %v3331, %v3329
        %v3400 = vpack.c.b16 %v3334, %v3332
        %v3401 = vpack.c.b16 %v3335, %v3333
        %v3402 = vpack.c.b16 %v3338, %v3336
        %v3403 = vpack.c.b16 %v3339, %v3337
        %3468 = vmatpush.bf16.msra.mxu0 %v3354
        %3469 = vmatpush.bf16.msra.mxu0 %v3352
        %3470 = vmatpush.bf16.msra.mxu0 %v3350
        %3471 = vmatpush.bf16.msra.mxu0 %v3348
        %3472 = vmatpush.bf16.msra.mxu0 %v3346
        %3473 = vmatpush.bf16.msra.mxu0 %v3344
        %3474 = vmatpush.bf16.msra.mxu0 %v3342
        %3475 = vmatpush.bf16.msra.mxu0 %v3340
        %3476 = vmatmul.bf16.gmra.mxu0 %v3052
        %v3477 = vpop.f32.mrf.mxu0
        %v3478 = vadd.f32 0.0, %v3477
        %v3479 = vpop.f32.mrf.mxu0
        %v3480 = vadd.f32 0.0, %v3479
        %3481 = vmatmul.bf16.gmra.mxu0 %v3056
        %v3482 = vpop.f32.mrf.mxu0
        %v3483 = vadd.f32 0.0, %v3482
        %v3484 = vpop.f32.mrf.mxu0
        %v3485 = vadd.f32 0.0, %v3484
        %3486 = vmatmul.bf16.gmra.mxu0 %v3060
        %v3487 = vpop.f32.mrf.mxu0
        %v3488 = vadd.f32 0.0, %v3487
        %v3489 = vpop.f32.mrf.mxu0
        %v3490 = vadd.f32 0.0, %v3489
        %3491 = vmatmul.bf16.gmra.mxu0 %v3064
        %v3492 = vpop.f32.mrf.mxu0
        %v3493 = vadd.f32 0.0, %v3492
        %v3494 = vpop.f32.mrf.mxu0
        %v3495 = vadd.f32 0.0, %v3494
        %3496 = vmatmul.bf16.gmra.mxu0 %v3068
        %v3497 = vpop.f32.mrf.mxu0
        %v3498 = vadd.f32 0.0, %v3497
        %v3499 = vpop.f32.mrf.mxu0
        %v3500 = vadd.f32 0.0, %v3499
        %3501 = vmatmul.bf16.gmra.mxu0 %v3072
        %v3502 = vpop.f32.mrf.mxu0
        %v3503 = vadd.f32 0.0, %v3502
        %v3504 = vpop.f32.mrf.mxu0
        %v3505 = vadd.f32 0.0, %v3504
        %3506 = vmatmul.bf16.gmra.mxu0 %v3076
        %v3507 = vpop.f32.mrf.mxu0
        %v3508 = vadd.f32 0.0, %v3507
        %v3509 = vpop.f32.mrf.mxu0
        %v3510 = vadd.f32 0.0, %v3509
        %3511 = vmatmul.bf16.gmra.mxu0 %v3080
        %v3512 = vpop.f32.mrf.mxu0
        %v3513 = vadd.f32 0.0, %v3512
        %v3514 = vpop.f32.mrf.mxu0
        %v3515 = vadd.f32 0.0, %v3514
        %3516 = vdwg.mxu0
        %3517 = vmatpush.bf16.msra.mxu0 %v3370
        %3518 = vmatpush.bf16.msra.mxu0 %v3368
        %3519 = vmatpush.bf16.msra.mxu0 %v3366
        %3520 = vmatpush.bf16.msra.mxu0 %v3364
        %3521 = vmatpush.bf16.msra.mxu0 %v3362
        %3522 = vmatpush.bf16.msra.mxu0 %v3360
        %3523 = vmatpush.bf16.msra.mxu0 %v3358
        %3524 = vmatpush.bf16.msra.mxu0 %v3356
        %3525 = vmatmul.bf16.gmra.mxu0 %v3053
        %v3526 = vpop.f32.mrf.mxu0
        %v3527 = vadd.f32 %v3478, %v3526
        %v3528 = vpop.f32.mrf.mxu0
        %v3529 = vadd.f32 %v3480, %v3528
        %3530 = vmatmul.bf16.gmra.mxu0 %v3057
        %v3531 = vpop.f32.mrf.mxu0
        %v3532 = vadd.f32 %v3483, %v3531
        %v3533 = vpop.f32.mrf.mxu0
        %v3534 = vadd.f32 %v3485, %v3533
        %3535 = vmatmul.bf16.gmra.mxu0 %v3061
        %v3536 = vpop.f32.mrf.mxu0
        %v3537 = vadd.f32 %v3488, %v3536
        %v3538 = vpop.f32.mrf.mxu0
        %v3539 = vadd.f32 %v3490, %v3538
        %3540 = vmatmul.bf16.gmra.mxu0 %v3065
        %v3541 = vpop.f32.mrf.mxu0
        %v3542 = vadd.f32 %v3493, %v3541
        %v3543 = vpop.f32.mrf.mxu0
        %v3544 = vadd.f32 %v3495, %v3543
        %3545 = vmatmul.bf16.gmra.mxu0 %v3069
        %v3546 = vpop.f32.mrf.mxu0
        %v3547 = vadd.f32 %v3498, %v3546
        %v3548 = vpop.f32.mrf.mxu0
        %v3549 = vadd.f32 %v3500, %v3548
        %3550 = vmatmul.bf16.gmra.mxu0 %v3073
        %v3551 = vpop.f32.mrf.mxu0
        %v3552 = vadd.f32 %v3503, %v3551
        %v3553 = vpop.f32.mrf.mxu0
        %v3554 = vadd.f32 %v3505, %v3553
        %3555 = vmatmul.bf16.gmra.mxu0 %v3077
        %v3556 = vpop.f32.mrf.mxu0
        %v3557 = vadd.f32 %v3508, %v3556
        %v3558 = vpop.f32.mrf.mxu0
        %v3559 = vadd.f32 %v3510, %v3558
        %3560 = vmatmul.bf16.gmra.mxu0 %v3081
        %v3561 = vpop.f32.mrf.mxu0
        %v3562 = vadd.f32 %v3513, %v3561
        %v3563 = vpop.f32.mrf.mxu0
        %v3564 = vadd.f32 %v3515, %v3563
        %3565 = vdwg.mxu0
        %3566 = vmatpush.bf16.msra.mxu0 %v3386
        %3567 = vmatpush.bf16.msra.mxu0 %v3384
        %3568 = vmatpush.bf16.msra.mxu0 %v3382
        %3569 = vmatpush.bf16.msra.mxu0 %v3380
        %3570 = vmatpush.bf16.msra.mxu0 %v3378
        %3571 = vmatpush.bf16.msra.mxu0 %v3376
        %3572 = vmatpush.bf16.msra.mxu0 %v3374
        %3573 = vmatpush.bf16.msra.mxu0 %v3372
        %3574 = vmatmul.bf16.gmra.mxu0 %v3054
        %v3575 = vpop.f32.mrf.mxu0
        %v3576 = vadd.f32 %v3527, %v3575
        %v3577 = vpop.f32.mrf.mxu0
        %v3578 = vadd.f32 %v3529, %v3577
        %3579 = vmatmul.bf16.gmra.mxu0 %v3058
        %v3580 = vpop.f32.mrf.mxu0
        %v3581 = vadd.f32 %v3532, %v3580
        %v3582 = vpop.f32.mrf.mxu0
        %v3583 = vadd.f32 %v3534, %v3582
        %3584 = vmatmul.bf16.gmra.mxu0 %v3062
        %v3585 = vpop.f32.mrf.mxu0
        %v3586 = vadd.f32 %v3537, %v3585
        %v3587 = vpop.f32.mrf.mxu0
        %v3588 = vadd.f32 %v3539, %v3587
        %3589 = vmatmul.bf16.gmra.mxu0 %v3066
        %v3590 = vpop.f32.mrf.mxu0
        %v3591 = vadd.f32 %v3542, %v3590
        %v3592 = vpop.f32.mrf.mxu0
        %v3593 = vadd.f32 %v3544, %v3592
        %3594 = vmatmul.bf16.gmra.mxu0 %v3070
        %v3595 = vpop.f32.mrf.mxu0
        %v3596 = vadd.f32 %v3547, %v3595
        %v3597 = vpop.f32.mrf.mxu0
        %v3598 = vadd.f32 %v3549, %v3597
        %3599 = vmatmul.bf16.gmra.mxu0 %v3074
        %v3600 = vpop.f32.mrf.mxu0
        %v3601 = vadd.f32 %v3552, %v3600
        %v3602 = vpop.f32.mrf.mxu0
        %v3603 = vadd.f32 %v3554, %v3602
        %3604 = vmatmul.bf16.gmra.mxu0 %v3078
        %v3605 = vpop.f32.mrf.mxu0
        %v3606 = vadd.f32 %v3557, %v3605
        %v3607 = vpop.f32.mrf.mxu0
        %v3608 = vadd.f32 %v3559, %v3607
        %3609 = vmatmul.bf16.gmra.mxu0 %v3082
        %v3610 = vpop.f32.mrf.mxu0
        %v3611 = vadd.f32 %v3562, %v3610
        %v3612 = vpop.f32.mrf.mxu0
        %v3613 = vadd.f32 %v3564, %v3612
        %3614 = vdwg.mxu0
        %3615 = vmatpush.bf16.msra.mxu0 %v3402
        %3616 = vmatpush.bf16.msra.mxu0 %v3400
        %3617 = vmatpush.bf16.msra.mxu0 %v3398
        %3618 = vmatpush.bf16.msra.mxu0 %v3396
        %3619 = vmatpush.bf16.msra.mxu0 %v3394
        %3620 = vmatpush.bf16.msra.mxu0 %v3392
        %3621 = vmatpush.bf16.msra.mxu0 %v3390
        %3622 = vmatpush.bf16.msra.mxu0 %v3388
        %3623 = vmatmul.bf16.gmra.mxu0 %v3055
        %v3624 = vpop.f32.mrf.mxu0
        %v3625 = vadd.f32 %v3576, %v3624
        %v3626 = vpop.f32.mrf.mxu0
        %v3627 = vadd.f32 %v3578, %v3626
        %3628 = vmatmul.bf16.gmra.mxu0 %v3059
        %v3629 = vpop.f32.mrf.mxu0
        %v3630 = vadd.f32 %v3581, %v3629
        %v3631 = vpop.f32.mrf.mxu0
        %v3632 = vadd.f32 %v3583, %v3631
        %3633 = vmatmul.bf16.gmra.mxu0 %v3063
        %v3634 = vpop.f32.mrf.mxu0
        %v3635 = vadd.f32 %v3586, %v3634
        %v3636 = vpop.f32.mrf.mxu0
        %v3637 = vadd.f32 %v3588, %v3636
        %3638 = vmatmul.bf16.gmra.mxu0 %v3067
        %v3639 = vpop.f32.mrf.mxu0
        %v3640 = vadd.f32 %v3591, %v3639
        %v3641 = vpop.f32.mrf.mxu0
        %v3642 = vadd.f32 %v3593, %v3641
        %3643 = vmatmul.bf16.gmra.mxu0 %v3071
        %v3644 = vpop.f32.mrf.mxu0
        %v3645 = vadd.f32 %v3596, %v3644
        %v3646 = vpop.f32.mrf.mxu0
        %v3647 = vadd.f32 %v3598, %v3646
        %3648 = vmatmul.bf16.gmra.mxu0 %v3075
        %v3649 = vpop.f32.mrf.mxu0
        %v3650 = vadd.f32 %v3601, %v3649
        %v3651 = vpop.f32.mrf.mxu0
        %v3652 = vadd.f32 %v3603, %v3651
        %3653 = vmatmul.bf16.gmra.mxu0 %v3079
        %v3654 = vpop.f32.mrf.mxu0
        %v3655 = vadd.f32 %v3606, %v3654
        %v3656 = vpop.f32.mrf.mxu0
        %v3657 = vadd.f32 %v3608, %v3656
        %3658 = vmatmul.bf16.gmra.mxu0 %v3083
        %v3659 = vpop.f32.mrf.mxu0
        %v3660 = vadd.f32 %v3611, %v3659
        %v3661 = vpop.f32.mrf.mxu0
        %v3662 = vadd.f32 %v3613, %v3661
        %3663 = vdwg.mxu0
        %3664 = vmatpush.bf16.msra.mxu0 %v3355
        %3665 = vmatpush.bf16.msra.mxu0 %v3353
        %3666 = vmatpush.bf16.msra.mxu0 %v3351
        %3667 = vmatpush.bf16.msra.mxu0 %v3349
        %3668 = vmatpush.bf16.msra.mxu0 %v3347
        %3669 = vmatpush.bf16.msra.mxu0 %v3345
        %3670 = vmatpush.bf16.msra.mxu0 %v3343
        %3671 = vmatpush.bf16.msra.mxu0 %v3341
        %3672 = vmatmul.bf16.gmra.mxu0 %v3052
        %v3673 = vpop.f32.mrf.mxu0
        %v3674 = vadd.f32 0.0, %v3673
        %v3675 = vpop.f32.mrf.mxu0
        %v3676 = vadd.f32 0.0, %v3675
        %3677 = vmatmul.bf16.gmra.mxu0 %v3056
        %v3678 = vpop.f32.mrf.mxu0
        %v3679 = vadd.f32 0.0, %v3678
        %v3680 = vpop.f32.mrf.mxu0
        %v3681 = vadd.f32 0.0, %v3680
        %3682 = vmatmul.bf16.gmra.mxu0 %v3060
        %v3683 = vpop.f32.mrf.mxu0
        %v3684 = vadd.f32 0.0, %v3683
        %v3685 = vpop.f32.mrf.mxu0
        %v3686 = vadd.f32 0.0, %v3685
        %3687 = vmatmul.bf16.gmra.mxu0 %v3064
        %v3688 = vpop.f32.mrf.mxu0
        %v3689 = vadd.f32 0.0, %v3688
        %v3690 = vpop.f32.mrf.mxu0
        %v3691 = vadd.f32 0.0, %v3690
        %3692 = vmatmul.bf16.gmra.mxu0 %v3068
        %v3693 = vpop.f32.mrf.mxu0
        %v3694 = vadd.f32 0.0, %v3693
        %v3695 = vpop.f32.mrf.mxu0
        %v3696 = vadd.f32 0.0, %v3695
        %3697 = vmatmul.bf16.gmra.mxu0 %v3072
        %v3698 = vpop.f32.mrf.mxu0
        %v3699 = vadd.f32 0.0, %v3698
        %v3700 = vpop.f32.mrf.mxu0
        %v3701 = vadd.f32 0.0, %v3700
        %3702 = vmatmul.bf16.gmra.mxu0 %v3076
        %v3703 = vpop.f32.mrf.mxu0
        %v3704 = vadd.f32 0.0, %v3703
        %v3705 = vpop.f32.mrf.mxu0
        %v3706 = vadd.f32 0.0, %v3705
        %3707 = vmatmul.bf16.gmra.mxu0 %v3080
        %v3708 = vpop.f32.mrf.mxu0
        %v3709 = vadd.f32 0.0, %v3708
        %v3710 = vpop.f32.mrf.mxu0
        %v3711 = vadd.f32 0.0, %v3710
        %3712 = vdwg.mxu0
        %3713 = vmatpush.bf16.msra.mxu0 %v3371
        %3714 = vmatpush.bf16.msra.mxu0 %v3369
        %3715 = vmatpush.bf16.msra.mxu0 %v3367
        %3716 = vmatpush.bf16.msra.mxu0 %v3365
        %3717 = vmatpush.bf16.msra.mxu0 %v3363
        %3718 = vmatpush.bf16.msra.mxu0 %v3361
        %3719 = vmatpush.bf16.msra.mxu0 %v3359
        %3720 = vmatpush.bf16.msra.mxu0 %v3357
        %3721 = vmatmul.bf16.gmra.mxu0 %v3053
        %v3722 = vpop.f32.mrf.mxu0
        %v3723 = vadd.f32 %v3674, %v3722
        %v3724 = vpop.f32.mrf.mxu0
        %v3725 = vadd.f32 %v3676, %v3724
        %3726 = vmatmul.bf16.gmra.mxu0 %v3057
        %v3727 = vpop.f32.mrf.mxu0
        %v3728 = vadd.f32 %v3679, %v3727
        %v3729 = vpop.f32.mrf.mxu0
        %v3730 = vadd.f32 %v3681, %v3729
        %3731 = vmatmul.bf16.gmra.mxu0 %v3061
        %v3732 = vpop.f32.mrf.mxu0
        %v3733 = vadd.f32 %v3684, %v3732
        %v3734 = vpop.f32.mrf.mxu0
        %v3735 = vadd.f32 %v3686, %v3734
        %3736 = vmatmul.bf16.gmra.mxu0 %v3065
        %v3737 = vpop.f32.mrf.mxu0
        %v3738 = vadd.f32 %v3689, %v3737
        %v3739 = vpop.f32.mrf.mxu0
        %v3740 = vadd.f32 %v3691, %v3739
        %3741 = vmatmul.bf16.gmra.mxu0 %v3069
        %v3742 = vpop.f32.mrf.mxu0
        %v3743 = vadd.f32 %v3694, %v3742
        %v3744 = vpop.f32.mrf.mxu0
        %v3745 = vadd.f32 %v3696, %v3744
        %3746 = vmatmul.bf16.gmra.mxu0 %v3073
        %v3747 = vpop.f32.mrf.mxu0
        %v3748 = vadd.f32 %v3699, %v3747
        %v3749 = vpop.f32.mrf.mxu0
        %v3750 = vadd.f32 %v3701, %v3749
        %3751 = vmatmul.bf16.gmra.mxu0 %v3077
        %v3752 = vpop.f32.mrf.mxu0
        %v3753 = vadd.f32 %v3704, %v3752
        %v3754 = vpop.f32.mrf.mxu0
        %v3755 = vadd.f32 %v3706, %v3754
        %3756 = vmatmul.bf16.gmra.mxu0 %v3081
        %v3757 = vpop.f32.mrf.mxu0
        %v3758 = vadd.f32 %v3709, %v3757
        %v3759 = vpop.f32.mrf.mxu0
        %v3760 = vadd.f32 %v3711, %v3759
        %3761 = vdwg.mxu0
        %3762 = vmatpush.bf16.msra.mxu0 %v3387
        %3763 = vmatpush.bf16.msra.mxu0 %v3385
        %3764 = vmatpush.bf16.msra.mxu0 %v3383
        %3765 = vmatpush.bf16.msra.mxu0 %v3381
        %3766 = vmatpush.bf16.msra.mxu0 %v3379
        %3767 = vmatpush.bf16.msra.mxu0 %v3377
        %3768 = vmatpush.bf16.msra.mxu0 %v3375
        %3769 = vmatpush.bf16.msra.mxu0 %v3373
        %3770 = vmatmul.bf16.gmra.mxu0 %v3054
        %v3771 = vpop.f32.mrf.mxu0
        %v3772 = vadd.f32 %v3723, %v3771
        %v3773 = vpop.f32.mrf.mxu0
        %v3774 = vadd.f32 %v3725, %v3773
        %3775 = vmatmul.bf16.gmra.mxu0 %v3058
        %v3776 = vpop.f32.mrf.mxu0
        %v3777 = vadd.f32 %v3728, %v3776
        %v3778 = vpop.f32.mrf.mxu0
        %v3779 = vadd.f32 %v3730, %v3778
        %3780 = vmatmul.bf16.gmra.mxu0 %v3062
        %v3781 = vpop.f32.mrf.mxu0
        %v3782 = vadd.f32 %v3733, %v3781
        %v3783 = vpop.f32.mrf.mxu0
        %v3784 = vadd.f32 %v3735, %v3783
        %3785 = vmatmul.bf16.gmra.mxu0 %v3066
        %v3786 = vpop.f32.mrf.mxu0
        %v3787 = vadd.f32 %v3738, %v3786
        %v3788 = vpop.f32.mrf.mxu0
        %v3789 = vadd.f32 %v3740, %v3788
        %3790 = vmatmul.bf16.gmra.mxu0 %v3070
        %v3791 = vpop.f32.mrf.mxu0
        %v3792 = vadd.f32 %v3743, %v3791
        %v3793 = vpop.f32.mrf.mxu0
        %v3794 = vadd.f32 %v3745, %v3793
        %3795 = vmatmul.bf16.gmra.mxu0 %v3074
        %v3796 = vpop.f32.mrf.mxu0
        %v3797 = vadd.f32 %v3748, %v3796
        %v3798 = vpop.f32.mrf.mxu0
        %v3799 = vadd.f32 %v3750, %v3798
        %3800 = vmatmul.bf16.gmra.mxu0 %v3078
        %v3801 = vpop.f32.mrf.mxu0
        %v3802 = vadd.f32 %v3753, %v3801
        %v3803 = vpop.f32.mrf.mxu0
        %v3804 = vadd.f32 %v3755, %v3803
        %3805 = vmatmul.bf16.gmra.mxu0 %v3082
        %v3806 = vpop.f32.mrf.mxu0
        %v3807 = vadd.f32 %v3758, %v3806
        %v3808 = vpop.f32.mrf.mxu0
        %v3809 = vadd.f32 %v3760, %v3808
        %3810 = vdwg.mxu0
        %3811 = vmatpush.bf16.msra.mxu0 %v3403
        %3812 = vmatpush.bf16.msra.mxu0 %v3401
        %3813 = vmatpush.bf16.msra.mxu0 %v3399
        %3814 = vmatpush.bf16.msra.mxu0 %v3397
        %3815 = vmatpush.bf16.msra.mxu0 %v3395
        %3816 = vmatpush.bf16.msra.mxu0 %v3393
        %3817 = vmatpush.bf16.msra.mxu0 %v3391
        %3818 = vmatpush.bf16.msra.mxu0 %v3389
        %3819 = vmatmul.bf16.gmra.mxu0 %v3055
        %v3820 = vpop.f32.mrf.mxu0
        %v3821 = vadd.f32 %v3772, %v3820
        %v3822 = vpop.f32.mrf.mxu0
        %v3823 = vadd.f32 %v3774, %v3822
        %3824 = vmatmul.bf16.gmra.mxu0 %v3059
        %v3825 = vpop.f32.mrf.mxu0
        %v3826 = vadd.f32 %v3777, %v3825
        %v3827 = vpop.f32.mrf.mxu0
        %v3828 = vadd.f32 %v3779, %v3827
        %3829 = vmatmul.bf16.gmra.mxu0 %v3063
        %v3830 = vpop.f32.mrf.mxu0
        %v3831 = vadd.f32 %v3782, %v3830
        %v3832 = vpop.f32.mrf.mxu0
        %v3833 = vadd.f32 %v3784, %v3832
        %3834 = vmatmul.bf16.gmra.mxu0 %v3067
        %v3835 = vpop.f32.mrf.mxu0
        %v3836 = vadd.f32 %v3787, %v3835
        %v3837 = vpop.f32.mrf.mxu0
        %v3838 = vadd.f32 %v3789, %v3837
        %3839 = vmatmul.bf16.gmra.mxu0 %v3071
        %v3840 = vpop.f32.mrf.mxu0
        %v3841 = vadd.f32 %v3792, %v3840
        %v3842 = vpop.f32.mrf.mxu0
        %v3843 = vadd.f32 %v3794, %v3842
        %3844 = vmatmul.bf16.gmra.mxu0 %v3075
        %v3845 = vpop.f32.mrf.mxu0
        %v3846 = vadd.f32 %v3797, %v3845
        %v3847 = vpop.f32.mrf.mxu0
        %v3848 = vadd.f32 %v3799, %v3847
        %3849 = vmatmul.bf16.gmra.mxu0 %v3079
        %v3850 = vpop.f32.mrf.mxu0
        %v3851 = vadd.f32 %v3802, %v3850
        %v3852 = vpop.f32.mrf.mxu0
        %v3853 = vadd.f32 %v3804, %v3852
        %3854 = vmatmul.bf16.gmra.mxu0 %v3083
        %v3855 = vpop.f32.mrf.mxu0
        %v3856 = vadd.f32 %v3807, %v3855
        %v3857 = vpop.f32.mrf.mxu0
        %v3858 = vadd.f32 %v3809, %v3857
        %3859 = vdwg.mxu0
        %3860 = vst [vmem:[%s337] sm:$0xff] %v3625
        %3861 = vst [vmem:[%s337 + $0x8] sm:$0xff] %v3821
        %3862 = vst [vmem:[%s337 + $0x10] sm:$0xff] %v3627
        %3863 = vst [vmem:[%s337 + $0x18] sm:$0xff] %v3823
        %3864 = vst [vmem:[%s337 + $0x20] sm:$0xff] %v3630
        %3865 = vst [vmem:[%s337 + $0x28] sm:$0xff] %v3826
        %3866 = vst [vmem:[%s337 + $0x30] sm:$0xff] %v3632
        %3867 = vst [vmem:[%s337 + $0x38] sm:$0xff] %v3828
        %3868 = vst [vmem:[%s337 + $0x40] sm:$0xff] %v3635
        %3869 = vst [vmem:[%s337 + $0x48] sm:$0xff] %v3831
        %3870 = vst [vmem:[%s337 + $0x50] sm:$0xff] %v3637
        %3871 = vst [vmem:[%s337 + $0x58] sm:$0xff] %v3833
        %3872 = vst [vmem:[%s337 + $0x60] sm:$0xff] %v3640
        %3873 = vst [vmem:[%s337 + $0x68] sm:$0xff] %v3836
        %3874 = vst [vmem:[%s337 + $0x70] sm:$0xff] %v3642
        %3875 = vst [vmem:[%s337 + $0x78] sm:$0xff] %v3838
        %3876 = vst [vmem:[%s337 + $0x80] sm:$0xff] %v3645
        %3877 = vst [vmem:[%s337 + $0x88] sm:$0xff] %v3841
        %3878 = vst [vmem:[%s337 + $0x90] sm:$0xff] %v3647
        %3879 = vst [vmem:[%s337 + $0x98] sm:$0xff] %v3843
        %3880 = vst [vmem:[%s337 + $0xa0] sm:$0xff] %v3650
        %3881 = vst [vmem:[%s337 + $0xa8] sm:$0xff] %v3846
        %3882 = vst [vmem:[%s337 + $0xb0] sm:$0xff] %v3652
        %3883 = vst [vmem:[%s337 + $0xb8] sm:$0xff] %v3848
        %3884 = vst [vmem:[%s337 + $0xc0] sm:$0xff] %v3655
        %3885 = vst [vmem:[%s337 + $0xc8] sm:$0xff] %v3851
        %3886 = vst [vmem:[%s337 + $0xd0] sm:$0xff] %v3657
        %3887 = vst [vmem:[%s337 + $0xd8] sm:$0xff] %v3853
        %3888 = vst [vmem:[%s337 + $0xe0] sm:$0xff] %v3660
        %3889 = vst [vmem:[%s337 + $0xe8] sm:$0xff] %v3856
        %3890 = vst [vmem:[%s337 + $0xf0] sm:$0xff] %v3662
        %3891 = vst [vmem:[%s337 + $0xf8] sm:$0xff] %v3858
        %s3892 = sand.u32 %s149, 1
        %s3893 = scalar_lea.sflag [#allocation4], %s3892
        %s3894 = sand.u32 %s149, 1
        %s3895 = smul.addr %s3894, 256
        %s3896 = scalar_lea.vmem [#allocation11], %s3895
        // Predicated region
        $region61: #{tpu_custom_call.1} parent=39 // pred_check
          %p3897 = pneg %p159
        $region62: #{tpu_custom_call.1} parent=39 // pred_check_branch
          %3899 = sbr.rel (%p3897) target = $region64
        $region63: #{tpu_custom_call.1} parent=39 // pred_region
          %s3900 = smul.u32 16, %s26
          %3902 = vsyncadd %s3893, 0
          %s3903 = smul.addr %s3900, 2
          %s3904 = smul.addr %s3903, 8
          %s3905 = scalar_lea.hbm %s5, %s3904
          %s3906 = sshll.u32 %s3896, 4
          %s3907 = int_to_ptr.vmem [resolvable:$true] %s3906
          %s3908 = sshll.u32 %s3905, 4
          %s3909 = int_to_ptr.hbm [resolvable:$true] %s3908
          %3914 = dma.vmem_to_hbm [thread:$0]  %s3907, 4096, %s3909, %s3893, 256, 256, 16
        $region64: #{tpu_custom_call.1} parent=39 // pred_fallthru
          _
      $region40: #{tpu_custom_call.1} parent=5 // pred_fallthru
        _
      %p3915 = scmp.le.s32.totalorder 2, %s21
      // Predicated region
      $region65: #{tpu_custom_call.1} parent=5 // pred_check
        %p3916 = pneg %p3915
      $region66: #{tpu_custom_call.1} parent=5 // pred_check_branch
        %3918 = sbr.rel (%p3916) target = $region68
      $region67: #{tpu_custom_call.1} parent=5 // pred_region
        %s3919 = ssub.s32 %s21, 2
        // Predicated region
        $region69: #{tpu_custom_call.1} parent=67 // pred_check
          %p3920 = pneg %p165
        $region70: #{tpu_custom_call.1} parent=67 // pred_check_branch
          %3922 = sbr.rel (%p3920) target = $region72
        $region71: #{tpu_custom_call.1} parent=67 // pred_region
          %s3923 = sand.u32 %s150, 1
          %s3924 = scalar_lea.sflag [#allocation4], %s3923
          %s3925 = sand.u32 %s150, 1
          %s3926 = smul.addr %s3925, 256
          %s3927 = scalar_lea.vmem [#allocation11], %s3926
          %3929 = dma.done %s3924, 4096
        $region72: #{tpu_custom_call.1} parent=67 // pred_fallthru
          _
      $region68: #{tpu_custom_call.1} parent=5 // pred_fallthru
        _
    $region6: #{tpu_custom_call.1} parent=1 // loop_footer
      %s25 = sadd.s32 1, %s21
    $region7: #{tpu_custom_call.1} parent=1 // loop_footer_branch
      %20 = sbr.rel target = $region3
    $region8: #{tpu_custom_call.1} parent=1 // loop_exit
      _
    %3930 = vsyncpa [#allocation3], 1
    %s3931 = scalar_lea.sflag [#allocation3], 1
    %3932 = vsyncpa %s3931, 1
    %3933 = vsyncpa [#allocation6], 1
    %s3934 = scalar_lea.sflag [#allocation6], 1
    %3935 = vsyncpa %s3934, 1
    %3936 = vsyncpa [#allocation9], 1
    %3937 = vsyncpa [#allocation4], 1
    %s3938 = scalar_lea.sflag [#allocation4], 1
    %3939 = vsyncpa %s3938, 1

</llo_original>
